<compile_context>
chip_gen: v6e
topology: v6e:2x2x1
jax: 0.10.0
libtpu: 0.0.40
codegen_flags: <defaults>
</compile_context>

<pallas_src>
import functools
import math

import jax
import jax.numpy as jnp
from jax.experimental import pallas as pl
from jax.experimental.pallas import tpu as pltpu


_LN_EPS = 1e-5  # F.layer_norm default eps


def _layer_norm(v, eps=_LN_EPS):
    mu = jnp.mean(v, axis=-1, keepdims=True)
    c = v - mu
    var = jnp.mean(c * c, axis=-1, keepdims=True)
    return c * jax.lax.rsqrt(var + eps)


def _erf(z):
    # Abramowitz & Stegun 7.1.26, |error| <= 1.5e-7 -> float32-exact in practice.
    a1, a2, a3, a4, a5 = (0.254829592, -0.284496736, 1.421413741,
                          -1.453152027, 1.061405429)
    p = 0.3275911
    x = jnp.abs(z)
    t = 1.0 / (1.0 + p * x)
    poly = ((((a5 * t + a4) * t + a3) * t + a2) * t + a1) * t
    y = 1.0 - poly * jnp.exp(-x * x)
    return jnp.where(z >= 0.0, y, -y)


def _gelu_exact(x):
    # nn.GELU() default (erf formulation): 0.5*x*(1+erf(x/sqrt(2)))
    return 0.5 * x * (1.0 + _erf(x * 0.7071067811865476))


def _transformer_layer_kernel(
    x_ref,
    wq_ref, bq_ref, wk_ref, bk_ref, wv_ref, bv_ref,
    wo_ref, bo_ref,
    w1_ref, b1_ref, w2_ref, b2_ref,
    o_ref,
    *, n_heads,
):
    x = x_ref[0].astype(jnp.float32)                      # (S, D)
    S, D = x.shape
    hd = D // n_heads
    scale = 1.0 / math.sqrt(hd)

    # ---------------- sub-layer 1: causal MHA on LN(x), + residual ----------
    hn = _layer_norm(x)

    row = jax.lax.broadcasted_iota(jnp.int32, (S, S), 0)  # query index
    col = jax.lax.broadcasted_iota(jnp.int32, (S, S), 1)  # key index
    causal = col <= row                                   # allowed positions

    acc = jnp.zeros((S, D), dtype=jnp.float32)
    for h in range(n_heads):                              # unrolled (static)
        qh = jnp.dot(hn, wq_ref[h], preferred_element_type=jnp.float32) + bq_ref[h]
        kh = jnp.dot(hn, wk_ref[h], preferred_element_type=jnp.float32) + bk_ref[h]
        vh = jnp.dot(hn, wv_ref[h], preferred_element_type=jnp.float32) + bv_ref[h]

        s = jax.lax.dot_general(                           # q @ k^T  (NT matmul)
            qh, kh, (((1,), (1,)), ((), ())),
            preferred_element_type=jnp.float32) * scale
        s = jnp.where(causal, s, -jnp.inf)
        s_max = jnp.max(s, axis=-1, keepdims=True)
        p = jnp.exp(s - s_max)
        p = p / jnp.sum(p, axis=-1, keepdims=True)

        oh = jnp.dot(p, vh, preferred_element_type=jnp.float32)        # (S, hd)
        # concat_h(oh) @ Wo  ==  sum_h  oh @ Wo[h*hd:(h+1)*hd, :]
        acc = acc + jnp.dot(oh, wo_ref[h], preferred_element_type=jnp.float32)

    h1 = acc + bo_ref[...] + x                             # residual 1

    # ---------------- sub-layer 2: MLP on LN(h1), + residual -----------------
    hn2 = _layer_norm(h1)
    m = jnp.dot(hn2, w1_ref[...], preferred_element_type=jnp.float32) + b1_ref[...]
    m = _gelu_exact(m)
    out = jnp.dot(m, w2_ref[...], preferred_element_type=jnp.float32) + b2_ref[...] + h1

    o_ref[0] = out.astype(o_ref.dtype)


def transformer_layer(x, params, n_heads):
    """Pallas TPU forward of TransformerLayer.

    x: (B, S, D) float array.
    params: dict of weights in (in_features, out_features) layout (y = x @ W + b).
    """
    B, S, D = x.shape
    assert D % n_heads == 0
    hd = D // n_heads
    FF = params["w1"].shape[1]

    # Pre-split projection weights per head outside the kernel (cheap one-time
    # relayout in XLA); the kernel then only does full-ref loads + matmuls.
    wq_h = params["wq"].reshape(D, n_heads, hd).transpose(1, 0, 2)   # (H, D, hd)
    wk_h = params["wk"].reshape(D, n_heads, hd).transpose(1, 0, 2)
    wv_h = params["wv"].reshape(D, n_heads, hd).transpose(1, 0, 2)
    bq_h = params["bq"].reshape(n_heads, 1, hd)
    bk_h = params["bk"].reshape(n_heads, 1, hd)
    bv_h = params["bv"].reshape(n_heads, 1, hd)
    wo_h = params["wo"].reshape(n_heads, hd, D)                      # (H, hd, D)
    bo_2 = params["bo"].reshape(1, D)
    w1 = params["w1"]
    b1_2 = params["b1"].reshape(1, FF)
    w2 = params["w2"]
    b2_2 = params["b2"].reshape(1, D)

    def _full(shape):
        n = len(shape)
        return pl.BlockSpec(shape, lambda b: (0,) * n)

    in_specs = [
        pl.BlockSpec((1, S, D), lambda b: (b, 0, 0)),                # x
        _full((n_heads, D, hd)), _full((n_heads, 1, hd)),            # wq, bq
        _full((n_heads, D, hd)), _full((n_heads, 1, hd)),            # wk, bk
        _full((n_heads, D, hd)), _full((n_heads, 1, hd)),            # wv, bv
        _full((n_heads, hd, D)), _full((1, D)),                      # wo, bo
        _full((D, FF)), _full((1, FF)),                              # w1, b1
        _full((FF, D)), _full((1, D)),                               # w2, b2
    ]
    out_spec = pl.BlockSpec((1, S, D), lambda b: (b, 0, 0))

    return pl.pallas_call(
        functools.partial(_transformer_layer_kernel, n_heads=n_heads),
        out_shape=jax.ShapeDtypeStruct((B, S, D), x.dtype),
        grid=(B,),
        in_specs=in_specs,
        out_specs=out_spec,
        compiler_params=pltpu.CompilerParams(
            dimension_semantics=("parallel",),  # batch axis -> megacore on v7x
        ),
    )(x, wq_h, bq_h, wk_h, bk_h, wv_h, bv_h, wo_h, bo_2, w1, b1_2, w2, b2_2)


class TransformerLayerPallas:
    """Parameter container mirroring the PyTorch TransformerLayer interface."""

    def __init__(self, dim, n_heads, ff_dim=None, *, key):
        if ff_dim is None:
            ff_dim = dim * 4
        self.dim, self.n_heads, self.ff_dim = dim, n_heads, ff_dim
        ks = jax.random.split(key, 12)

        def lin(kw, kb, fan_in, fan_out):
            bound = 1.0 / math.sqrt(fan_in)
            w = jax.random.uniform(kw, (fan_in, fan_out), jnp.float32, -bound, bound)
            b = jax.random.uniform(kb, (fan_out,), jnp.float32, -bound, bound)
            return w, b

        p = {}
        p["wq"], p["bq"] = lin(ks[0], ks[1], dim, dim)
        p["wk"], p["bk"] = lin(ks[2], ks[3], dim, dim)
        p["wv"], p["bv"] = lin(ks[4], ks[5], dim, dim)
        p["wo"], p["bo"] = lin(ks[6], ks[7], dim, dim)
        p["w1"], p["b1"] = lin(ks[8], ks[9], dim, ff_dim)
        p["w2"], p["b2"] = lin(ks[10], ks[11], ff_dim, dim)
        self.params = p

    def __call__(self, x):
        return transformer_layer(x, self.params, self.n_heads)


# ---------------- pure-JAX reference (mirrors the PyTorch math) --------------
def _reference_transformer_layer(x, params, n_heads):
    B, S, D = x.shape
    hd = D // n_heads

    def ln(v):
        mu = jnp.mean(v, axis=-1, keepdims=True)
        var = jnp.mean((v - mu) ** 2, axis=-1, keepdims=True)
        return (v - mu) / jnp.sqrt(var + _LN_EPS)

    h = ln(x)

    def proj(w, b):
        y = h @ w + b
        return y.reshape(B, S, n_heads, hd).transpose(0, 2, 1, 3)    # (B,H,S,hd)

    q = proj(params["wq"], params["bq"])
    k = proj(params["wk"], params["bk"])
    v = proj(params["wv"], params["bv"])
    scores = (q @ k.transpose(0, 1, 3, 2)) / math.sqrt(hd)
    mask = jnp.tril(jnp.ones((S, S), dtype=bool))
    scores = jnp.where(mask, scores, -jnp.inf)
    p = jax.nn.softmax(scores, axis=-1)
    o = (p @ v).transpose(0, 2, 1, 3).reshape(B, S, D)
    h1 = o @ params["wo"] + params["bo"] + x
    hn2 = ln(h1)
    m = jax.nn.gelu(hn2 @ params["w1"] + params["b1"], approximate=False)
    return m @ params["w2"] + params["b2"] + h1


if __name__ == "__main__":
    key = jax.random.PRNGKey(0)
    kx, kp = jax.random.split(key)
    B, S, D, H = 2, 8, 32, 4

    x = jax.random.normal(kx, (B, S, D), dtype=jnp.float32)
    layer = TransformerLayerPallas(D, H, key=kp)

    out = jax.block_until_ready(layer(x))

    assert out.shape == (B, S, D), out.shape
    assert out.dtype == jnp.float32, out.dtype
    assert bool(jnp.all(jnp.isfinite(out)))

    ref = _reference_transformer_layer(x, layer.params, H)
    # Loose tolerance: the MXU f32 matmul path may use bf16 passes that differ
    # slightly from XLA's reference dot; structural bugs would show O(1) error.
    rel_err = float(jnp.linalg.norm(out - ref) / (jnp.linalg.norm(ref) + 1e-12))
    assert rel_err < 2e-2, f"relative error too large: {rel_err}"

    print("KERNEL_OK")
</pallas_src>

<mosaic_0001>
module attributes {stable_mosaic.version = 11 : i64} {
  func.func @_transformer_layer_kernel(%arg0: i32, %arg1: memref<1x8x32xf32, #tpu.memory_space<vmem>>, %arg2: memref<4x32x8xf32, #tpu.memory_space<vmem>>, %arg3: memref<4x1x8xf32, #tpu.memory_space<vmem>>, %arg4: memref<4x32x8xf32, #tpu.memory_space<vmem>>, %arg5: memref<4x1x8xf32, #tpu.memory_space<vmem>>, %arg6: memref<4x32x8xf32, #tpu.memory_space<vmem>>, %arg7: memref<4x1x8xf32, #tpu.memory_space<vmem>>, %arg8: memref<4x8x32xf32, #tpu.memory_space<vmem>>, %arg9: memref<1x32xf32, #tpu.memory_space<vmem>>, %arg10: memref<32x128xf32, #tpu.memory_space<vmem>>, %arg11: memref<1x128xf32, #tpu.memory_space<vmem>>, %arg12: memref<128x32xf32, #tpu.memory_space<vmem>>, %arg13: memref<1x32xf32, #tpu.memory_space<vmem>>, %arg14: memref<1x8x32xf32, #tpu.memory_space<vmem>>) attributes {dimension_semantics = [#tpu.dimension_semantics<parallel>], iteration_bounds = array<i64: 2>, scalar_prefetch = 0 : i64, scratch_operands = 0 : i64, tpu.core_type = #tpu.core_type<tc>, window_params = [{transform_indices = @transform_0, window_bounds = array<i64: 1, 8, 32>}, {pipeline_mode = #tpu.pipeline_mode<synchronous>, transform_indices = @transform_1, window_bounds = array<i64: 4, 32, 8>}, {pipeline_mode = #tpu.pipeline_mode<synchronous>, transform_indices = @transform_2, window_bounds = array<i64: 4, 1, 8>}, {pipeline_mode = #tpu.pipeline_mode<synchronous>, transform_indices = @transform_3, window_bounds = array<i64: 4, 32, 8>}, {pipeline_mode = #tpu.pipeline_mode<synchronous>, transform_indices = @transform_4, window_bounds = array<i64: 4, 1, 8>}, {pipeline_mode = #tpu.pipeline_mode<synchronous>, transform_indices = @transform_5, window_bounds = array<i64: 4, 32, 8>}, {pipeline_mode = #tpu.pipeline_mode<synchronous>, transform_indices = @transform_6, window_bounds = array<i64: 4, 1, 8>}, {pipeline_mode = #tpu.pipeline_mode<synchronous>, transform_indices = @transform_7, window_bounds = array<i64: 4, 8, 32>}, {pipeline_mode = #tpu.pipeline_mode<synchronous>, transform_indices = @transform_8, window_bounds = array<i64: 1, 32>}, {pipeline_mode = #tpu.pipeline_mode<synchronous>, transform_indices = @transform_9, window_bounds = array<i64: 32, 128>}, {pipeline_mode = #tpu.pipeline_mode<synchronous>, transform_indices = @transform_10, window_bounds = array<i64: 1, 128>}, {pipeline_mode = #tpu.pipeline_mode<synchronous>, transform_indices = @transform_11, window_bounds = array<i64: 128, 32>}, {pipeline_mode = #tpu.pipeline_mode<synchronous>, transform_indices = @transform_12, window_bounds = array<i64: 1, 32>}, {transform_indices = @transform_13, window_bounds = array<i64: 1, 8, 32>}]} {
    %c0 = arith.constant 0 : index
    %c0_0 = arith.constant 0 : index
    %c0_1 = arith.constant 0 : index
    %0 = vector.load %arg1[%c0, %c0_0, %c0_1] : memref<1x8x32xf32, #tpu.memory_space<vmem>>, vector<1x8x32xf32>
    %1 = vector.shape_cast %0 : vector<1x8x32xf32> to vector<8x32xf32>
    %cst = arith.constant dense<0.000000e+00> : vector<8xf32>
    %2 = vector.multi_reduction <add>, %1, %cst [1] : vector<8x32xf32> to vector<8xf32>
    %3 = vector.shape_cast %2 : vector<8xf32> to vector<8x1xf32>
    %cst_2 = arith.constant 3.200000e+01 : f32
    %4 = vector.broadcast %cst_2 : f32 to vector<8x1xf32>
    %5 = arith.divf %3, %4 : vector<8x1xf32>
    %6 = vector.broadcast %5 : vector<8x1xf32> to vector<8x32xf32>
    %7 = arith.subf %1, %6 : vector<8x32xf32>
    %8 = arith.mulf %7, %7 : vector<8x32xf32>
    %cst_3 = arith.constant dense<0.000000e+00> : vector<8xf32>
    %9 = vector.multi_reduction <add>, %8, %cst_3 [1] : vector<8x32xf32> to vector<8xf32>
    %10 = vector.shape_cast %9 : vector<8xf32> to vector<8x1xf32>
    %cst_4 = arith.constant 3.200000e+01 : f32
    %11 = vector.broadcast %cst_4 : f32 to vector<8x1xf32>
    %12 = arith.divf %10, %11 : vector<8x1xf32>
    %cst_5 = arith.constant 9.99999974E-6 : f32
    %13 = vector.broadcast %cst_5 : f32 to vector<8x1xf32>
    %14 = arith.addf %12, %13 : vector<8x1xf32>
    %15 = math.rsqrt %14 : vector<8x1xf32>
    %16 = vector.broadcast %15 : vector<8x1xf32> to vector<8x32xf32>
    %17 = arith.mulf %7, %16 : vector<8x32xf32>
    %18 = tpu.iota {dimensions = array<i32: 0>} : vector<8x8xi32>
    %19 = tpu.iota {dimensions = array<i32: 1>} : vector<8x8xi32>
    %20 = arith.cmpi sle, %19, %18 : vector<8x8xi32>
    %cst_6 = arith.constant 0.000000e+00 : f32
    %21 = vector.broadcast %cst_6 : f32 to vector<8x32xf32>
    %c0_7 = arith.constant 0 : index
    %c0_8 = arith.constant 0 : index
    %c0_9 = arith.constant 0 : index
    %22 = vector.load %arg2[%c0_7, %c0_8, %c0_9] : memref<4x32x8xf32, #tpu.memory_space<vmem>>, vector<1x32x8xf32>
    %23 = vector.shape_cast %22 : vector<1x32x8xf32> to vector<32x8xf32>
    %cst_10 = arith.constant dense<0.000000e+00> : vector<8x8xf32>
    %24 = tpu.matmul %17, %23, %cst_10 {dimension_numbers = #tpu.dot_dimension_numbers<[1], [0], [0], [1], [0, 0, 1, 1], [], []>} : vector<8x32xf32>, vector<32x8xf32>, vector<8x8xf32> -> vector<8x8xf32>
    %c0_11 = arith.constant 0 : index
    %c0_12 = arith.constant 0 : index
    %c0_13 = arith.constant 0 : index
    %25 = vector.load %arg3[%c0_11, %c0_12, %c0_13] : memref<4x1x8xf32, #tpu.memory_space<vmem>>, vector<1x1x8xf32>
    %26 = vector.shape_cast %25 : vector<1x1x8xf32> to vector<1x8xf32>
    %27 = vector.broadcast %26 : vector<1x8xf32> to vector<8x8xf32>
    %28 = arith.addf %24, %27 : vector<8x8xf32>
    %c0_14 = arith.constant 0 : index
    %c0_15 = arith.constant 0 : index
    %c0_16 = arith.constant 0 : index
    %29 = vector.load %arg4[%c0_14, %c0_15, %c0_16] : memref<4x32x8xf32, #tpu.memory_space<vmem>>, vector<1x32x8xf32>
    %30 = vector.shape_cast %29 : vector<1x32x8xf32> to vector<32x8xf32>
    %cst_17 = arith.constant dense<0.000000e+00> : vector<8x8xf32>
    %31 = tpu.matmul %17, %30, %cst_17 {dimension_numbers = #tpu.dot_dimension_numbers<[1], [0], [0], [1], [0, 0, 1, 1], [], []>} : vector<8x32xf32>, vector<32x8xf32>, vector<8x8xf32> -> vector<8x8xf32>
    %c0_18 = arith.constant 0 : index
    %c0_19 = arith.constant 0 : index
    %c0_20 = arith.constant 0 : index
    %32 = vector.load %arg5[%c0_18, %c0_19, %c0_20] : memref<4x1x8xf32, #tpu.memory_space<vmem>>, vector<1x1x8xf32>
    %33 = vector.shape_cast %32 : vector<1x1x8xf32> to vector<1x8xf32>
    %34 = vector.broadcast %33 : vector<1x8xf32> to vector<8x8xf32>
    %35 = arith.addf %31, %34 : vector<8x8xf32>
    %c0_21 = arith.constant 0 : index
    %c0_22 = arith.constant 0 : index
    %c0_23 = arith.constant 0 : index
    %36 = vector.load %arg6[%c0_21, %c0_22, %c0_23] : memref<4x32x8xf32, #tpu.memory_space<vmem>>, vector<1x32x8xf32>
    %37 = vector.shape_cast %36 : vector<1x32x8xf32> to vector<32x8xf32>
    %cst_24 = arith.constant dense<0.000000e+00> : vector<8x8xf32>
    %38 = tpu.matmul %17, %37, %cst_24 {dimension_numbers = #tpu.dot_dimension_numbers<[1], [0], [0], [1], [0, 0, 1, 1], [], []>} : vector<8x32xf32>, vector<32x8xf32>, vector<8x8xf32> -> vector<8x8xf32>
    %c0_25 = arith.constant 0 : index
    %c0_26 = arith.constant 0 : index
    %c0_27 = arith.constant 0 : index
    %39 = vector.load %arg7[%c0_25, %c0_26, %c0_27] : memref<4x1x8xf32, #tpu.memory_space<vmem>>, vector<1x1x8xf32>
    %40 = vector.shape_cast %39 : vector<1x1x8xf32> to vector<1x8xf32>
    %41 = vector.broadcast %40 : vector<1x8xf32> to vector<8x8xf32>
    %42 = arith.addf %38, %41 : vector<8x8xf32>
    %cst_28 = arith.constant dense<0.000000e+00> : vector<8x8xf32>
    %43 = tpu.matmul %28, %35, %cst_28 {dimension_numbers = #tpu.dot_dimension_numbers<[1], [1], [0], [0], [0, 0, 1, 0], [], []>} : vector<8x8xf32>, vector<8x8xf32>, vector<8x8xf32> -> vector<8x8xf32>
    %cst_29 = arith.constant 0.353553385 : f32
    %44 = vector.broadcast %cst_29 : f32 to vector<8x8xf32>
    %45 = arith.mulf %43, %44 : vector<8x8xf32>
    %cst_30 = arith.constant 0xFF800000 : f32
    %46 = vector.broadcast %cst_30 : f32 to vector<8x8xf32>
    %47 = arith.select %20, %45, %46 : vector<8x8xi1>, vector<8x8xf32>
    %cst_31 = arith.constant dense<0xFF800000> : vector<8xf32>
    %48 = vector.multi_reduction <maximumf>, %47, %cst_31 [1] : vector<8x8xf32> to vector<8xf32>
    %49 = vector.shape_cast %48 : vector<8xf32> to vector<8x1xf32>
    %50 = vector.broadcast %49 : vector<8x1xf32> to vector<8x8xf32>
    %51 = arith.subf %47, %50 : vector<8x8xf32>
    %52 = math.exp %51 : vector<8x8xf32>
    %cst_32 = arith.constant dense<0.000000e+00> : vector<8xf32>
    %53 = vector.multi_reduction <add>, %52, %cst_32 [1] : vector<8x8xf32> to vector<8xf32>
    %54 = vector.shape_cast %53 : vector<8xf32> to vector<8x1xf32>
    %55 = vector.broadcast %54 : vector<8x1xf32> to vector<8x8xf32>
    %56 = arith.divf %52, %55 : vector<8x8xf32>
    %cst_33 = arith.constant dense<0.000000e+00> : vector<8x8xf32>
    %57 = tpu.matmul %56, %42, %cst_33 {dimension_numbers = #tpu.dot_dimension_numbers<[1], [0], [0], [1], [0, 0, 1, 1], [], []>} : vector<8x8xf32>, vector<8x8xf32>, vector<8x8xf32> -> vector<8x8xf32>
    %c0_34 = arith.constant 0 : index
    %c0_35 = arith.constant 0 : index
    %c0_36 = arith.constant 0 : index
    %58 = vector.load %arg8[%c0_34, %c0_35, %c0_36] : memref<4x8x32xf32, #tpu.memory_space<vmem>>, vector<1x8x32xf32>
    %59 = vector.shape_cast %58 : vector<1x8x32xf32> to vector<8x32xf32>
    %cst_37 = arith.constant dense<0.000000e+00> : vector<8x32xf32>
    %60 = tpu.matmul %57, %59, %cst_37 {dimension_numbers = #tpu.dot_dimension_numbers<[1], [0], [0], [1], [0, 0, 1, 1], [], []>} : vector<8x8xf32>, vector<8x32xf32>, vector<8x32xf32> -> vector<8x32xf32>
    %61 = arith.addf %21, %60 : vector<8x32xf32>
    %c1 = arith.constant 1 : index
    %c0_38 = arith.constant 0 : index
    %c0_39 = arith.constant 0 : index
    %62 = vector.load %arg2[%c1, %c0_38, %c0_39] : memref<4x32x8xf32, #tpu.memory_space<vmem>>, vector<1x32x8xf32>
    %63 = vector.shape_cast %62 : vector<1x32x8xf32> to vector<32x8xf32>
    %cst_40 = arith.constant dense<0.000000e+00> : vector<8x8xf32>
    %64 = tpu.matmul %17, %63, %cst_40 {dimension_numbers = #tpu.dot_dimension_numbers<[1], [0], [0], [1], [0, 0, 1, 1], [], []>} : vector<8x32xf32>, vector<32x8xf32>, vector<8x8xf32> -> vector<8x8xf32>
    %c1_41 = arith.constant 1 : index
    %c0_42 = arith.constant 0 : index
    %c0_43 = arith.constant 0 : index
    %65 = vector.load %arg3[%c1_41, %c0_42, %c0_43] : memref<4x1x8xf32, #tpu.memory_space<vmem>>, vector<1x1x8xf32>
    %66 = vector.shape_cast %65 : vector<1x1x8xf32> to vector<1x8xf32>
    %67 = vector.broadcast %66 : vector<1x8xf32> to vector<8x8xf32>
    %68 = arith.addf %64, %67 : vector<8x8xf32>
    %c1_44 = arith.constant 1 : index
    %c0_45 = arith.constant 0 : index
    %c0_46 = arith.constant 0 : index
    %69 = vector.load %arg4[%c1_44, %c0_45, %c0_46] : memref<4x32x8xf32, #tpu.memory_space<vmem>>, vector<1x32x8xf32>
    %70 = vector.shape_cast %69 : vector<1x32x8xf32> to vector<32x8xf32>
    %cst_47 = arith.constant dense<0.000000e+00> : vector<8x8xf32>
    %71 = tpu.matmul %17, %70, %cst_47 {dimension_numbers = #tpu.dot_dimension_numbers<[1], [0], [0], [1], [0, 0, 1, 1], [], []>} : vector<8x32xf32>, vector<32x8xf32>, vector<8x8xf32> -> vector<8x8xf32>
    %c1_48 = arith.constant 1 : index
    %c0_49 = arith.constant 0 : index
    %c0_50 = arith.constant 0 : index
    %72 = vector.load %arg5[%c1_48, %c0_49, %c0_50] : memref<4x1x8xf32, #tpu.memory_space<vmem>>, vector<1x1x8xf32>
    %73 = vector.shape_cast %72 : vector<1x1x8xf32> to vector<1x8xf32>
    %74 = vector.broadcast %73 : vector<1x8xf32> to vector<8x8xf32>
    %75 = arith.addf %71, %74 : vector<8x8xf32>
    %c1_51 = arith.constant 1 : index
    %c0_52 = arith.constant 0 : index
    %c0_53 = arith.constant 0 : index
    %76 = vector.load %arg6[%c1_51, %c0_52, %c0_53] : memref<4x32x8xf32, #tpu.memory_space<vmem>>, vector<1x32x8xf32>
    %77 = vector.shape_cast %76 : vector<1x32x8xf32> to vector<32x8xf32>
    %cst_54 = arith.constant dense<0.000000e+00> : vector<8x8xf32>
    %78 = tpu.matmul %17, %77, %cst_54 {dimension_numbers = #tpu.dot_dimension_numbers<[1], [0], [0], [1], [0, 0, 1, 1], [], []>} : vector<8x32xf32>, vector<32x8xf32>, vector<8x8xf32> -> vector<8x8xf32>
    %c1_55 = arith.constant 1 : index
    %c0_56 = arith.constant 0 : index
    %c0_57 = arith.constant 0 : index
    %79 = vector.load %arg7[%c1_55, %c0_56, %c0_57] : memref<4x1x8xf32, #tpu.memory_space<vmem>>, vector<1x1x8xf32>
    %80 = vector.shape_cast %79 : vector<1x1x8xf32> to vector<1x8xf32>
    %81 = vector.broadcast %80 : vector<1x8xf32> to vector<8x8xf32>
    %82 = arith.addf %78, %81 : vector<8x8xf32>
    %cst_58 = arith.constant dense<0.000000e+00> : vector<8x8xf32>
    %83 = tpu.matmul %68, %75, %cst_58 {dimension_numbers = #tpu.dot_dimension_numbers<[1], [1], [0], [0], [0, 0, 1, 0], [], []>} : vector<8x8xf32>, vector<8x8xf32>, vector<8x8xf32> -> vector<8x8xf32>
    %cst_59 = arith.constant 0.353553385 : f32
    %84 = vector.broadcast %cst_59 : f32 to vector<8x8xf32>
    %85 = arith.mulf %83, %84 : vector<8x8xf32>
    %cst_60 = arith.constant 0xFF800000 : f32
    %86 = vector.broadcast %cst_60 : f32 to vector<8x8xf32>
    %87 = arith.select %20, %85, %86 : vector<8x8xi1>, vector<8x8xf32>
    %cst_61 = arith.constant dense<0xFF800000> : vector<8xf32>
    %88 = vector.multi_reduction <maximumf>, %87, %cst_61 [1] : vector<8x8xf32> to vector<8xf32>
    %89 = vector.shape_cast %88 : vector<8xf32> to vector<8x1xf32>
    %90 = vector.broadcast %89 : vector<8x1xf32> to vector<8x8xf32>
    %91 = arith.subf %87, %90 : vector<8x8xf32>
    %92 = math.exp %91 : vector<8x8xf32>
    %cst_62 = arith.constant dense<0.000000e+00> : vector<8xf32>
    %93 = vector.multi_reduction <add>, %92, %cst_62 [1] : vector<8x8xf32> to vector<8xf32>
    %94 = vector.shape_cast %93 : vector<8xf32> to vector<8x1xf32>
    %95 = vector.broadcast %94 : vector<8x1xf32> to vector<8x8xf32>
    %96 = arith.divf %92, %95 : vector<8x8xf32>
    %cst_63 = arith.constant dense<0.000000e+00> : vector<8x8xf32>
    %97 = tpu.matmul %96, %82, %cst_63 {dimension_numbers = #tpu.dot_dimension_numbers<[1], [0], [0], [1], [0, 0, 1, 1], [], []>} : vector<8x8xf32>, vector<8x8xf32>, vector<8x8xf32> -> vector<8x8xf32>
    %c1_64 = arith.constant 1 : index
    %c0_65 = arith.constant 0 : index
    %c0_66 = arith.constant 0 : index
    %98 = vector.load %arg8[%c1_64, %c0_65, %c0_66] : memref<4x8x32xf32, #tpu.memory_space<vmem>>, vector<1x8x32xf32>
    %99 = vector.shape_cast %98 : vector<1x8x32xf32> to vector<8x32xf32>
    %cst_67 = arith.constant dense<0.000000e+00> : vector<8x32xf32>
    %100 = tpu.matmul %97, %99, %cst_67 {dimension_numbers = #tpu.dot_dimension_numbers<[1], [0], [0], [1], [0, 0, 1, 1], [], []>} : vector<8x8xf32>, vector<8x32xf32>, vector<8x32xf32> -> vector<8x32xf32>
    %101 = arith.addf %61, %100 : vector<8x32xf32>
    %c2 = arith.constant 2 : index
    %c0_68 = arith.constant 0 : index
    %c0_69 = arith.constant 0 : index
    %102 = vector.load %arg2[%c2, %c0_68, %c0_69] : memref<4x32x8xf32, #tpu.memory_space<vmem>>, vector<1x32x8xf32>
    %103 = vector.shape_cast %102 : vector<1x32x8xf32> to vector<32x8xf32>
    %cst_70 = arith.constant dense<0.000000e+00> : vector<8x8xf32>
    %104 = tpu.matmul %17, %103, %cst_70 {dimension_numbers = #tpu.dot_dimension_numbers<[1], [0], [0], [1], [0, 0, 1, 1], [], []>} : vector<8x32xf32>, vector<32x8xf32>, vector<8x8xf32> -> vector<8x8xf32>
    %c2_71 = arith.constant 2 : index
    %c0_72 = arith.constant 0 : index
    %c0_73 = arith.constant 0 : index
    %105 = vector.load %arg3[%c2_71, %c0_72, %c0_73] : memref<4x1x8xf32, #tpu.memory_space<vmem>>, vector<1x1x8xf32>
    %106 = vector.shape_cast %105 : vector<1x1x8xf32> to vector<1x8xf32>
    %107 = vector.broadcast %106 : vector<1x8xf32> to vector<8x8xf32>
    %108 = arith.addf %104, %107 : vector<8x8xf32>
    %c2_74 = arith.constant 2 : index
    %c0_75 = arith.constant 0 : index
    %c0_76 = arith.constant 0 : index
    %109 = vector.load %arg4[%c2_74, %c0_75, %c0_76] : memref<4x32x8xf32, #tpu.memory_space<vmem>>, vector<1x32x8xf32>
    %110 = vector.shape_cast %109 : vector<1x32x8xf32> to vector<32x8xf32>
    %cst_77 = arith.constant dense<0.000000e+00> : vector<8x8xf32>
    %111 = tpu.matmul %17, %110, %cst_77 {dimension_numbers = #tpu.dot_dimension_numbers<[1], [0], [0], [1], [0, 0, 1, 1], [], []>} : vector<8x32xf32>, vector<32x8xf32>, vector<8x8xf32> -> vector<8x8xf32>
    %c2_78 = arith.constant 2 : index
    %c0_79 = arith.constant 0 : index
    %c0_80 = arith.constant 0 : index
    %112 = vector.load %arg5[%c2_78, %c0_79, %c0_80] : memref<4x1x8xf32, #tpu.memory_space<vmem>>, vector<1x1x8xf32>
    %113 = vector.shape_cast %112 : vector<1x1x8xf32> to vector<1x8xf32>
    %114 = vector.broadcast %113 : vector<1x8xf32> to vector<8x8xf32>
    %115 = arith.addf %111, %114 : vector<8x8xf32>
    %c2_81 = arith.constant 2 : index
    %c0_82 = arith.constant 0 : index
    %c0_83 = arith.constant 0 : index
    %116 = vector.load %arg6[%c2_81, %c0_82, %c0_83] : memref<4x32x8xf32, #tpu.memory_space<vmem>>, vector<1x32x8xf32>
    %117 = vector.shape_cast %116 : vector<1x32x8xf32> to vector<32x8xf32>
    %cst_84 = arith.constant dense<0.000000e+00> : vector<8x8xf32>
    %118 = tpu.matmul %17, %117, %cst_84 {dimension_numbers = #tpu.dot_dimension_numbers<[1], [0], [0], [1], [0, 0, 1, 1], [], []>} : vector<8x32xf32>, vector<32x8xf32>, vector<8x8xf32> -> vector<8x8xf32>
    %c2_85 = arith.constant 2 : index
    %c0_86 = arith.constant 0 : index
    %c0_87 = arith.constant 0 : index
    %119 = vector.load %arg7[%c2_85, %c0_86, %c0_87] : memref<4x1x8xf32, #tpu.memory_space<vmem>>, vector<1x1x8xf32>
    %120 = vector.shape_cast %119 : vector<1x1x8xf32> to vector<1x8xf32>
    %121 = vector.broadcast %120 : vector<1x8xf32> to vector<8x8xf32>
    %122 = arith.addf %118, %121 : vector<8x8xf32>
    %cst_88 = arith.constant dense<0.000000e+00> : vector<8x8xf32>
    %123 = tpu.matmul %108, %115, %cst_88 {dimension_numbers = #tpu.dot_dimension_numbers<[1], [1], [0], [0], [0, 0, 1, 0], [], []>} : vector<8x8xf32>, vector<8x8xf32>, vector<8x8xf32> -> vector<8x8xf32>
    %cst_89 = arith.constant 0.353553385 : f32
    %124 = vector.broadcast %cst_89 : f32 to vector<8x8xf32>
    %125 = arith.mulf %123, %124 : vector<8x8xf32>
    %cst_90 = arith.constant 0xFF800000 : f32
    %126 = vector.broadcast %cst_90 : f32 to vector<8x8xf32>
    %127 = arith.select %20, %125, %126 : vector<8x8xi1>, vector<8x8xf32>
    %cst_91 = arith.constant dense<0xFF800000> : vector<8xf32>
    %128 = vector.multi_reduction <maximumf>, %127, %cst_91 [1] : vector<8x8xf32> to vector<8xf32>
    %129 = vector.shape_cast %128 : vector<8xf32> to vector<8x1xf32>
    %130 = vector.broadcast %129 : vector<8x1xf32> to vector<8x8xf32>
    %131 = arith.subf %127, %130 : vector<8x8xf32>
    %132 = math.exp %131 : vector<8x8xf32>
    %cst_92 = arith.constant dense<0.000000e+00> : vector<8xf32>
    %133 = vector.multi_reduction <add>, %132, %cst_92 [1] : vector<8x8xf32> to vector<8xf32>
    %134 = vector.shape_cast %133 : vector<8xf32> to vector<8x1xf32>
    %135 = vector.broadcast %134 : vector<8x1xf32> to vector<8x8xf32>
    %136 = arith.divf %132, %135 : vector<8x8xf32>
    %cst_93 = arith.constant dense<0.000000e+00> : vector<8x8xf32>
    %137 = tpu.matmul %136, %122, %cst_93 {dimension_numbers = #tpu.dot_dimension_numbers<[1], [0], [0], [1], [0, 0, 1, 1], [], []>} : vector<8x8xf32>, vector<8x8xf32>, vector<8x8xf32> -> vector<8x8xf32>
    %c2_94 = arith.constant 2 : index
    %c0_95 = arith.constant 0 : index
    %c0_96 = arith.constant 0 : index
    %138 = vector.load %arg8[%c2_94, %c0_95, %c0_96] : memref<4x8x32xf32, #tpu.memory_space<vmem>>, vector<1x8x32xf32>
    %139 = vector.shape_cast %138 : vector<1x8x32xf32> to vector<8x32xf32>
    %cst_97 = arith.constant dense<0.000000e+00> : vector<8x32xf32>
    %140 = tpu.matmul %137, %139, %cst_97 {dimension_numbers = #tpu.dot_dimension_numbers<[1], [0], [0], [1], [0, 0, 1, 1], [], []>} : vector<8x8xf32>, vector<8x32xf32>, vector<8x32xf32> -> vector<8x32xf32>
    %141 = arith.addf %101, %140 : vector<8x32xf32>
    %c3 = arith.constant 3 : index
    %c0_98 = arith.constant 0 : index
    %c0_99 = arith.constant 0 : index
    %142 = vector.load %arg2[%c3, %c0_98, %c0_99] : memref<4x32x8xf32, #tpu.memory_space<vmem>>, vector<1x32x8xf32>
    %143 = vector.shape_cast %142 : vector<1x32x8xf32> to vector<32x8xf32>
    %cst_100 = arith.constant dense<0.000000e+00> : vector<8x8xf32>
    %144 = tpu.matmul %17, %143, %cst_100 {dimension_numbers = #tpu.dot_dimension_numbers<[1], [0], [0], [1], [0, 0, 1, 1], [], []>} : vector<8x32xf32>, vector<32x8xf32>, vector<8x8xf32> -> vector<8x8xf32>
    %c3_101 = arith.constant 3 : index
    %c0_102 = arith.constant 0 : index
    %c0_103 = arith.constant 0 : index
    %145 = vector.load %arg3[%c3_101, %c0_102, %c0_103] : memref<4x1x8xf32, #tpu.memory_space<vmem>>, vector<1x1x8xf32>
    %146 = vector.shape_cast %145 : vector<1x1x8xf32> to vector<1x8xf32>
    %147 = vector.broadcast %146 : vector<1x8xf32> to vector<8x8xf32>
    %148 = arith.addf %144, %147 : vector<8x8xf32>
    %c3_104 = arith.constant 3 : index
    %c0_105 = arith.constant 0 : index
    %c0_106 = arith.constant 0 : index
    %149 = vector.load %arg4[%c3_104, %c0_105, %c0_106] : memref<4x32x8xf32, #tpu.memory_space<vmem>>, vector<1x32x8xf32>
    %150 = vector.shape_cast %149 : vector<1x32x8xf32> to vector<32x8xf32>
    %cst_107 = arith.constant dense<0.000000e+00> : vector<8x8xf32>
    %151 = tpu.matmul %17, %150, %cst_107 {dimension_numbers = #tpu.dot_dimension_numbers<[1], [0], [0], [1], [0, 0, 1, 1], [], []>} : vector<8x32xf32>, vector<32x8xf32>, vector<8x8xf32> -> vector<8x8xf32>
    %c3_108 = arith.constant 3 : index
    %c0_109 = arith.constant 0 : index
    %c0_110 = arith.constant 0 : index
    %152 = vector.load %arg5[%c3_108, %c0_109, %c0_110] : memref<4x1x8xf32, #tpu.memory_space<vmem>>, vector<1x1x8xf32>
    %153 = vector.shape_cast %152 : vector<1x1x8xf32> to vector<1x8xf32>
    %154 = vector.broadcast %153 : vector<1x8xf32> to vector<8x8xf32>
    %155 = arith.addf %151, %154 : vector<8x8xf32>
    %c3_111 = arith.constant 3 : index
    %c0_112 = arith.constant 0 : index
    %c0_113 = arith.constant 0 : index
    %156 = vector.load %arg6[%c3_111, %c0_112, %c0_113] : memref<4x32x8xf32, #tpu.memory_space<vmem>>, vector<1x32x8xf32>
    %157 = vector.shape_cast %156 : vector<1x32x8xf32> to vector<32x8xf32>
    %cst_114 = arith.constant dense<0.000000e+00> : vector<8x8xf32>
    %158 = tpu.matmul %17, %157, %cst_114 {dimension_numbers = #tpu.dot_dimension_numbers<[1], [0], [0], [1], [0, 0, 1, 1], [], []>} : vector<8x32xf32>, vector<32x8xf32>, vector<8x8xf32> -> vector<8x8xf32>
    %c3_115 = arith.constant 3 : index
    %c0_116 = arith.constant 0 : index
    %c0_117 = arith.constant 0 : index
    %159 = vector.load %arg7[%c3_115, %c0_116, %c0_117] : memref<4x1x8xf32, #tpu.memory_space<vmem>>, vector<1x1x8xf32>
    %160 = vector.shape_cast %159 : vector<1x1x8xf32> to vector<1x8xf32>
    %161 = vector.broadcast %160 : vector<1x8xf32> to vector<8x8xf32>
    %162 = arith.addf %158, %161 : vector<8x8xf32>
    %cst_118 = arith.constant dense<0.000000e+00> : vector<8x8xf32>
    %163 = tpu.matmul %148, %155, %cst_118 {dimension_numbers = #tpu.dot_dimension_numbers<[1], [1], [0], [0], [0, 0, 1, 0], [], []>} : vector<8x8xf32>, vector<8x8xf32>, vector<8x8xf32> -> vector<8x8xf32>
    %cst_119 = arith.constant 0.353553385 : f32
    %164 = vector.broadcast %cst_119 : f32 to vector<8x8xf32>
    %165 = arith.mulf %163, %164 : vector<8x8xf32>
    %cst_120 = arith.constant 0xFF800000 : f32
    %166 = vector.broadcast %cst_120 : f32 to vector<8x8xf32>
    %167 = arith.select %20, %165, %166 : vector<8x8xi1>, vector<8x8xf32>
    %cst_121 = arith.constant dense<0xFF800000> : vector<8xf32>
    %168 = vector.multi_reduction <maximumf>, %167, %cst_121 [1] : vector<8x8xf32> to vector<8xf32>
    %169 = vector.shape_cast %168 : vector<8xf32> to vector<8x1xf32>
    %170 = vector.broadcast %169 : vector<8x1xf32> to vector<8x8xf32>
    %171 = arith.subf %167, %170 : vector<8x8xf32>
    %172 = math.exp %171 : vector<8x8xf32>
    %cst_122 = arith.constant dense<0.000000e+00> : vector<8xf32>
    %173 = vector.multi_reduction <add>, %172, %cst_122 [1] : vector<8x8xf32> to vector<8xf32>
    %174 = vector.shape_cast %173 : vector<8xf32> to vector<8x1xf32>
    %175 = vector.broadcast %174 : vector<8x1xf32> to vector<8x8xf32>
    %176 = arith.divf %172, %175 : vector<8x8xf32>
    %cst_123 = arith.constant dense<0.000000e+00> : vector<8x8xf32>
    %177 = tpu.matmul %176, %162, %cst_123 {dimension_numbers = #tpu.dot_dimension_numbers<[1], [0], [0], [1], [0, 0, 1, 1], [], []>} : vector<8x8xf32>, vector<8x8xf32>, vector<8x8xf32> -> vector<8x8xf32>
    %c3_124 = arith.constant 3 : index
    %c0_125 = arith.constant 0 : index
    %c0_126 = arith.constant 0 : index
    %178 = vector.load %arg8[%c3_124, %c0_125, %c0_126] : memref<4x8x32xf32, #tpu.memory_space<vmem>>, vector<1x8x32xf32>
    %179 = vector.shape_cast %178 : vector<1x8x32xf32> to vector<8x32xf32>
    %cst_127 = arith.constant dense<0.000000e+00> : vector<8x32xf32>
    %180 = tpu.matmul %177, %179, %cst_127 {dimension_numbers = #tpu.dot_dimension_numbers<[1], [0], [0], [1], [0, 0, 1, 1], [], []>} : vector<8x8xf32>, vector<8x32xf32>, vector<8x32xf32> -> vector<8x32xf32>
    %181 = arith.addf %141, %180 : vector<8x32xf32>
    %c0_128 = arith.constant 0 : index
    %c0_129 = arith.constant 0 : index
    %182 = vector.load %arg9[%c0_128, %c0_129] : memref<1x32xf32, #tpu.memory_space<vmem>>, vector<1x32xf32>
    %183 = vector.broadcast %182 : vector<1x32xf32> to vector<8x32xf32>
    %184 = arith.addf %181, %183 : vector<8x32xf32>
    %185 = arith.addf %184, %1 : vector<8x32xf32>
    %cst_130 = arith.constant dense<0.000000e+00> : vector<8xf32>
    %186 = vector.multi_reduction <add>, %185, %cst_130 [1] : vector<8x32xf32> to vector<8xf32>
    %187 = vector.shape_cast %186 : vector<8xf32> to vector<8x1xf32>
    %cst_131 = arith.constant 3.200000e+01 : f32
    %188 = vector.broadcast %cst_131 : f32 to vector<8x1xf32>
    %189 = arith.divf %187, %188 : vector<8x1xf32>
    %190 = vector.broadcast %189 : vector<8x1xf32> to vector<8x32xf32>
    %191 = arith.subf %185, %190 : vector<8x32xf32>
    %192 = arith.mulf %191, %191 : vector<8x32xf32>
    %cst_132 = arith.constant dense<0.000000e+00> : vector<8xf32>
    %193 = vector.multi_reduction <add>, %192, %cst_132 [1] : vector<8x32xf32> to vector<8xf32>
    %194 = vector.shape_cast %193 : vector<8xf32> to vector<8x1xf32>
    %cst_133 = arith.constant 3.200000e+01 : f32
    %195 = vector.broadcast %cst_133 : f32 to vector<8x1xf32>
    %196 = arith.divf %194, %195 : vector<8x1xf32>
    %cst_134 = arith.constant 9.99999974E-6 : f32
    %197 = vector.broadcast %cst_134 : f32 to vector<8x1xf32>
    %198 = arith.addf %196, %197 : vector<8x1xf32>
    %199 = math.rsqrt %198 : vector<8x1xf32>
    %200 = vector.broadcast %199 : vector<8x1xf32> to vector<8x32xf32>
    %201 = arith.mulf %191, %200 : vector<8x32xf32>
    %c0_135 = arith.constant 0 : index
    %c0_136 = arith.constant 0 : index
    %202 = vector.load %arg10[%c0_135, %c0_136] : memref<32x128xf32, #tpu.memory_space<vmem>>, vector<32x128xf32>
    %cst_137 = arith.constant dense<0.000000e+00> : vector<8x128xf32>
    %203 = tpu.matmul %201, %202, %cst_137 {dimension_numbers = #tpu.dot_dimension_numbers<[1], [0], [0], [1], [0, 0, 1, 1], [], []>} : vector<8x32xf32>, vector<32x128xf32>, vector<8x128xf32> -> vector<8x128xf32>
    %c0_138 = arith.constant 0 : index
    %c0_139 = arith.constant 0 : index
    %204 = vector.load %arg11[%c0_138, %c0_139] : memref<1x128xf32, #tpu.memory_space<vmem>>, vector<1x128xf32>
    %205 = vector.broadcast %204 : vector<1x128xf32> to vector<8x128xf32>
    %206 = arith.addf %203, %205 : vector<8x128xf32>
    %cst_140 = arith.constant 5.000000e-01 : f32
    %207 = vector.broadcast %cst_140 : f32 to vector<8x128xf32>
    %208 = arith.mulf %207, %206 : vector<8x128xf32>
    %cst_141 = arith.constant 0.707106769 : f32
    %209 = vector.broadcast %cst_141 : f32 to vector<8x128xf32>
    %210 = arith.mulf %206, %209 : vector<8x128xf32>
    %211 = math.absf %210 : vector<8x128xf32>
    %cst_142 = arith.constant 0.327591091 : f32
    %212 = vector.broadcast %cst_142 : f32 to vector<8x128xf32>
    %213 = arith.mulf %212, %211 : vector<8x128xf32>
    %cst_143 = arith.constant 1.000000e+00 : f32
    %214 = vector.broadcast %cst_143 : f32 to vector<8x128xf32>
    %215 = arith.addf %214, %213 : vector<8x128xf32>
    %cst_144 = arith.constant 1.000000e+00 : f32
    %216 = vector.broadcast %cst_144 : f32 to vector<8x128xf32>
    %217 = arith.divf %216, %215 : vector<8x128xf32>
    %cst_145 = arith.constant 1.06140542 : f32
    %218 = vector.broadcast %cst_145 : f32 to vector<8x128xf32>
    %219 = arith.mulf %218, %217 : vector<8x128xf32>
    %cst_146 = arith.constant -1.45315206 : f32
    %220 = vector.broadcast %cst_146 : f32 to vector<8x128xf32>
    %221 = arith.addf %219, %220 : vector<8x128xf32>
    %222 = arith.mulf %221, %217 : vector<8x128xf32>
    %cst_147 = arith.constant 1.42141378 : f32
    %223 = vector.broadcast %cst_147 : f32 to vector<8x128xf32>
    %224 = arith.addf %222, %223 : vector<8x128xf32>
    %225 = arith.mulf %224, %217 : vector<8x128xf32>
    %cst_148 = arith.constant -0.284496725 : f32
    %226 = vector.broadcast %cst_148 : f32 to vector<8x128xf32>
    %227 = arith.addf %225, %226 : vector<8x128xf32>
    %228 = arith.mulf %227, %217 : vector<8x128xf32>
    %cst_149 = arith.constant 0.254829586 : f32
    %229 = vector.broadcast %cst_149 : f32 to vector<8x128xf32>
    %230 = arith.addf %228, %229 : vector<8x128xf32>
    %231 = arith.mulf %230, %217 : vector<8x128xf32>
    %cst_150 = arith.constant 0.000000e+00 : f32
    %232 = vector.broadcast %cst_150 : f32 to vector<8x128xf32>
    %233 = arith.subf %232, %211 : vector<8x128xf32>
    %234 = arith.mulf %233, %211 : vector<8x128xf32>
    %235 = math.exp %234 : vector<8x128xf32>
    %236 = arith.mulf %231, %235 : vector<8x128xf32>
    %cst_151 = arith.constant 1.000000e+00 : f32
    %237 = vector.broadcast %cst_151 : f32 to vector<8x128xf32>
    %238 = arith.subf %237, %236 : vector<8x128xf32>
    %cst_152 = arith.constant 0.000000e+00 : f32
    %239 = vector.broadcast %cst_152 : f32 to vector<8x128xf32>
    %240 = arith.cmpf oge, %210, %239 : vector<8x128xf32>
    %cst_153 = arith.constant 0.000000e+00 : f32
    %241 = vector.broadcast %cst_153 : f32 to vector<8x128xf32>
    %242 = arith.subf %241, %238 : vector<8x128xf32>
    %243 = arith.select %240, %238, %242 : vector<8x128xi1>, vector<8x128xf32>
    %cst_154 = arith.constant 1.000000e+00 : f32
    %244 = vector.broadcast %cst_154 : f32 to vector<8x128xf32>
    %245 = arith.addf %244, %243 : vector<8x128xf32>
    %246 = arith.mulf %208, %245 : vector<8x128xf32>
    %c0_155 = arith.constant 0 : index
    %c0_156 = arith.constant 0 : index
    %247 = vector.load %arg12[%c0_155, %c0_156] : memref<128x32xf32, #tpu.memory_space<vmem>>, vector<128x32xf32>
    %cst_157 = arith.constant dense<0.000000e+00> : vector<8x32xf32>
    %248 = tpu.matmul %246, %247, %cst_157 {dimension_numbers = #tpu.dot_dimension_numbers<[1], [0], [0], [1], [0, 0, 1, 1], [], []>} : vector<8x128xf32>, vector<128x32xf32>, vector<8x32xf32> -> vector<8x32xf32>
    %c0_158 = arith.constant 0 : index
    %c0_159 = arith.constant 0 : index
    %249 = vector.load %arg13[%c0_158, %c0_159] : memref<1x32xf32, #tpu.memory_space<vmem>>, vector<1x32xf32>
    %250 = vector.broadcast %249 : vector<1x32xf32> to vector<8x32xf32>
    %251 = arith.addf %248, %250 : vector<8x32xf32>
    %252 = arith.addf %251, %185 : vector<8x32xf32>
    %c0_160 = arith.constant 0 : index
    %c0_161 = arith.constant 0 : index
    %c0_162 = arith.constant 0 : index
    %253 = vector.load %arg14[%c0_160, %c0_161, %c0_162] : memref<1x8x32xf32, #tpu.memory_space<vmem>>, vector<1x8x32xf32>
    %254 = vector.shape_cast %253 : vector<1x8x32xf32> to vector<8x32xf32>
    %255 = vector.shape_cast %252 : vector<8x32xf32> to vector<1x8x32xf32>
    tpu.vector_store %arg14[%c0_160, %c0_161, %c0_162], %255 {strides = array<i32>} : memref<1x8x32xf32, #tpu.memory_space<vmem>>, vector<1x8x32xf32>,
    return
  }
  func.func @transform_0(%arg0: i32) -> (i32, i32, i32) {
    %c0_i32 = arith.constant 0 : i32
    %c0_i32_0 = arith.constant 0 : i32
    %c0_i32_1 = arith.constant 0 : i32
    return %arg0, %c0_i32, %c0_i32_0 : i32, i32, i32
  }
  func.func @transform_1(%arg0: i32) -> (i32, i32, i32) {
    %c0_i32 = arith.constant 0 : i32
    %c0_i32_0 = arith.constant 0 : i32
    %c0_i32_1 = arith.constant 0 : i32
    %c0_i32_2 = arith.constant 0 : i32
    return %c0_i32, %c0_i32_0, %c0_i32_1 : i32, i32, i32
  }
  func.func @transform_2(%arg0: i32) -> (i32, i32, i32) {
    %c0_i32 = arith.constant 0 : i32
    %c0_i32_0 = arith.constant 0 : i32
    %c0_i32_1 = arith.constant 0 : i32
    %c0_i32_2 = arith.constant 0 : i32
    return %c0_i32, %c0_i32_0, %c0_i32_1 : i32, i32, i32
  }
  func.func @transform_3(%arg0: i32) -> (i32, i32, i32) {
    %c0_i32 = arith.constant 0 : i32
    %c0_i32_0 = arith.constant 0 : i32
    %c0_i32_1 = arith.constant 0 : i32
    %c0_i32_2 = arith.constant 0 : i32
    return %c0_i32, %c0_i32_0, %c0_i32_1 : i32, i32, i32
  }
  func.func @transform_4(%arg0: i32) -> (i32, i32, i32) {
    %c0_i32 = arith.constant 0 : i32
    %c0_i32_0 = arith.constant 0 : i32
    %c0_i32_1 = arith.constant 0 : i32
    %c0_i32_2 = arith.constant 0 : i32
    return %c0_i32, %c0_i32_0, %c0_i32_1 : i32, i32, i32
  }
  func.func @transform_5(%arg0: i32) -> (i32, i32, i32) {
    %c0_i32 = arith.constant 0 : i32
    %c0_i32_0 = arith.constant 0 : i32
    %c0_i32_1 = arith.constant 0 : i32
    %c0_i32_2 = arith.constant 0 : i32
    return %c0_i32, %c0_i32_0, %c0_i32_1 : i32, i32, i32
  }
  func.func @transform_6(%arg0: i32) -> (i32, i32, i32) {
    %c0_i32 = arith.constant 0 : i32
    %c0_i32_0 = arith.constant 0 : i32
    %c0_i32_1 = arith.constant 0 : i32
    %c0_i32_2 = arith.constant 0 : i32
    return %c0_i32, %c0_i32_0, %c0_i32_1 : i32, i32, i32
  }
  func.func @transform_7(%arg0: i32) -> (i32, i32, i32) {
    %c0_i32 = arith.constant 0 : i32
    %c0_i32_0 = arith.constant 0 : i32
    %c0_i32_1 = arith.constant 0 : i32
    %c0_i32_2 = arith.constant 0 : i32
    return %c0_i32, %c0_i32_0, %c0_i32_1 : i32, i32, i32
  }
  func.func @transform_8(%arg0: i32) -> (i32, i32) {
    %c0_i32 = arith.constant 0 : i32
    %c0_i32_0 = arith.constant 0 : i32
    %c0_i32_1 = arith.constant 0 : i32
    return %c0_i32, %c0_i32_0 : i32, i32
  }
  func.func @transform_9(%arg0: i32) -> (i32, i32) {
    %c0_i32 = arith.constant 0 : i32
    %c0_i32_0 = arith.constant 0 : i32
    %c0_i32_1 = arith.constant 0 : i32
    return %c0_i32, %c0_i32_0 : i32, i32
  }
  func.func @transform_10(%arg0: i32) -> (i32, i32) {
    %c0_i32 = arith.constant 0 : i32
    %c0_i32_0 = arith.constant 0 : i32
    %c0_i32_1 = arith.constant 0 : i32
    return %c0_i32, %c0_i32_0 : i32, i32
  }
  func.func @transform_11(%arg0: i32) -> (i32, i32) {
    %c0_i32 = arith.constant 0 : i32
    %c0_i32_0 = arith.constant 0 : i32
    %c0_i32_1 = arith.constant 0 : i32
    return %c0_i32, %c0_i32_0 : i32, i32
  }
  func.func @transform_12(%arg0: i32) -> (i32, i32) {
    %c0_i32 = arith.constant 0 : i32
    %c0_i32_0 = arith.constant 0 : i32
    %c0_i32_1 = arith.constant 0 : i32
    return %c0_i32, %c0_i32_0 : i32, i32
  }
  func.func @transform_13(%arg0: i32) -> (i32, i32, i32) {
    %c0_i32 = arith.constant 0 : i32
    %c0_i32_0 = arith.constant 0 : i32
    %c0_i32_1 = arith.constant 0 : i32
    return %arg0, %c0_i32, %c0_i32_0 : i32, i32, i32
  }
}

</mosaic_0001>

<llo_original>
// kernel: tpu_custom_call.1
$region0: #{tpu_custom_call.1}
  #allocation0 [shape = 'u32[]', space=smem, size = 0x4, offset = 0x4, fixed_abs, tag = 'smem constant byte address 0x4 - core index']
  #allocation1 [shape = 'u32[144,128]{1,0:T(1,128)}', space=vmem, size = 0x12000, scoped, tag = 'internal scratch']
  %s0 = inlined_call_operand.vmem [shape: f32[2,8,32], index: 0, kind: input, shape index: {}]
  %s1 = inlined_call_operand.vmem [shape: f32[4,32,8], index: 1, kind: input, shape index: {}]
  %s2 = inlined_call_operand.vmem [shape: f32[4,1,8], index: 2, kind: input, shape index: {}]
  %s3 = inlined_call_operand.vmem [shape: f32[4,32,8], index: 3, kind: input, shape index: {}]
  %s4 = inlined_call_operand.vmem [shape: f32[4,1,8], index: 4, kind: input, shape index: {}]
  %s5 = inlined_call_operand.vmem [shape: f32[4,32,8], index: 5, kind: input, shape index: {}]
  %s6 = inlined_call_operand.vmem [shape: f32[4,1,8], index: 6, kind: input, shape index: {}]
  %s7 = inlined_call_operand.vmem [shape: f32[4,8,32], index: 7, kind: input, shape index: {}]
  %s8 = inlined_call_operand.vmem [shape: f32[1,32], index: 8, kind: input, shape index: {}]
  %s9 = inlined_call_operand.vmem [shape: f32[32,128], index: 9, kind: input, shape index: {}]
  %s10 = inlined_call_operand.vmem [shape: f32[1,128], index: 10, kind: input, shape index: {}]
  %s11 = inlined_call_operand.vmem [shape: f32[128,32], index: 11, kind: input, shape index: {}]
  %s12 = inlined_call_operand.vmem [shape: f32[1,32], index: 12, kind: input, shape index: {}]
  %s13 = inlined_call_operand.hbm [shape: f32[2,8,32], index: 13, kind: output, shape index: {}]
  %s14 = sld [smem:[#allocation0]]
  $region85: #{tpu_custom_call.1} parent=0
    _
  %s16 = ssub.s32 1, %s14
  %s17 = scalar_select 0, %s16, %s14
  $region1: #{tpu_custom_call.1} parent=0
    #allocation2 [shape = 'u8[8192]{0}', space=vmem, size = 0x2000, scoped, tag = 'output window, operand 0']
    #allocation3 [shape = 's32[2]{0}', space=sflag, size = 0x8, scoped, tag = 'scoped memory for tpu_custom_call.1']
    %18 = vsyncpa [#allocation3], 0
    %s19 = scalar_lea.sflag [#allocation3], 1
    %20 = vsyncpa %s19, 0
    loop: start=0, step=1, limit=4
    $region2: #{tpu_custom_call.1} parent=1 // loop_pre_header
      _
    $region3: #{tpu_custom_call.1} parent=1 // loop_header
      %s22 = sphi 0, %s26
      %p23 = scmp.ge.s32.totalorder %s22, 4
      %s32 = sphi 0, %s34
      %s35 = sphi 0, %s32
      %s36 = sphi 0, %s35
      %s52 = sphi 0, %s36
      %s56 = sphi 0, %s56
      %s58 = sphi 0, %s56
      %s59 = sphi 0, %s58
      %s73 = sphi 0, %s59
      %s77 = sphi 0, %s77
      %s79 = sphi 0, %s77
      %s80 = sphi 0, %s79
      %s94 = sphi 0, %s80
      %s98 = sphi 0, %s98
      %s100 = sphi 0, %s98
      %s101 = sphi 0, %s100
      %s115 = sphi 0, %s101
      %s119 = sphi 0, %s119
      %s121 = sphi 0, %s119
      %s122 = sphi 0, %s121
      %s136 = sphi 0, %s122
      %s140 = sphi 0, %s140
      %s142 = sphi 0, %s140
      %s143 = sphi 0, %s142
      %s157 = sphi 0, %s143
      %s161 = sphi 0, %s161
      %s163 = sphi 0, %s161
      %s164 = sphi 0, %s163
      %s178 = sphi 0, %s164
      %s182 = sphi 0, %s182
      %s184 = sphi 0, %s182
      %s185 = sphi 0, %s184
      %s199 = sphi 0, %s185
      %s203 = sphi 0, %s203
      %s205 = sphi 0, %s203
      %s206 = sphi 0, %s205
      %s220 = sphi 0, %s206
      %s224 = sphi 0, %s224
      %s226 = sphi 0, %s224
      %s227 = sphi 0, %s226
      %s241 = sphi 0, %s227
      %s245 = sphi 0, %s245
      %s247 = sphi 0, %s245
      %s248 = sphi 0, %s247
      %s262 = sphi 0, %s248
      %s266 = sphi 0, %s266
      %s268 = sphi 0, %s266
      %s269 = sphi 0, %s268
      %s283 = sphi 0, %s269
      %s287 = sphi 0, %s287
      %s289 = sphi 0, %s287
      %s290 = sphi 0, %s289
      %s304 = sphi 0, %s290
      %s310 = sphi 0, %s312
      %s313 = sphi 0, %s310
      %s314 = sphi 0, %s313
      %s330 = sphi 0, %s314
    $region4: #{tpu_custom_call.1} parent=1 // loop_header_branch
      %25 = sbr.rel (%p23) target = $region8
    $region5: #{tpu_custom_call.1} parent=1 // loop_body
      %s27 = ssub.s32 %s22, 1
      %s28 = ssub.s32 %s22, 2
      %s29 = sadd.s32 %s22, 1
      %s30 = ssub.s32 %s22, %s29
      %p31 = scmp.eq.s32.totalorder %s30, 0
      %s33 = sadd.s32 %s32, 1
      %s34 = scalar_select %p31, %s32, %s33
      %p37 = pneg %p31
      %p38 = scmp.eq.s32.totalorder %s22, 1
      %p39 = por %p37, %p38
      %p40 = scmp.ne.s32.totalorder %s32, %s35
      %p41 = scmp.eq.s32.totalorder %s22, 0
      %p42 = por %p40, %p41
      %p43 = scmp.ne.s32.totalorder %s32, %s35
      %p44 = scmp.eq.s32.totalorder %s27, 1
      %p45 = por %p43, %p44
      %p46 = scmp.ne.s32.totalorder %s35, %s36
      %p47 = scmp.eq.s32.totalorder %s27, 0
      %p48 = por %p46, %p47
      %p49 = scmp.ne.s32.totalorder %s35, %s36
      %p50 = scmp.eq.s32.totalorder %s28, 1
      %p51 = por %p49, %p50
      %p53 = scmp.ne.s32.totalorder %s36, %s52
      %p54 = scmp.eq.s32.totalorder %s28, 0
      %p55 = por %p53, %p54
      %s57 = sadd.s32 %s56, 1
      %p60 = scmp.eq.s32.totalorder %s22, 1
      %p61 = scmp.ne.s32.totalorder %s56, %s58
      %p62 = scmp.eq.s32.totalorder %s22, 0
      %p63 = por %p61, %p62
      %p64 = scmp.ne.s32.totalorder %s56, %s58
      %p65 = scmp.eq.s32.totalorder %s27, 1
      %p66 = por %p64, %p65
      %p67 = scmp.ne.s32.totalorder %s58, %s59
      %p68 = scmp.eq.s32.totalorder %s27, 0
      %p69 = por %p67, %p68
      %p70 = scmp.ne.s32.totalorder %s58, %s59
      %p71 = scmp.eq.s32.totalorder %s28, 1
      %p72 = por %p70, %p71
      %p74 = scmp.ne.s32.totalorder %s59, %s73
      %p75 = scmp.eq.s32.totalorder %s28, 0
      %p76 = por %p74, %p75
      %s78 = sadd.s32 %s77, 1
      %p81 = scmp.eq.s32.totalorder %s22, 1
      %p82 = scmp.ne.s32.totalorder %s77, %s79
      %p83 = scmp.eq.s32.totalorder %s22, 0
      %p84 = por %p82, %p83
      %p85 = scmp.ne.s32.totalorder %s77, %s79
      %p86 = scmp.eq.s32.totalorder %s27, 1
      %p87 = por %p85, %p86
      %p88 = scmp.ne.s32.totalorder %s79, %s80
      %p89 = scmp.eq.s32.totalorder %s27, 0
      %p90 = por %p88, %p89
      %p91 = scmp.ne.s32.totalorder %s79, %s80
      %p92 = scmp.eq.s32.totalorder %s28, 1
      %p93 = por %p91, %p92
      %p95 = scmp.ne.s32.totalorder %s80, %s94
      %p96 = scmp.eq.s32.totalorder %s28, 0
      %p97 = por %p95, %p96
      %s99 = sadd.s32 %s98, 1
      %p102 = scmp.eq.s32.totalorder %s22, 1
      %p103 = scmp.ne.s32.totalorder %s98, %s100
      %p104 = scmp.eq.s32.totalorder %s22, 0
      %p105 = por %p103, %p104
      %p106 = scmp.ne.s32.totalorder %s98, %s100
      %p107 = scmp.eq.s32.totalorder %s27, 1
      %p108 = por %p106, %p107
      %p109 = scmp.ne.s32.totalorder %s100, %s101
      %p110 = scmp.eq.s32.totalorder %s27, 0
      %p111 = por %p109, %p110
      %p112 = scmp.ne.s32.totalorder %s100, %s101
      %p113 = scmp.eq.s32.totalorder %s28, 1
      %p114 = por %p112, %p113
      %p116 = scmp.ne.s32.totalorder %s101, %s115
      %p117 = scmp.eq.s32.totalorder %s28, 0
      %p118 = por %p116, %p117
      %s120 = sadd.s32 %s119, 1
      %p123 = scmp.eq.s32.totalorder %s22, 1
      %p124 = scmp.ne.s32.totalorder %s119, %s121
      %p125 = scmp.eq.s32.totalorder %s22, 0
      %p126 = por %p124, %p125
      %p127 = scmp.ne.s32.totalorder %s119, %s121
      %p128 = scmp.eq.s32.totalorder %s27, 1
      %p129 = por %p127, %p128
      %p130 = scmp.ne.s32.totalorder %s121, %s122
      %p131 = scmp.eq.s32.totalorder %s27, 0
      %p132 = por %p130, %p131
      %p133 = scmp.ne.s32.totalorder %s121, %s122
      %p134 = scmp.eq.s32.totalorder %s28, 1
      %p135 = por %p133, %p134
      %p137 = scmp.ne.s32.totalorder %s122, %s136
      %p138 = scmp.eq.s32.totalorder %s28, 0
      %p139 = por %p137, %p138
      %s141 = sadd.s32 %s140, 1
      %p144 = scmp.eq.s32.totalorder %s22, 1
      %p145 = scmp.ne.s32.totalorder %s140, %s142
      %p146 = scmp.eq.s32.totalorder %s22, 0
      %p147 = por %p145, %p146
      %p148 = scmp.ne.s32.totalorder %s140, %s142
      %p149 = scmp.eq.s32.totalorder %s27, 1
      %p150 = por %p148, %p149
      %p151 = scmp.ne.s32.totalorder %s142, %s143
      %p152 = scmp.eq.s32.totalorder %s27, 0
      %p153 = por %p151, %p152
      %p154 = scmp.ne.s32.totalorder %s142, %s143
      %p155 = scmp.eq.s32.totalorder %s28, 1
      %p156 = por %p154, %p155
      %p158 = scmp.ne.s32.totalorder %s143, %s157
      %p159 = scmp.eq.s32.totalorder %s28, 0
      %p160 = por %p158, %p159
      %s162 = sadd.s32 %s161, 1
      %p165 = scmp.eq.s32.totalorder %s22, 1
      %p166 = scmp.ne.s32.totalorder %s161, %s163
      %p167 = scmp.eq.s32.totalorder %s22, 0
      %p168 = por %p166, %p167
      %p169 = scmp.ne.s32.totalorder %s161, %s163
      %p170 = scmp.eq.s32.totalorder %s27, 1
      %p171 = por %p169, %p170
      %p172 = scmp.ne.s32.totalorder %s163, %s164
      %p173 = scmp.eq.s32.totalorder %s27, 0
      %p174 = por %p172, %p173
      %p175 = scmp.ne.s32.totalorder %s163, %s164
      %p176 = scmp.eq.s32.totalorder %s28, 1
      %p177 = por %p175, %p176
      %p179 = scmp.ne.s32.totalorder %s164, %s178
      %p180 = scmp.eq.s32.totalorder %s28, 0
      %p181 = por %p179, %p180
      %s183 = sadd.s32 %s182, 1
      %p186 = scmp.eq.s32.totalorder %s22, 1
      %p187 = scmp.ne.s32.totalorder %s182, %s184
      %p188 = scmp.eq.s32.totalorder %s22, 0
      %p189 = por %p187, %p188
      %p190 = scmp.ne.s32.totalorder %s182, %s184
      %p191 = scmp.eq.s32.totalorder %s27, 1
      %p192 = por %p190, %p191
      %p193 = scmp.ne.s32.totalorder %s184, %s185
      %p194 = scmp.eq.s32.totalorder %s27, 0
      %p195 = por %p193, %p194
      %p196 = scmp.ne.s32.totalorder %s184, %s185
      %p197 = scmp.eq.s32.totalorder %s28, 1
      %p198 = por %p196, %p197
      %p200 = scmp.ne.s32.totalorder %s185, %s199
      %p201 = scmp.eq.s32.totalorder %s28, 0
      %p202 = por %p200, %p201
      %s204 = sadd.s32 %s203, 1
      %p207 = scmp.eq.s32.totalorder %s22, 1
      %p208 = scmp.ne.s32.totalorder %s203, %s205
      %p209 = scmp.eq.s32.totalorder %s22, 0
      %p210 = por %p208, %p209
      %p211 = scmp.ne.s32.totalorder %s203, %s205
      %p212 = scmp.eq.s32.totalorder %s27, 1
      %p213 = por %p211, %p212
      %p214 = scmp.ne.s32.totalorder %s205, %s206
      %p215 = scmp.eq.s32.totalorder %s27, 0
      %p216 = por %p214, %p215
      %p217 = scmp.ne.s32.totalorder %s205, %s206
      %p218 = scmp.eq.s32.totalorder %s28, 1
      %p219 = por %p217, %p218
      %p221 = scmp.ne.s32.totalorder %s206, %s220
      %p222 = scmp.eq.s32.totalorder %s28, 0
      %p223 = por %p221, %p222
      %s225 = sadd.s32 %s224, 1
      %p228 = scmp.eq.s32.totalorder %s22, 1
      %p229 = scmp.ne.s32.totalorder %s224, %s226
      %p230 = scmp.eq.s32.totalorder %s22, 0
      %p231 = por %p229, %p230
      %p232 = scmp.ne.s32.totalorder %s224, %s226
      %p233 = scmp.eq.s32.totalorder %s27, 1
      %p234 = por %p232, %p233
      %p235 = scmp.ne.s32.totalorder %s226, %s227
      %p236 = scmp.eq.s32.totalorder %s27, 0
      %p237 = por %p235, %p236
      %p238 = scmp.ne.s32.totalorder %s226, %s227
      %p239 = scmp.eq.s32.totalorder %s28, 1
      %p240 = por %p238, %p239
      %p242 = scmp.ne.s32.totalorder %s227, %s241
      %p243 = scmp.eq.s32.totalorder %s28, 0
      %p244 = por %p242, %p243
      %s246 = sadd.s32 %s245, 1
      %p249 = scmp.eq.s32.totalorder %s22, 1
      %p250 = scmp.ne.s32.totalorder %s245, %s247
      %p251 = scmp.eq.s32.totalorder %s22, 0
      %p252 = por %p250, %p251
      %p253 = scmp.ne.s32.totalorder %s245, %s247
      %p254 = scmp.eq.s32.totalorder %s27, 1
      %p255 = por %p253, %p254
      %p256 = scmp.ne.s32.totalorder %s247, %s248
      %p257 = scmp.eq.s32.totalorder %s27, 0
      %p258 = por %p256, %p257
      %p259 = scmp.ne.s32.totalorder %s247, %s248
      %p260 = scmp.eq.s32.totalorder %s28, 1
      %p261 = por %p259, %p260
      %p263 = scmp.ne.s32.totalorder %s248, %s262
      %p264 = scmp.eq.s32.totalorder %s28, 0
      %p265 = por %p263, %p264
      %s267 = sadd.s32 %s266, 1
      %p270 = scmp.eq.s32.totalorder %s22, 1
      %p271 = scmp.ne.s32.totalorder %s266, %s268
      %p272 = scmp.eq.s32.totalorder %s22, 0
      %p273 = por %p271, %p272
      %p274 = scmp.ne.s32.totalorder %s266, %s268
      %p275 = scmp.eq.s32.totalorder %s27, 1
      %p276 = por %p274, %p275
      %p277 = scmp.ne.s32.totalorder %s268, %s269
      %p278 = scmp.eq.s32.totalorder %s27, 0
      %p279 = por %p277, %p278
      %p280 = scmp.ne.s32.totalorder %s268, %s269
      %p281 = scmp.eq.s32.totalorder %s28, 1
      %p282 = por %p280, %p281
      %p284 = scmp.ne.s32.totalorder %s269, %s283
      %p285 = scmp.eq.s32.totalorder %s28, 0
      %p286 = por %p284, %p285
      %s288 = sadd.s32 %s287, 1
      %p291 = scmp.eq.s32.totalorder %s22, 1
      %p292 = scmp.ne.s32.totalorder %s287, %s289
      %p293 = scmp.eq.s32.totalorder %s22, 0
      %p294 = por %p292, %p293
      %p295 = scmp.ne.s32.totalorder %s287, %s289
      %p296 = scmp.eq.s32.totalorder %s27, 1
      %p297 = por %p295, %p296
      %p298 = scmp.ne.s32.totalorder %s289, %s290
      %p299 = scmp.eq.s32.totalorder %s27, 0
      %p300 = por %p298, %p299
      %p301 = scmp.ne.s32.totalorder %s289, %s290
      %p302 = scmp.eq.s32.totalorder %s28, 1
      %p303 = por %p301, %p302
      %p305 = scmp.ne.s32.totalorder %s290, %s304
      %p306 = scmp.eq.s32.totalorder %s28, 0
      %p307 = por %p305, %p306
      %s308 = ssub.s32 %s22, %s29
      %p309 = scmp.eq.s32.totalorder %s308, 0
      %s311 = sadd.s32 %s310, 1
      %s312 = scalar_select %p309, %s310, %s311
      %p315 = pneg %p309
      %p316 = scmp.eq.s32.totalorder %s22, 1
      %p317 = por %p315, %p316
      %p318 = scmp.ne.s32.totalorder %s310, %s313
      %p319 = scmp.eq.s32.totalorder %s22, 0
      %p320 = por %p318, %p319
      %p321 = scmp.ne.s32.totalorder %s310, %s313
      %p322 = scmp.eq.s32.totalorder %s27, 1
      %p323 = por %p321, %p322
      %p324 = scmp.ne.s32.totalorder %s313, %s314
      %p325 = scmp.eq.s32.totalorder %s27, 0
      %p326 = por %p324, %p325
      %p327 = scmp.ne.s32.totalorder %s313, %s314
      %p328 = scmp.eq.s32.totalorder %s28, 1
      %p329 = por %p327, %p328
      %p331 = scmp.ne.s32.totalorder %s314, %s330
      %p332 = scmp.eq.s32.totalorder %s28, 0
      %p333 = por %p331, %p332
      %p334 = scmp.le.s32.totalorder 1, %s22
      %p335 = scmp.lt.s32.totalorder %s22, 3
      %p336 = pnand %p334, %p335
      %p337 = pneg %p336
      // Predicated region
      $region9: #{tpu_custom_call.1} parent=5 // pred_check
        _
      $region10: #{tpu_custom_call.1} parent=5 // pred_check_branch
        %339 = sbr.rel (%p336) target = $region12
      $region11: #{tpu_custom_call.1} parent=5 // pred_region
        %s340 = ssub.s32 %s22, 1
        // Predicated region
        $region13: #{tpu_custom_call.1} parent=11 // pred_check
          %p341 = pneg %p69
        $region14: #{tpu_custom_call.1} parent=11 // pred_check_branch
          %343 = sbr.rel (%p341) target = $region16
        $region15: #{tpu_custom_call.1} parent=11 // pred_region
          _
        $region16: #{tpu_custom_call.1} parent=11 // pred_fallthru
          _
        // Predicated region
        $region17: #{tpu_custom_call.1} parent=11 // pred_check
          %p344 = pneg %p90
        $region18: #{tpu_custom_call.1} parent=11 // pred_check_branch
          %346 = sbr.rel (%p344) target = $region20
        $region19: #{tpu_custom_call.1} parent=11 // pred_region
          _
        $region20: #{tpu_custom_call.1} parent=11 // pred_fallthru
          _
        // Predicated region
        $region21: #{tpu_custom_call.1} parent=11 // pred_check
          %p347 = pneg %p111
        $region22: #{tpu_custom_call.1} parent=11 // pred_check_branch
          %349 = sbr.rel (%p347) target = $region24
        $region23: #{tpu_custom_call.1} parent=11 // pred_region
          _
        $region24: #{tpu_custom_call.1} parent=11 // pred_fallthru
          _
        // Predicated region
        $region25: #{tpu_custom_call.1} parent=11 // pred_check
          %p350 = pneg %p132
        $region26: #{tpu_custom_call.1} parent=11 // pred_check_branch
          %352 = sbr.rel (%p350) target = $region28
        $region27: #{tpu_custom_call.1} parent=11 // pred_region
          _
        $region28: #{tpu_custom_call.1} parent=11 // pred_fallthru
          _
        // Predicated region
        $region29: #{tpu_custom_call.1} parent=11 // pred_check
          %p353 = pneg %p153
        $region30: #{tpu_custom_call.1} parent=11 // pred_check_branch
          %355 = sbr.rel (%p353) target = $region32
        $region31: #{tpu_custom_call.1} parent=11 // pred_region
          _
        $region32: #{tpu_custom_call.1} parent=11 // pred_fallthru
          _
        // Predicated region
        $region33: #{tpu_custom_call.1} parent=11 // pred_check
          %p356 = pneg %p174
        $region34: #{tpu_custom_call.1} parent=11 // pred_check_branch
          %358 = sbr.rel (%p356) target = $region36
        $region35: #{tpu_custom_call.1} parent=11 // pred_region
          _
        $region36: #{tpu_custom_call.1} parent=11 // pred_fallthru
          _
        // Predicated region
        $region37: #{tpu_custom_call.1} parent=11 // pred_check
          %p359 = pneg %p195
        $region38: #{tpu_custom_call.1} parent=11 // pred_check_branch
          %361 = sbr.rel (%p359) target = $region40
        $region39: #{tpu_custom_call.1} parent=11 // pred_region
          _
        $region40: #{tpu_custom_call.1} parent=11 // pred_fallthru
          _
        // Predicated region
        $region41: #{tpu_custom_call.1} parent=11 // pred_check
          %p362 = pneg %p216
        $region42: #{tpu_custom_call.1} parent=11 // pred_check_branch
          %364 = sbr.rel (%p362) target = $region44
        $region43: #{tpu_custom_call.1} parent=11 // pred_region
          _
        $region44: #{tpu_custom_call.1} parent=11 // pred_fallthru
          _
        // Predicated region
        $region45: #{tpu_custom_call.1} parent=11 // pred_check
          %p365 = pneg %p237
        $region46: #{tpu_custom_call.1} parent=11 // pred_check_branch
          %367 = sbr.rel (%p365) target = $region48
        $region47: #{tpu_custom_call.1} parent=11 // pred_region
          _
        $region48: #{tpu_custom_call.1} parent=11 // pred_fallthru
          _
        // Predicated region
        $region49: #{tpu_custom_call.1} parent=11 // pred_check
          %p368 = pneg %p258
        $region50: #{tpu_custom_call.1} parent=11 // pred_check_branch
          %370 = sbr.rel (%p368) target = $region52
        $region51: #{tpu_custom_call.1} parent=11 // pred_region
          _
        $region52: #{tpu_custom_call.1} parent=11 // pred_fallthru
          _
        // Predicated region
        $region53: #{tpu_custom_call.1} parent=11 // pred_check
          %p371 = pneg %p279
        $region54: #{tpu_custom_call.1} parent=11 // pred_check_branch
          %373 = sbr.rel (%p371) target = $region56
        $region55: #{tpu_custom_call.1} parent=11 // pred_region
          _
        $region56: #{tpu_custom_call.1} parent=11 // pred_fallthru
          _
        // Predicated region
        $region57: #{tpu_custom_call.1} parent=11 // pred_check
          %p374 = pneg %p300
        $region58: #{tpu_custom_call.1} parent=11 // pred_check_branch
          %376 = sbr.rel (%p374) target = $region60
        $region59: #{tpu_custom_call.1} parent=11 // pred_region
          _
        $region60: #{tpu_custom_call.1} parent=11 // pred_fallthru
          _
      $region12: #{tpu_custom_call.1} parent=5 // pred_fallthru
        _
      %p377 = scmp.lt.s32.totalorder %s22, 2
      // Predicated region
      $region61: #{tpu_custom_call.1} parent=5 // pred_check
        %p378 = pneg %p377
      $region62: #{tpu_custom_call.1} parent=5 // pred_check_branch
        %380 = sbr.rel (%p378) target = $region64
      $region63: #{tpu_custom_call.1} parent=5 // pred_region
        // Predicated region
        $region65: #{tpu_custom_call.1} parent=63 // pred_check
          %p381 = pneg %p42
        $region66: #{tpu_custom_call.1} parent=63 // pred_check_branch
          %383 = sbr.rel (%p381) target = $region68
        $region67: #{tpu_custom_call.1} parent=63 // pred_region
          %p384 = scmp.lt.s32.totalorder %s22, 1
          %s385 = scalar_select %p384, %s22, 1
          %s386 = smul.addr %s385, 8
          %s387 = scalar_lea.vmem %s0, %s386
        $region68: #{tpu_custom_call.1} parent=63 // pred_fallthru
          _
      $region64: #{tpu_custom_call.1} parent=5 // pred_fallthru
        _
      %p388 = scmp.le.s32.totalorder 1, %s22
      %p389 = scmp.lt.s32.totalorder %s22, 3
      %p390 = pnand %p388, %p389
      %p391 = pneg %p390
      // Predicated region
      $region69: #{tpu_custom_call.1} parent=5 // pred_check
        _
      $region70: #{tpu_custom_call.1} parent=5 // pred_check_branch
        %393 = sbr.rel (%p390) target = $region72
      $region71: #{tpu_custom_call.1} parent=5 // pred_region
        %s394 = ssub.s32 %s22, 1
        %p395 = scmp.lt.s32.totalorder %s27, 1
        %s396 = scalar_select %p395, %s27, 1
        %s397 = smul.addr %s396, 8
        %s398 = scalar_lea.vmem %s0, %s397
        %p399 = pneg %p48
        %p400 = pneg %p45
        %p401 = pneg %p69
        %p402 = pneg %p66
        %p403 = pneg %p90
        %p404 = pneg %p87
        %p405 = pneg %p111
        %p406 = pneg %p108
        %p407 = pneg %p132
        %p408 = pneg %p129
        %p409 = pneg %p153
        %p410 = pneg %p150
        %p411 = pneg %p174
        %p412 = pneg %p171
        %p413 = pneg %p195
        %p414 = pneg %p192
        %p415 = pneg %p216
        %p416 = pneg %p213
        %p417 = pneg %p237
        %p418 = pneg %p234
        %p419 = pneg %p258
        %p420 = pneg %p255
        %p421 = pneg %p279
        %p422 = pneg %p276
        %p423 = pneg %p300
        %p424 = pneg %p297
        %p425 = pneg %p326
        %p426 = pneg %p323
        %s427 = sand.u32 %s313, 1
        %s428 = scalar_lea.sflag [#allocation3], %s427
        %s429 = sand.u32 %s313, 1
        %s430 = smul.addr %s429, 8
        %s431 = scalar_lea.vmem [#allocation2], %s430
        %p432 = scmp.lt.s32.totalorder %s27, 1
        %s433 = scalar_select %p432, %s27, 1
        %s434 = smul.addr %s433, 8
        %s435 = scalar_lea.vmem %s0, %s434
        %v436 = vld [vmem:[%s435] sm:$0xff]
        %vm437 = vcmask 261120
        %v438 = vsel %vm437, %v436, 0.0
        %439 = vadd.xlane.f32.xlu0 %v438
        %v440 = vpop.xlane.xlu0 %439
        %v441 = vrcp.pop 32.0
        %v442 = vmul.f32 %v440, %v441
        %v443 = vsub.f32 %v436, %v442
        %v444 = vmul.f32 %v443, %v443
        %v445 = vsel %vm437, %v444, 0.0
        %446 = vadd.xlane.f32.xlu0 %v445
        %v447 = vpop.xlane.xlu0 %446
        %v448 = vmul.f32 %v447, %v441
        %v449 = vadd.f32 %v448, 1e-05
        %v450 = vrsqrt.pop %v449
        %v451 = vmul.f32 %v443, %v450
        %v452 = vlaneseq
        %v453 = vshrl.u32 %v452, 7
        %v454 = vlaneseq
        %v455 = vand.u32 %v454, 127
        %vm456 = vcmp.le.s32.totalorder %v455, %v453
        %v457 = vld [vmem:[%s1] sm:$0xff]
        %v458 = vld [vmem:[%s1 + $0x8] sm:$0xff]
        %v459 = vld [vmem:[%s1 + $0x10] sm:$0xff]
        %v460 = vld [vmem:[%s1 + $0x18] sm:$0xff]
        %v461 = vld [vmem:[%s2] sm:$0x1]
        %v463 = vlaneseq
        %v464 = vshrl.u32 %v463, 7
        %v465 = vsub.s32 0, %v464
        %v466 = vrot.slane %v461, %v465
        %v469 = vsel %vm437, %v451, 0
        %471 = vmatprep.subr.mxu0 0.0
        %472 = vmatpush1.msra.mxu0 0.0
        %473 = vmatprep.subr.mxu0 0.0
        %474 = vmatpush1.msra.mxu0 0.0
        %475 = vmatprep.subr.mxu0 0.0
        %476 = vmatpush1.msra.mxu0 0.0
        %477 = vmatprep.subr.mxu0 0.0
        %478 = vmatpush1.msra.mxu0 0.0
        %479 = vmatprep.subr.mxu0 0.0
        %480 = vmatpush1.msra.mxu0 0.0
        %481 = vmatprep.subr.mxu0 0.0
        %482 = vmatpush1.msra.mxu0 0.0
        %483 = vmatprep.subr.mxu0 0.0
        %484 = vmatpush1.msra.mxu0 0.0
        %485 = vmatprep.subr.mxu0 0.0
        %486 = vmatpush1.msra.mxu0 0.0
        %487 = vmatprep.subr.mxu0 0.0
        %488 = vmatpush1.msra.mxu0 0.0
        %489 = vmatprep.subr.mxu0 0.0
        %490 = vmatpush1.msra.mxu0 0.0
        %491 = vmatprep.subr.mxu0 0.0
        %492 = vmatpush1.msra.mxu0 0.0
        %493 = vmatprep.subr.mxu0 0.0
        %494 = vmatpush1.msra.mxu0 0.0
        %495 = vmatprep.subr.mxu0 0.0
        %496 = vmatpush1.msra.mxu0 %v460
        %497 = vmatprep.subr.mxu0 0.0
        %498 = vmatpush1.msra.mxu0 %v459
        %499 = vmatprep.subr.mxu0 0.0
        %500 = vmatpush1.msra.mxu0 %v458
        %501 = vmatprep.subr.mxu0 0.0
        %502 = vmatpush1.msra.mxu0 %v457
        %503 = vmatprep.subr.mxu0 0.0
        %504 = vmatpush2.msra.mxu0 0.0
        %505 = vmatprep.subr.mxu0 0.0
        %506 = vmatpush2.msra.mxu0 0.0
        %507 = vmatprep.subr.mxu0 0.0
        %508 = vmatpush2.msra.mxu0 0.0
        %509 = vmatprep.subr.mxu0 0.0
        %510 = vmatpush2.msra.mxu0 0.0
        %511 = vmatprep.subr.mxu0 0.0
        %512 = vmatpush2.msra.mxu0 0.0
        %513 = vmatprep.subr.mxu0 0.0
        %514 = vmatpush2.msra.mxu0 0.0
        %515 = vmatprep.subr.mxu0 0.0
        %516 = vmatpush2.msra.mxu0 0.0
        %517 = vmatprep.subr.mxu0 0.0
        %518 = vmatpush2.msra.mxu0 0.0
        %519 = vmatprep.subr.mxu0 0.0
        %520 = vmatpush2.msra.mxu0 0.0
        %521 = vmatprep.subr.mxu0 0.0
        %522 = vmatpush2.msra.mxu0 0.0
        %523 = vmatprep.subr.mxu0 0.0
        %524 = vmatpush2.msra.mxu0 0.0
        %525 = vmatprep.subr.mxu0 0.0
        %526 = vmatpush2.msra.mxu0 0.0
        %527 = vmatprep.subr.mxu0 0.0
        %528 = vmatpush2.msra.mxu0 0.0
        %529 = vmatprep.subr.mxu0 0.0
        %530 = vmatpush2.msra.mxu0 0.0
        %531 = vmatprep.subr.mxu0 0.0
        %532 = vmatpush2.msra.mxu0 0.0
        %533 = vmatprep.subr.mxu0 0.0
        %534 = vmatpush2.msra.mxu0 0.0
        %535 = vmatprep.mubr.f32.mxu0 0.0
        %536 = vmatmul.mubr.f32.gmra.mxu0 %v469
        %v537 = vpop.f32.mrf.mxu0
        %v538 = vadd.f32 %v466, %v537
        %v539 = vpop.f32.mrf.mxu0
        %540 = vdwg.mxu0
        %v541 = vld [vmem:[%s3] sm:$0xff]
        %v542 = vld [vmem:[%s3 + $0x8] sm:$0xff]
        %v543 = vld [vmem:[%s3 + $0x10] sm:$0xff]
        %v544 = vld [vmem:[%s3 + $0x18] sm:$0xff]
        %v545 = vld [vmem:[%s4] sm:$0x1]
        %v547 = vlaneseq
        %v548 = vshrl.u32 %v547, 7
        %v549 = vsub.s32 0, %v548
        %v550 = vrot.slane %v545, %v549
        %552 = vmatprep.subr.mxu0 0.0
        %553 = vmatpush1.msra.mxu0 0.0
        %554 = vmatprep.subr.mxu0 0.0
        %555 = vmatpush1.msra.mxu0 0.0
        %556 = vmatprep.subr.mxu0 0.0
        %557 = vmatpush1.msra.mxu0 0.0
        %558 = vmatprep.subr.mxu0 0.0
        %559 = vmatpush1.msra.mxu0 0.0
        %560 = vmatprep.subr.mxu0 0.0
        %561 = vmatpush1.msra.mxu0 0.0
        %562 = vmatprep.subr.mxu0 0.0
        %563 = vmatpush1.msra.mxu0 0.0
        %564 = vmatprep.subr.mxu0 0.0
        %565 = vmatpush1.msra.mxu0 0.0
        %566 = vmatprep.subr.mxu0 0.0
        %567 = vmatpush1.msra.mxu0 0.0
        %568 = vmatprep.subr.mxu0 0.0
        %569 = vmatpush1.msra.mxu0 0.0
        %570 = vmatprep.subr.mxu0 0.0
        %571 = vmatpush1.msra.mxu0 0.0
        %572 = vmatprep.subr.mxu0 0.0
        %573 = vmatpush1.msra.mxu0 0.0
        %574 = vmatprep.subr.mxu0 0.0
        %575 = vmatpush1.msra.mxu0 0.0
        %576 = vmatprep.subr.mxu0 0.0
        %577 = vmatpush1.msra.mxu0 %v544
        %578 = vmatprep.subr.mxu0 0.0
        %579 = vmatpush1.msra.mxu0 %v543
        %580 = vmatprep.subr.mxu0 0.0
        %581 = vmatpush1.msra.mxu0 %v542
        %582 = vmatprep.subr.mxu0 0.0
        %583 = vmatpush1.msra.mxu0 %v541
        %584 = vmatprep.subr.mxu0 0.0
        %585 = vmatpush2.msra.mxu0 0.0
        %586 = vmatprep.subr.mxu0 0.0
        %587 = vmatpush2.msra.mxu0 0.0
        %588 = vmatprep.subr.mxu0 0.0
        %589 = vmatpush2.msra.mxu0 0.0
        %590 = vmatprep.subr.mxu0 0.0
        %591 = vmatpush2.msra.mxu0 0.0
        %592 = vmatprep.subr.mxu0 0.0
        %593 = vmatpush2.msra.mxu0 0.0
        %594 = vmatprep.subr.mxu0 0.0
        %595 = vmatpush2.msra.mxu0 0.0
        %596 = vmatprep.subr.mxu0 0.0
        %597 = vmatpush2.msra.mxu0 0.0
        %598 = vmatprep.subr.mxu0 0.0
        %599 = vmatpush2.msra.mxu0 0.0
        %600 = vmatprep.subr.mxu0 0.0
        %601 = vmatpush2.msra.mxu0 0.0
        %602 = vmatprep.subr.mxu0 0.0
        %603 = vmatpush2.msra.mxu0 0.0
        %604 = vmatprep.subr.mxu0 0.0
        %605 = vmatpush2.msra.mxu0 0.0
        %606 = vmatprep.subr.mxu0 0.0
        %607 = vmatpush2.msra.mxu0 0.0
        %608 = vmatprep.subr.mxu0 0.0
        %609 = vmatpush2.msra.mxu0 0.0
        %610 = vmatprep.subr.mxu0 0.0
        %611 = vmatpush2.msra.mxu0 0.0
        %612 = vmatprep.subr.mxu0 0.0
        %613 = vmatpush2.msra.mxu0 0.0
        %614 = vmatprep.subr.mxu0 0.0
        %615 = vmatpush2.msra.mxu0 0.0
        %616 = vmatprep.mubr.f32.mxu0 0.0
        %617 = vmatmul.mubr.f32.gmra.mxu0 %v469
        %v618 = vpop.f32.mrf.mxu0
        %v619 = vadd.f32 %v550, %v618
        %v620 = vpop.f32.mrf.mxu0
        %621 = vdwg.mxu0
        %v622 = vld [vmem:[%s5] sm:$0xff]
        %v623 = vld [vmem:[%s5 + $0x8] sm:$0xff]
        %v624 = vld [vmem:[%s5 + $0x10] sm:$0xff]
        %v625 = vld [vmem:[%s5 + $0x18] sm:$0xff]
        %v626 = vld [vmem:[%s6] sm:$0x1]
        %v628 = vlaneseq
        %v629 = vshrl.u32 %v628, 7
        %v630 = vsub.s32 0, %v629
        %v631 = vrot.slane %v626, %v630
        %633 = vmatprep.subr.mxu0 0.0
        %634 = vmatpush1.msra.mxu0 0.0
        %635 = vmatprep.subr.mxu0 0.0
        %636 = vmatpush1.msra.mxu0 0.0
        %637 = vmatprep.subr.mxu0 0.0
        %638 = vmatpush1.msra.mxu0 0.0
        %639 = vmatprep.subr.mxu0 0.0
        %640 = vmatpush1.msra.mxu0 0.0
        %641 = vmatprep.subr.mxu0 0.0
        %642 = vmatpush1.msra.mxu0 0.0
        %643 = vmatprep.subr.mxu0 0.0
        %644 = vmatpush1.msra.mxu0 0.0
        %645 = vmatprep.subr.mxu0 0.0
        %646 = vmatpush1.msra.mxu0 0.0
        %647 = vmatprep.subr.mxu0 0.0
        %648 = vmatpush1.msra.mxu0 0.0
        %649 = vmatprep.subr.mxu0 0.0
        %650 = vmatpush1.msra.mxu0 0.0
        %651 = vmatprep.subr.mxu0 0.0
        %652 = vmatpush1.msra.mxu0 0.0
        %653 = vmatprep.subr.mxu0 0.0
        %654 = vmatpush1.msra.mxu0 0.0
        %655 = vmatprep.subr.mxu0 0.0
        %656 = vmatpush1.msra.mxu0 0.0
        %657 = vmatprep.subr.mxu0 0.0
        %658 = vmatpush1.msra.mxu0 %v625
        %659 = vmatprep.subr.mxu0 0.0
        %660 = vmatpush1.msra.mxu0 %v624
        %661 = vmatprep.subr.mxu0 0.0
        %662 = vmatpush1.msra.mxu0 %v623
        %663 = vmatprep.subr.mxu0 0.0
        %664 = vmatpush1.msra.mxu0 %v622
        %665 = vmatprep.subr.mxu0 0.0
        %666 = vmatpush2.msra.mxu0 0.0
        %667 = vmatprep.subr.mxu0 0.0
        %668 = vmatpush2.msra.mxu0 0.0
        %669 = vmatprep.subr.mxu0 0.0
        %670 = vmatpush2.msra.mxu0 0.0
        %671 = vmatprep.subr.mxu0 0.0
        %672 = vmatpush2.msra.mxu0 0.0
        %673 = vmatprep.subr.mxu0 0.0
        %674 = vmatpush2.msra.mxu0 0.0
        %675 = vmatprep.subr.mxu0 0.0
        %676 = vmatpush2.msra.mxu0 0.0
        %677 = vmatprep.subr.mxu0 0.0
        %678 = vmatpush2.msra.mxu0 0.0
        %679 = vmatprep.subr.mxu0 0.0
        %680 = vmatpush2.msra.mxu0 0.0
        %681 = vmatprep.subr.mxu0 0.0
        %682 = vmatpush2.msra.mxu0 0.0
        %683 = vmatprep.subr.mxu0 0.0
        %684 = vmatpush2.msra.mxu0 0.0
        %685 = vmatprep.subr.mxu0 0.0
        %686 = vmatpush2.msra.mxu0 0.0
        %687 = vmatprep.subr.mxu0 0.0
        %688 = vmatpush2.msra.mxu0 0.0
        %689 = vmatprep.subr.mxu0 0.0
        %690 = vmatpush2.msra.mxu0 0.0
        %691 = vmatprep.subr.mxu0 0.0
        %692 = vmatpush2.msra.mxu0 0.0
        %693 = vmatprep.subr.mxu0 0.0
        %694 = vmatpush2.msra.mxu0 0.0
        %695 = vmatprep.subr.mxu0 0.0
        %696 = vmatpush2.msra.mxu0 0.0
        %697 = vmatprep.mubr.f32.mxu0 0.0
        %698 = vmatmul.mubr.f32.gmra.mxu0 %v469
        %v699 = vpop.f32.mrf.mxu0
        %v700 = vadd.f32 %v631, %v699
        %v701 = vpop.f32.mrf.mxu0
        %702 = vdwg.mxu0
        %vm703 = vcmask 64512
        %v705 = vsel %vm703, %v538, 0
        %v708 = vsel %vm703, %v619, 0
        %710 = vmatprep.subr.mxu0 0.0
        %711 = vmatpush1.xpose.msra.mxu0 0.0
        %712 = vmatprep.subr.mxu0 0.0
        %713 = vmatpush1.xpose.msra.mxu0 0.0
        %714 = vmatprep.subr.mxu0 0.0
        %715 = vmatpush1.xpose.msra.mxu0 0.0
        %716 = vmatprep.subr.mxu0 0.0
        %717 = vmatpush1.xpose.msra.mxu0 0.0
        %718 = vmatprep.subr.mxu0 0.0
        %719 = vmatpush1.xpose.msra.mxu0 0.0
        %720 = vmatprep.subr.mxu0 0.0
        %721 = vmatpush1.xpose.msra.mxu0 0.0
        %722 = vmatprep.subr.mxu0 0.0
        %723 = vmatpush1.xpose.msra.mxu0 0.0
        %724 = vmatprep.subr.mxu0 0.0
        %725 = vmatpush1.xpose.msra.mxu0 0.0
        %726 = vmatprep.subr.mxu0 0.0
        %727 = vmatpush1.xpose.msra.mxu0 0.0
        %728 = vmatprep.subr.mxu0 0.0
        %729 = vmatpush1.xpose.msra.mxu0 0.0
        %730 = vmatprep.subr.mxu0 0.0
        %731 = vmatpush1.xpose.msra.mxu0 0.0
        %732 = vmatprep.subr.mxu0 0.0
        %733 = vmatpush1.xpose.msra.mxu0 0.0
        %734 = vmatprep.subr.mxu0 0.0
        %735 = vmatpush1.xpose.msra.mxu0 0.0
        %736 = vmatprep.subr.mxu0 0.0
        %737 = vmatpush1.xpose.msra.mxu0 0.0
        %738 = vmatprep.subr.mxu0 0.0
        %739 = vmatpush1.xpose.msra.mxu0 0.0
        %740 = vmatprep.subr.mxu0 0.0
        %741 = vmatpush1.xpose.msra.mxu0 %v708
        %742 = vmatprep.subr.mxu0 0.0
        %743 = vmatpush2.xpose.msra.mxu0 0.0
        %744 = vmatprep.subr.mxu0 0.0
        %745 = vmatpush2.xpose.msra.mxu0 0.0
        %746 = vmatprep.subr.mxu0 0.0
        %747 = vmatpush2.xpose.msra.mxu0 0.0
        %748 = vmatprep.subr.mxu0 0.0
        %749 = vmatpush2.xpose.msra.mxu0 0.0
        %750 = vmatprep.subr.mxu0 0.0
        %751 = vmatpush2.xpose.msra.mxu0 0.0
        %752 = vmatprep.subr.mxu0 0.0
        %753 = vmatpush2.xpose.msra.mxu0 0.0
        %754 = vmatprep.subr.mxu0 0.0
        %755 = vmatpush2.xpose.msra.mxu0 0.0
        %756 = vmatprep.subr.mxu0 0.0
        %757 = vmatpush2.xpose.msra.mxu0 0.0
        %758 = vmatprep.subr.mxu0 0.0
        %759 = vmatpush2.xpose.msra.mxu0 0.0
        %760 = vmatprep.subr.mxu0 0.0
        %761 = vmatpush2.xpose.msra.mxu0 0.0
        %762 = vmatprep.subr.mxu0 0.0
        %763 = vmatpush2.xpose.msra.mxu0 0.0
        %764 = vmatprep.subr.mxu0 0.0
        %765 = vmatpush2.xpose.msra.mxu0 0.0
        %766 = vmatprep.subr.mxu0 0.0
        %767 = vmatpush2.xpose.msra.mxu0 0.0
        %768 = vmatprep.subr.mxu0 0.0
        %769 = vmatpush2.xpose.msra.mxu0 0.0
        %770 = vmatprep.subr.mxu0 0.0
        %771 = vmatpush2.xpose.msra.mxu0 0.0
        %772 = vmatprep.subr.mxu0 0.0
        %773 = vmatpush2.xpose.msra.mxu0 0.0
        %774 = vmatprep.mubr.f32.mxu0 0.0
        %775 = vmatmul.mubr.f32.gmra.mxu0 %v705
        %v776 = vpop.f32.mrf.mxu0
        %v777 = vadd.f32 0.0, %v776
        %v778 = vpop.f32.mrf.mxu0
        %779 = vdwg.mxu0
        %v780 = vmul.f32 %v777, 0.35355338
        %v781 = vsel %vm456, %v780, -inf
        %v782 = vsel %vm703, %v781, -inf
        %783 = vmax.xlane.f32.xlu0 %v782
        %v784 = vpop.xlane.xlu0 %783
        %v785 = vsub.f32 %v781, %v784
        %v786 = vmul.f32 %v785, 1.442695
        %v787 = vpow.pop %v786
        %v788 = vsel %vm703, %v787, 0.0
        %789 = vadd.xlane.f32.xlu0 %v788
        %v790 = vpop.xlane.xlu0 %789
        %v791 = vrcp.pop %v790
        %v792 = vmul.f32 %v787, %v791
        %v794 = vsel %vm703, %v792, 0
        %796 = vmatprep.subr.mxu0 0.0
        %797 = vmatpush1.msra.mxu0 0.0
        %798 = vmatprep.subr.mxu0 0.0
        %799 = vmatpush1.msra.mxu0 0.0
        %800 = vmatprep.subr.mxu0 0.0
        %801 = vmatpush1.msra.mxu0 0.0
        %802 = vmatprep.subr.mxu0 0.0
        %803 = vmatpush1.msra.mxu0 0.0
        %804 = vmatprep.subr.mxu0 0.0
        %805 = vmatpush1.msra.mxu0 0.0
        %806 = vmatprep.subr.mxu0 0.0
        %807 = vmatpush1.msra.mxu0 0.0
        %808 = vmatprep.subr.mxu0 0.0
        %809 = vmatpush1.msra.mxu0 0.0
        %810 = vmatprep.subr.mxu0 0.0
        %811 = vmatpush1.msra.mxu0 0.0
        %812 = vmatprep.subr.mxu0 0.0
        %813 = vmatpush1.msra.mxu0 0.0
        %814 = vmatprep.subr.mxu0 0.0
        %815 = vmatpush1.msra.mxu0 0.0
        %816 = vmatprep.subr.mxu0 0.0
        %817 = vmatpush1.msra.mxu0 0.0
        %818 = vmatprep.subr.mxu0 0.0
        %819 = vmatpush1.msra.mxu0 0.0
        %820 = vmatprep.subr.mxu0 0.0
        %821 = vmatpush1.msra.mxu0 0.0
        %822 = vmatprep.subr.mxu0 0.0
        %823 = vmatpush1.msra.mxu0 0.0
        %824 = vmatprep.subr.mxu0 0.0
        %825 = vmatpush1.msra.mxu0 0.0
        %826 = vmatprep.subr.mxu0 0.0
        %827 = vmatpush1.msra.mxu0 %v700
        %828 = vmatprep.subr.mxu0 0.0
        %829 = vmatpush2.msra.mxu0 0.0
        %830 = vmatprep.subr.mxu0 0.0
        %831 = vmatpush2.msra.mxu0 0.0
        %832 = vmatprep.subr.mxu0 0.0
        %833 = vmatpush2.msra.mxu0 0.0
        %834 = vmatprep.subr.mxu0 0.0
        %835 = vmatpush2.msra.mxu0 0.0
        %836 = vmatprep.subr.mxu0 0.0
        %837 = vmatpush2.msra.mxu0 0.0
        %838 = vmatprep.subr.mxu0 0.0
        %839 = vmatpush2.msra.mxu0 0.0
        %840 = vmatprep.subr.mxu0 0.0
        %841 = vmatpush2.msra.mxu0 0.0
        %842 = vmatprep.subr.mxu0 0.0
        %843 = vmatpush2.msra.mxu0 0.0
        %844 = vmatprep.subr.mxu0 0.0
        %845 = vmatpush2.msra.mxu0 0.0
        %846 = vmatprep.subr.mxu0 0.0
        %847 = vmatpush2.msra.mxu0 0.0
        %848 = vmatprep.subr.mxu0 0.0
        %849 = vmatpush2.msra.mxu0 0.0
        %850 = vmatprep.subr.mxu0 0.0
        %851 = vmatpush2.msra.mxu0 0.0
        %852 = vmatprep.subr.mxu0 0.0
        %853 = vmatpush2.msra.mxu0 0.0
        %854 = vmatprep.subr.mxu0 0.0
        %855 = vmatpush2.msra.mxu0 0.0
        %856 = vmatprep.subr.mxu0 0.0
        %857 = vmatpush2.msra.mxu0 0.0
        %858 = vmatprep.subr.mxu0 0.0
        %859 = vmatpush2.msra.mxu0 0.0
        %860 = vmatprep.mubr.f32.mxu0 0.0
        %861 = vmatmul.mubr.f32.gmra.mxu0 %v794
        %v862 = vpop.f32.mrf.mxu0
        %v863 = vadd.f32 0.0, %v862
        %v864 = vpop.f32.mrf.mxu0
        %865 = vdwg.mxu0
        %v866 = vld [vmem:[%s7] sm:$0xff]
        %s867 = scalar_lea.vmem %s1, 32
        %v868 = vld [vmem:[%s867] sm:$0xff]
        %v869 = vld [vmem:[%s867 + $0x8] sm:$0xff]
        %v870 = vld [vmem:[%s867 + $0x10] sm:$0xff]
        %v871 = vld [vmem:[%s867 + $0x18] sm:$0xff]
        %s872 = scalar_lea.vmem %s2, 1
        %v873 = vld [vmem:[%s872] sm:$0x1]
        %v875 = vlaneseq
        %v876 = vshrl.u32 %v875, 7
        %v877 = vsub.s32 0, %v876
        %v878 = vrot.slane %v873, %v877
        %880 = vmatprep.subr.mxu0 0.0
        %881 = vmatpush1.msra.mxu0 0.0
        %882 = vmatprep.subr.mxu0 0.0
        %883 = vmatpush1.msra.mxu0 0.0
        %884 = vmatprep.subr.mxu0 0.0
        %885 = vmatpush1.msra.mxu0 0.0
        %886 = vmatprep.subr.mxu0 0.0
        %887 = vmatpush1.msra.mxu0 0.0
        %888 = vmatprep.subr.mxu0 0.0
        %889 = vmatpush1.msra.mxu0 0.0
        %890 = vmatprep.subr.mxu0 0.0
        %891 = vmatpush1.msra.mxu0 0.0
        %892 = vmatprep.subr.mxu0 0.0
        %893 = vmatpush1.msra.mxu0 0.0
        %894 = vmatprep.subr.mxu0 0.0
        %895 = vmatpush1.msra.mxu0 0.0
        %896 = vmatprep.subr.mxu0 0.0
        %897 = vmatpush1.msra.mxu0 0.0
        %898 = vmatprep.subr.mxu0 0.0
        %899 = vmatpush1.msra.mxu0 0.0
        %900 = vmatprep.subr.mxu0 0.0
        %901 = vmatpush1.msra.mxu0 0.0
        %902 = vmatprep.subr.mxu0 0.0
        %903 = vmatpush1.msra.mxu0 0.0
        %904 = vmatprep.subr.mxu0 0.0
        %905 = vmatpush1.msra.mxu0 %v871
        %906 = vmatprep.subr.mxu0 0.0
        %907 = vmatpush1.msra.mxu0 %v870
        %908 = vmatprep.subr.mxu0 0.0
        %909 = vmatpush1.msra.mxu0 %v869
        %910 = vmatprep.subr.mxu0 0.0
        %911 = vmatpush1.msra.mxu0 %v868
        %912 = vmatprep.subr.mxu0 0.0
        %913 = vmatpush2.msra.mxu0 0.0
        %914 = vmatprep.subr.mxu0 0.0
        %915 = vmatpush2.msra.mxu0 0.0
        %916 = vmatprep.subr.mxu0 0.0
        %917 = vmatpush2.msra.mxu0 0.0
        %918 = vmatprep.subr.mxu0 0.0
        %919 = vmatpush2.msra.mxu0 0.0
        %920 = vmatprep.subr.mxu0 0.0
        %921 = vmatpush2.msra.mxu0 0.0
        %922 = vmatprep.subr.mxu0 0.0
        %923 = vmatpush2.msra.mxu0 0.0
        %924 = vmatprep.subr.mxu0 0.0
        %925 = vmatpush2.msra.mxu0 0.0
        %926 = vmatprep.subr.mxu0 0.0
        %927 = vmatpush2.msra.mxu0 0.0
        %928 = vmatprep.subr.mxu0 0.0
        %929 = vmatpush2.msra.mxu0 0.0
        %930 = vmatprep.subr.mxu0 0.0
        %931 = vmatpush2.msra.mxu0 0.0
        %932 = vmatprep.subr.mxu0 0.0
        %933 = vmatpush2.msra.mxu0 0.0
        %934 = vmatprep.subr.mxu0 0.0
        %935 = vmatpush2.msra.mxu0 0.0
        %936 = vmatprep.subr.mxu0 0.0
        %937 = vmatpush2.msra.mxu0 0.0
        %938 = vmatprep.subr.mxu0 0.0
        %939 = vmatpush2.msra.mxu0 0.0
        %940 = vmatprep.subr.mxu0 0.0
        %941 = vmatpush2.msra.mxu0 0.0
        %942 = vmatprep.subr.mxu0 0.0
        %943 = vmatpush2.msra.mxu0 0.0
        %944 = vmatprep.mubr.f32.mxu0 0.0
        %945 = vmatmul.mubr.f32.gmra.mxu0 %v469
        %v946 = vpop.f32.mrf.mxu0
        %v947 = vadd.f32 %v878, %v946
        %v948 = vpop.f32.mrf.mxu0
        %949 = vdwg.mxu0
        %s950 = scalar_lea.vmem %s3, 32
        %v951 = vld [vmem:[%s950] sm:$0xff]
        %v952 = vld [vmem:[%s950 + $0x8] sm:$0xff]
        %v953 = vld [vmem:[%s950 + $0x10] sm:$0xff]
        %v954 = vld [vmem:[%s950 + $0x18] sm:$0xff]
        %s955 = scalar_lea.vmem %s4, 1
        %v956 = vld [vmem:[%s955] sm:$0x1]
        %v958 = vlaneseq
        %v959 = vshrl.u32 %v958, 7
        %v960 = vsub.s32 0, %v959
        %v961 = vrot.slane %v956, %v960
        %963 = vmatprep.subr.mxu0 0.0
        %964 = vmatpush1.msra.mxu0 0.0
        %965 = vmatprep.subr.mxu0 0.0
        %966 = vmatpush1.msra.mxu0 0.0
        %967 = vmatprep.subr.mxu0 0.0
        %968 = vmatpush1.msra.mxu0 0.0
        %969 = vmatprep.subr.mxu0 0.0
        %970 = vmatpush1.msra.mxu0 0.0
        %971 = vmatprep.subr.mxu0 0.0
        %972 = vmatpush1.msra.mxu0 0.0
        %973 = vmatprep.subr.mxu0 0.0
        %974 = vmatpush1.msra.mxu0 0.0
        %975 = vmatprep.subr.mxu0 0.0
        %976 = vmatpush1.msra.mxu0 0.0
        %977 = vmatprep.subr.mxu0 0.0
        %978 = vmatpush1.msra.mxu0 0.0
        %979 = vmatprep.subr.mxu0 0.0
        %980 = vmatpush1.msra.mxu0 0.0
        %981 = vmatprep.subr.mxu0 0.0
        %982 = vmatpush1.msra.mxu0 0.0
        %983 = vmatprep.subr.mxu0 0.0
        %984 = vmatpush1.msra.mxu0 0.0
        %985 = vmatprep.subr.mxu0 0.0
        %986 = vmatpush1.msra.mxu0 0.0
        %987 = vmatprep.subr.mxu0 0.0
        %988 = vmatpush1.msra.mxu0 %v954
        %989 = vmatprep.subr.mxu0 0.0
        %990 = vmatpush1.msra.mxu0 %v953
        %991 = vmatprep.subr.mxu0 0.0
        %992 = vmatpush1.msra.mxu0 %v952
        %993 = vmatprep.subr.mxu0 0.0
        %994 = vmatpush1.msra.mxu0 %v951
        %995 = vmatprep.subr.mxu0 0.0
        %996 = vmatpush2.msra.mxu0 0.0
        %997 = vmatprep.subr.mxu0 0.0
        %998 = vmatpush2.msra.mxu0 0.0
        %999 = vmatprep.subr.mxu0 0.0
        %1000 = vmatpush2.msra.mxu0 0.0
        %1001 = vmatprep.subr.mxu0 0.0
        %1002 = vmatpush2.msra.mxu0 0.0
        %1003 = vmatprep.subr.mxu0 0.0
        %1004 = vmatpush2.msra.mxu0 0.0
        %1005 = vmatprep.subr.mxu0 0.0
        %1006 = vmatpush2.msra.mxu0 0.0
        %1007 = vmatprep.subr.mxu0 0.0
        %1008 = vmatpush2.msra.mxu0 0.0
        %1009 = vmatprep.subr.mxu0 0.0
        %1010 = vmatpush2.msra.mxu0 0.0
        %1011 = vmatprep.subr.mxu0 0.0
        %1012 = vmatpush2.msra.mxu0 0.0
        %1013 = vmatprep.subr.mxu0 0.0
        %1014 = vmatpush2.msra.mxu0 0.0
        %1015 = vmatprep.subr.mxu0 0.0
        %1016 = vmatpush2.msra.mxu0 0.0
        %1017 = vmatprep.subr.mxu0 0.0
        %1018 = vmatpush2.msra.mxu0 0.0
        %1019 = vmatprep.subr.mxu0 0.0
        %1020 = vmatpush2.msra.mxu0 0.0
        %1021 = vmatprep.subr.mxu0 0.0
        %1022 = vmatpush2.msra.mxu0 0.0
        %1023 = vmatprep.subr.mxu0 0.0
        %1024 = vmatpush2.msra.mxu0 0.0
        %1025 = vmatprep.subr.mxu0 0.0
        %1026 = vmatpush2.msra.mxu0 0.0
        %1027 = vmatprep.mubr.f32.mxu0 0.0
        %1028 = vmatmul.mubr.f32.gmra.mxu0 %v469
        %v1029 = vpop.f32.mrf.mxu0
        %v1030 = vadd.f32 %v961, %v1029
        %v1031 = vpop.f32.mrf.mxu0
        %1032 = vdwg.mxu0
        %s1033 = scalar_lea.vmem %s5, 32
        %v1034 = vld [vmem:[%s1033] sm:$0xff]
        %v1035 = vld [vmem:[%s1033 + $0x8] sm:$0xff]
        %v1036 = vld [vmem:[%s1033 + $0x10] sm:$0xff]
        %v1037 = vld [vmem:[%s1033 + $0x18] sm:$0xff]
        %s1038 = scalar_lea.vmem %s6, 1
        %v1039 = vld [vmem:[%s1038] sm:$0x1]
        %v1041 = vlaneseq
        %v1042 = vshrl.u32 %v1041, 7
        %v1043 = vsub.s32 0, %v1042
        %v1044 = vrot.slane %v1039, %v1043
        %1046 = vmatprep.subr.mxu0 0.0
        %1047 = vmatpush1.msra.mxu0 0.0
        %1048 = vmatprep.subr.mxu0 0.0
        %1049 = vmatpush1.msra.mxu0 0.0
        %1050 = vmatprep.subr.mxu0 0.0
        %1051 = vmatpush1.msra.mxu0 0.0
        %1052 = vmatprep.subr.mxu0 0.0
        %1053 = vmatpush1.msra.mxu0 0.0
        %1054 = vmatprep.subr.mxu0 0.0
        %1055 = vmatpush1.msra.mxu0 0.0
        %1056 = vmatprep.subr.mxu0 0.0
        %1057 = vmatpush1.msra.mxu0 0.0
        %1058 = vmatprep.subr.mxu0 0.0
        %1059 = vmatpush1.msra.mxu0 0.0
        %1060 = vmatprep.subr.mxu0 0.0
        %1061 = vmatpush1.msra.mxu0 0.0
        %1062 = vmatprep.subr.mxu0 0.0
        %1063 = vmatpush1.msra.mxu0 0.0
        %1064 = vmatprep.subr.mxu0 0.0
        %1065 = vmatpush1.msra.mxu0 0.0
        %1066 = vmatprep.subr.mxu0 0.0
        %1067 = vmatpush1.msra.mxu0 0.0
        %1068 = vmatprep.subr.mxu0 0.0
        %1069 = vmatpush1.msra.mxu0 0.0
        %1070 = vmatprep.subr.mxu0 0.0
        %1071 = vmatpush1.msra.mxu0 %v1037
        %1072 = vmatprep.subr.mxu0 0.0
        %1073 = vmatpush1.msra.mxu0 %v1036
        %1074 = vmatprep.subr.mxu0 0.0
        %1075 = vmatpush1.msra.mxu0 %v1035
        %1076 = vmatprep.subr.mxu0 0.0
        %1077 = vmatpush1.msra.mxu0 %v1034
        %1078 = vmatprep.subr.mxu0 0.0
        %1079 = vmatpush2.msra.mxu0 0.0
        %1080 = vmatprep.subr.mxu0 0.0
        %1081 = vmatpush2.msra.mxu0 0.0
        %1082 = vmatprep.subr.mxu0 0.0
        %1083 = vmatpush2.msra.mxu0 0.0
        %1084 = vmatprep.subr.mxu0 0.0
        %1085 = vmatpush2.msra.mxu0 0.0
        %1086 = vmatprep.subr.mxu0 0.0
        %1087 = vmatpush2.msra.mxu0 0.0
        %1088 = vmatprep.subr.mxu0 0.0
        %1089 = vmatpush2.msra.mxu0 0.0
        %1090 = vmatprep.subr.mxu0 0.0
        %1091 = vmatpush2.msra.mxu0 0.0
        %1092 = vmatprep.subr.mxu0 0.0
        %1093 = vmatpush2.msra.mxu0 0.0
        %1094 = vmatprep.subr.mxu0 0.0
        %1095 = vmatpush2.msra.mxu0 0.0
        %1096 = vmatprep.subr.mxu0 0.0
        %1097 = vmatpush2.msra.mxu0 0.0
        %1098 = vmatprep.subr.mxu0 0.0
        %1099 = vmatpush2.msra.mxu0 0.0
        %1100 = vmatprep.subr.mxu0 0.0
        %1101 = vmatpush2.msra.mxu0 0.0
        %1102 = vmatprep.subr.mxu0 0.0
        %1103 = vmatpush2.msra.mxu0 0.0
        %1104 = vmatprep.subr.mxu0 0.0
        %1105 = vmatpush2.msra.mxu0 0.0
        %1106 = vmatprep.subr.mxu0 0.0
        %1107 = vmatpush2.msra.mxu0 0.0
        %1108 = vmatprep.subr.mxu0 0.0
        %1109 = vmatpush2.msra.mxu0 0.0
        %1110 = vmatprep.mubr.f32.mxu0 0.0
        %1111 = vmatmul.mubr.f32.gmra.mxu0 %v469
        %v1112 = vpop.f32.mrf.mxu0
        %v1113 = vadd.f32 %v1044, %v1112
        %v1114 = vpop.f32.mrf.mxu0
        %1115 = vdwg.mxu0
        %v1117 = vsel %vm703, %v947, 0
        %v1120 = vsel %vm703, %v1030, 0
        %1122 = vmatprep.subr.mxu0 0.0
        %1123 = vmatpush1.xpose.msra.mxu0 0.0
        %1124 = vmatprep.subr.mxu0 0.0
        %1125 = vmatpush1.xpose.msra.mxu0 0.0
        %1126 = vmatprep.subr.mxu0 0.0
        %1127 = vmatpush1.xpose.msra.mxu0 0.0
        %1128 = vmatprep.subr.mxu0 0.0
        %1129 = vmatpush1.xpose.msra.mxu0 0.0
        %1130 = vmatprep.subr.mxu0 0.0
        %1131 = vmatpush1.xpose.msra.mxu0 0.0
        %1132 = vmatprep.subr.mxu0 0.0
        %1133 = vmatpush1.xpose.msra.mxu0 0.0
        %1134 = vmatprep.subr.mxu0 0.0
        %1135 = vmatpush1.xpose.msra.mxu0 0.0
        %1136 = vmatprep.subr.mxu0 0.0
        %1137 = vmatpush1.xpose.msra.mxu0 0.0
        %1138 = vmatprep.subr.mxu0 0.0
        %1139 = vmatpush1.xpose.msra.mxu0 0.0
        %1140 = vmatprep.subr.mxu0 0.0
        %1141 = vmatpush1.xpose.msra.mxu0 0.0
        %1142 = vmatprep.subr.mxu0 0.0
        %1143 = vmatpush1.xpose.msra.mxu0 0.0
        %1144 = vmatprep.subr.mxu0 0.0
        %1145 = vmatpush1.xpose.msra.mxu0 0.0
        %1146 = vmatprep.subr.mxu0 0.0
        %1147 = vmatpush1.xpose.msra.mxu0 0.0
        %1148 = vmatprep.subr.mxu0 0.0
        %1149 = vmatpush1.xpose.msra.mxu0 0.0
        %1150 = vmatprep.subr.mxu0 0.0
        %1151 = vmatpush1.xpose.msra.mxu0 0.0
        %1152 = vmatprep.subr.mxu0 0.0
        %1153 = vmatpush1.xpose.msra.mxu0 %v1120
        %1154 = vmatprep.subr.mxu0 0.0
        %1155 = vmatpush2.xpose.msra.mxu0 0.0
        %1156 = vmatprep.subr.mxu0 0.0
        %1157 = vmatpush2.xpose.msra.mxu0 0.0
        %1158 = vmatprep.subr.mxu0 0.0
        %1159 = vmatpush2.xpose.msra.mxu0 0.0
        %1160 = vmatprep.subr.mxu0 0.0
        %1161 = vmatpush2.xpose.msra.mxu0 0.0
        %1162 = vmatprep.subr.mxu0 0.0
        %1163 = vmatpush2.xpose.msra.mxu0 0.0
        %1164 = vmatprep.subr.mxu0 0.0
        %1165 = vmatpush2.xpose.msra.mxu0 0.0
        %1166 = vmatprep.subr.mxu0 0.0
        %1167 = vmatpush2.xpose.msra.mxu0 0.0
        %1168 = vmatprep.subr.mxu0 0.0
        %1169 = vmatpush2.xpose.msra.mxu0 0.0
        %1170 = vmatprep.subr.mxu0 0.0
        %1171 = vmatpush2.xpose.msra.mxu0 0.0
        %1172 = vmatprep.subr.mxu0 0.0
        %1173 = vmatpush2.xpose.msra.mxu0 0.0
        %1174 = vmatprep.subr.mxu0 0.0
        %1175 = vmatpush2.xpose.msra.mxu0 0.0
        %1176 = vmatprep.subr.mxu0 0.0
        %1177 = vmatpush2.xpose.msra.mxu0 0.0
        %1178 = vmatprep.subr.mxu0 0.0
        %1179 = vmatpush2.xpose.msra.mxu0 0.0
        %1180 = vmatprep.subr.mxu0 0.0
        %1181 = vmatpush2.xpose.msra.mxu0 0.0
        %1182 = vmatprep.subr.mxu0 0.0
        %1183 = vmatpush2.xpose.msra.mxu0 0.0
        %1184 = vmatprep.subr.mxu0 0.0
        %1185 = vmatpush2.xpose.msra.mxu0 0.0
        %1186 = vmatprep.mubr.f32.mxu0 0.0
        %1187 = vmatmul.mubr.f32.gmra.mxu0 %v1117
        %v1188 = vpop.f32.mrf.mxu0
        %v1189 = vadd.f32 0.0, %v1188
        %v1190 = vpop.f32.mrf.mxu0
        %1191 = vdwg.mxu0
        %v1192 = vmul.f32 %v1189, 0.35355338
        %v1193 = vsel %vm456, %v1192, -inf
        %v1194 = vsel %vm703, %v1193, -inf
        %1195 = vmax.xlane.f32.xlu0 %v1194
        %v1196 = vpop.xlane.xlu0 %1195
        %v1197 = vsub.f32 %v1193, %v1196
        %v1198 = vmul.f32 %v1197, 1.442695
        %v1199 = vpow.pop %v1198
        %v1200 = vsel %vm703, %v1199, 0.0
        %1201 = vadd.xlane.f32.xlu0 %v1200
        %v1202 = vpop.xlane.xlu0 %1201
        %v1203 = vrcp.pop %v1202
        %v1204 = vmul.f32 %v1199, %v1203
        %v1206 = vsel %vm703, %v1204, 0
        %1208 = vmatprep.subr.mxu0 0.0
        %1209 = vmatpush1.msra.mxu0 0.0
        %1210 = vmatprep.subr.mxu0 0.0
        %1211 = vmatpush1.msra.mxu0 0.0
        %1212 = vmatprep.subr.mxu0 0.0
        %1213 = vmatpush1.msra.mxu0 0.0
        %1214 = vmatprep.subr.mxu0 0.0
        %1215 = vmatpush1.msra.mxu0 0.0
        %1216 = vmatprep.subr.mxu0 0.0
        %1217 = vmatpush1.msra.mxu0 0.0
        %1218 = vmatprep.subr.mxu0 0.0
        %1219 = vmatpush1.msra.mxu0 0.0
        %1220 = vmatprep.subr.mxu0 0.0
        %1221 = vmatpush1.msra.mxu0 0.0
        %1222 = vmatprep.subr.mxu0 0.0
        %1223 = vmatpush1.msra.mxu0 0.0
        %1224 = vmatprep.subr.mxu0 0.0
        %1225 = vmatpush1.msra.mxu0 0.0
        %1226 = vmatprep.subr.mxu0 0.0
        %1227 = vmatpush1.msra.mxu0 0.0
        %1228 = vmatprep.subr.mxu0 0.0
        %1229 = vmatpush1.msra.mxu0 0.0
        %1230 = vmatprep.subr.mxu0 0.0
        %1231 = vmatpush1.msra.mxu0 0.0
        %1232 = vmatprep.subr.mxu0 0.0
        %1233 = vmatpush1.msra.mxu0 0.0
        %1234 = vmatprep.subr.mxu0 0.0
        %1235 = vmatpush1.msra.mxu0 0.0
        %1236 = vmatprep.subr.mxu0 0.0
        %1237 = vmatpush1.msra.mxu0 0.0
        %1238 = vmatprep.subr.mxu0 0.0
        %1239 = vmatpush1.msra.mxu0 %v1113
        %1240 = vmatprep.subr.mxu0 0.0
        %1241 = vmatpush2.msra.mxu0 0.0
        %1242 = vmatprep.subr.mxu0 0.0
        %1243 = vmatpush2.msra.mxu0 0.0
        %1244 = vmatprep.subr.mxu0 0.0
        %1245 = vmatpush2.msra.mxu0 0.0
        %1246 = vmatprep.subr.mxu0 0.0
        %1247 = vmatpush2.msra.mxu0 0.0
        %1248 = vmatprep.subr.mxu0 0.0
        %1249 = vmatpush2.msra.mxu0 0.0
        %1250 = vmatprep.subr.mxu0 0.0
        %1251 = vmatpush2.msra.mxu0 0.0
        %1252 = vmatprep.subr.mxu0 0.0
        %1253 = vmatpush2.msra.mxu0 0.0
        %1254 = vmatprep.subr.mxu0 0.0
        %1255 = vmatpush2.msra.mxu0 0.0
        %1256 = vmatprep.subr.mxu0 0.0
        %1257 = vmatpush2.msra.mxu0 0.0
        %1258 = vmatprep.subr.mxu0 0.0
        %1259 = vmatpush2.msra.mxu0 0.0
        %1260 = vmatprep.subr.mxu0 0.0
        %1261 = vmatpush2.msra.mxu0 0.0
        %1262 = vmatprep.subr.mxu0 0.0
        %1263 = vmatpush2.msra.mxu0 0.0
        %1264 = vmatprep.subr.mxu0 0.0
        %1265 = vmatpush2.msra.mxu0 0.0
        %1266 = vmatprep.subr.mxu0 0.0
        %1267 = vmatpush2.msra.mxu0 0.0
        %1268 = vmatprep.subr.mxu0 0.0
        %1269 = vmatpush2.msra.mxu0 0.0
        %1270 = vmatprep.subr.mxu0 0.0
        %1271 = vmatpush2.msra.mxu0 0.0
        %1272 = vmatprep.mubr.f32.mxu0 0.0
        %1273 = vmatmul.mubr.f32.gmra.mxu0 %v1206
        %v1274 = vpop.f32.mrf.mxu0
        %v1275 = vadd.f32 0.0, %v1274
        %v1276 = vpop.f32.mrf.mxu0
        %1277 = vdwg.mxu0
        %s1278 = scalar_lea.vmem %s7, 8
        %v1279 = vld [vmem:[%s1278] sm:$0xff]
        %v1281 = vsel %vm703, %v1275, 0
        %1283 = vmatprep.subr.mxu0 0.0
        %1284 = vmatpush1.msra.mxu0 0.0
        %1285 = vmatprep.subr.mxu0 0.0
        %1286 = vmatpush1.msra.mxu0 0.0
        %1287 = vmatprep.subr.mxu0 0.0
        %1288 = vmatpush1.msra.mxu0 0.0
        %1289 = vmatprep.subr.mxu0 0.0
        %1290 = vmatpush1.msra.mxu0 0.0
        %1291 = vmatprep.subr.mxu0 0.0
        %1292 = vmatpush1.msra.mxu0 0.0
        %1293 = vmatprep.subr.mxu0 0.0
        %1294 = vmatpush1.msra.mxu0 0.0
        %1295 = vmatprep.subr.mxu0 0.0
        %1296 = vmatpush1.msra.mxu0 0.0
        %1297 = vmatprep.subr.mxu0 0.0
        %1298 = vmatpush1.msra.mxu0 0.0
        %1299 = vmatprep.subr.mxu0 0.0
        %1300 = vmatpush1.msra.mxu0 0.0
        %1301 = vmatprep.subr.mxu0 0.0
        %1302 = vmatpush1.msra.mxu0 0.0
        %1303 = vmatprep.subr.mxu0 0.0
        %1304 = vmatpush1.msra.mxu0 0.0
        %1305 = vmatprep.subr.mxu0 0.0
        %1306 = vmatpush1.msra.mxu0 0.0
        %1307 = vmatprep.subr.mxu0 0.0
        %1308 = vmatpush1.msra.mxu0 0.0
        %1309 = vmatprep.subr.mxu0 0.0
        %1310 = vmatpush1.msra.mxu0 0.0
        %1311 = vmatprep.subr.mxu0 0.0
        %1312 = vmatpush1.msra.mxu0 0.0
        %1313 = vmatprep.subr.mxu0 0.0
        %1314 = vmatpush1.msra.mxu0 %v1279
        %1315 = vmatprep.subr.mxu0 0.0
        %1316 = vmatpush2.msra.mxu0 0.0
        %1317 = vmatprep.subr.mxu0 0.0
        %1318 = vmatpush2.msra.mxu0 0.0
        %1319 = vmatprep.subr.mxu0 0.0
        %1320 = vmatpush2.msra.mxu0 0.0
        %1321 = vmatprep.subr.mxu0 0.0
        %1322 = vmatpush2.msra.mxu0 0.0
        %1323 = vmatprep.subr.mxu0 0.0
        %1324 = vmatpush2.msra.mxu0 0.0
        %1325 = vmatprep.subr.mxu0 0.0
        %1326 = vmatpush2.msra.mxu0 0.0
        %1327 = vmatprep.subr.mxu0 0.0
        %1328 = vmatpush2.msra.mxu0 0.0
        %1329 = vmatprep.subr.mxu0 0.0
        %1330 = vmatpush2.msra.mxu0 0.0
        %1331 = vmatprep.subr.mxu0 0.0
        %1332 = vmatpush2.msra.mxu0 0.0
        %1333 = vmatprep.subr.mxu0 0.0
        %1334 = vmatpush2.msra.mxu0 0.0
        %1335 = vmatprep.subr.mxu0 0.0
        %1336 = vmatpush2.msra.mxu0 0.0
        %1337 = vmatprep.subr.mxu0 0.0
        %1338 = vmatpush2.msra.mxu0 0.0
        %1339 = vmatprep.subr.mxu0 0.0
        %1340 = vmatpush2.msra.mxu0 0.0
        %1341 = vmatprep.subr.mxu0 0.0
        %1342 = vmatpush2.msra.mxu0 0.0
        %1343 = vmatprep.subr.mxu0 0.0
        %1344 = vmatpush2.msra.mxu0 0.0
        %1345 = vmatprep.subr.mxu0 0.0
        %1346 = vmatpush2.msra.mxu0 0.0
        %1347 = vmatprep.mubr.f32.mxu0 0.0
        %1348 = vmatmul.mubr.f32.gmra.mxu0 %v1281
        %v1349 = vpop.f32.mrf.mxu0
        %v1350 = vadd.f32 0.0, %v1349
        %v1351 = vpop.f32.mrf.mxu0
        %1352 = vdwg.mxu0
        %v1354 = vsel %vm703, %v863, 0
        %1356 = vmatprep.subr.mxu0 0.0
        %1357 = vmatpush1.msra.mxu0 0.0
        %1358 = vmatprep.subr.mxu0 0.0
        %1359 = vmatpush1.msra.mxu0 0.0
        %1360 = vmatprep.subr.mxu0 0.0
        %1361 = vmatpush1.msra.mxu0 0.0
        %1362 = vmatprep.subr.mxu0 0.0
        %1363 = vmatpush1.msra.mxu0 0.0
        %1364 = vmatprep.subr.mxu0 0.0
        %1365 = vmatpush1.msra.mxu0 0.0
        %1366 = vmatprep.subr.mxu0 0.0
        %1367 = vmatpush1.msra.mxu0 0.0
        %1368 = vmatprep.subr.mxu0 0.0
        %1369 = vmatpush1.msra.mxu0 0.0
        %1370 = vmatprep.subr.mxu0 0.0
        %1371 = vmatpush1.msra.mxu0 0.0
        %1372 = vmatprep.subr.mxu0 0.0
        %1373 = vmatpush1.msra.mxu0 0.0
        %1374 = vmatprep.subr.mxu0 0.0
        %1375 = vmatpush1.msra.mxu0 0.0
        %1376 = vmatprep.subr.mxu0 0.0
        %1377 = vmatpush1.msra.mxu0 0.0
        %1378 = vmatprep.subr.mxu0 0.0
        %1379 = vmatpush1.msra.mxu0 0.0
        %1380 = vmatprep.subr.mxu0 0.0
        %1381 = vmatpush1.msra.mxu0 0.0
        %1382 = vmatprep.subr.mxu0 0.0
        %1383 = vmatpush1.msra.mxu0 0.0
        %1384 = vmatprep.subr.mxu0 0.0
        %1385 = vmatpush1.msra.mxu0 0.0
        %1386 = vmatprep.subr.mxu0 0.0
        %1387 = vmatpush1.msra.mxu0 %v866
        %1388 = vmatprep.subr.mxu0 0.0
        %1389 = vmatpush2.msra.mxu0 0.0
        %1390 = vmatprep.subr.mxu0 0.0
        %1391 = vmatpush2.msra.mxu0 0.0
        %1392 = vmatprep.subr.mxu0 0.0
        %1393 = vmatpush2.msra.mxu0 0.0
        %1394 = vmatprep.subr.mxu0 0.0
        %1395 = vmatpush2.msra.mxu0 0.0
        %1396 = vmatprep.subr.mxu0 0.0
        %1397 = vmatpush2.msra.mxu0 0.0
        %1398 = vmatprep.subr.mxu0 0.0
        %1399 = vmatpush2.msra.mxu0 0.0
        %1400 = vmatprep.subr.mxu0 0.0
        %1401 = vmatpush2.msra.mxu0 0.0
        %1402 = vmatprep.subr.mxu0 0.0
        %1403 = vmatpush2.msra.mxu0 0.0
        %1404 = vmatprep.subr.mxu0 0.0
        %1405 = vmatpush2.msra.mxu0 0.0
        %1406 = vmatprep.subr.mxu0 0.0
        %1407 = vmatpush2.msra.mxu0 0.0
        %1408 = vmatprep.subr.mxu0 0.0
        %1409 = vmatpush2.msra.mxu0 0.0
        %1410 = vmatprep.subr.mxu0 0.0
        %1411 = vmatpush2.msra.mxu0 0.0
        %1412 = vmatprep.subr.mxu0 0.0
        %1413 = vmatpush2.msra.mxu0 0.0
        %1414 = vmatprep.subr.mxu0 0.0
        %1415 = vmatpush2.msra.mxu0 0.0
        %1416 = vmatprep.subr.mxu0 0.0
        %1417 = vmatpush2.msra.mxu0 0.0
        %1418 = vmatprep.subr.mxu0 0.0
        %1419 = vmatpush2.msra.mxu0 0.0
        %1420 = vmatprep.mubr.f32.mxu0 0.0
        %1421 = vmatmul.mubr.f32.gmra.mxu0 %v1354
        %v1422 = vpop.f32.mrf.mxu0
        %v1423 = vadd.f32 %v1350, %v1422
        %v1424 = vpop.f32.mrf.mxu0
        %1425 = vdwg.mxu0
        %s1426 = scalar_lea.vmem %s1, 64
        %v1427 = vld [vmem:[%s1426] sm:$0xff]
        %v1428 = vld [vmem:[%s1426 + $0x8] sm:$0xff]
        %v1429 = vld [vmem:[%s1426 + $0x10] sm:$0xff]
        %v1430 = vld [vmem:[%s1426 + $0x18] sm:$0xff]
        %s1431 = scalar_lea.vmem %s2, 2
        %v1432 = vld [vmem:[%s1431] sm:$0x1]
        %v1434 = vlaneseq
        %v1435 = vshrl.u32 %v1434, 7
        %v1436 = vsub.s32 0, %v1435
        %v1437 = vrot.slane %v1432, %v1436
        %1439 = vmatprep.subr.mxu0 0.0
        %1440 = vmatpush1.msra.mxu0 0.0
        %1441 = vmatprep.subr.mxu0 0.0
        %1442 = vmatpush1.msra.mxu0 0.0
        %1443 = vmatprep.subr.mxu0 0.0
        %1444 = vmatpush1.msra.mxu0 0.0
        %1445 = vmatprep.subr.mxu0 0.0
        %1446 = vmatpush1.msra.mxu0 0.0
        %1447 = vmatprep.subr.mxu0 0.0
        %1448 = vmatpush1.msra.mxu0 0.0
        %1449 = vmatprep.subr.mxu0 0.0
        %1450 = vmatpush1.msra.mxu0 0.0
        %1451 = vmatprep.subr.mxu0 0.0
        %1452 = vmatpush1.msra.mxu0 0.0
        %1453 = vmatprep.subr.mxu0 0.0
        %1454 = vmatpush1.msra.mxu0 0.0
        %1455 = vmatprep.subr.mxu0 0.0
        %1456 = vmatpush1.msra.mxu0 0.0
        %1457 = vmatprep.subr.mxu0 0.0
        %1458 = vmatpush1.msra.mxu0 0.0
        %1459 = vmatprep.subr.mxu0 0.0
        %1460 = vmatpush1.msra.mxu0 0.0
        %1461 = vmatprep.subr.mxu0 0.0
        %1462 = vmatpush1.msra.mxu0 0.0
        %1463 = vmatprep.subr.mxu0 0.0
        %1464 = vmatpush1.msra.mxu0 %v1430
        %1465 = vmatprep.subr.mxu0 0.0
        %1466 = vmatpush1.msra.mxu0 %v1429
        %1467 = vmatprep.subr.mxu0 0.0
        %1468 = vmatpush1.msra.mxu0 %v1428
        %1469 = vmatprep.subr.mxu0 0.0
        %1470 = vmatpush1.msra.mxu0 %v1427
        %1471 = vmatprep.subr.mxu0 0.0
        %1472 = vmatpush2.msra.mxu0 0.0
        %1473 = vmatprep.subr.mxu0 0.0
        %1474 = vmatpush2.msra.mxu0 0.0
        %1475 = vmatprep.subr.mxu0 0.0
        %1476 = vmatpush2.msra.mxu0 0.0
        %1477 = vmatprep.subr.mxu0 0.0
        %1478 = vmatpush2.msra.mxu0 0.0
        %1479 = vmatprep.subr.mxu0 0.0
        %1480 = vmatpush2.msra.mxu0 0.0
        %1481 = vmatprep.subr.mxu0 0.0
        %1482 = vmatpush2.msra.mxu0 0.0
        %1483 = vmatprep.subr.mxu0 0.0
        %1484 = vmatpush2.msra.mxu0 0.0
        %1485 = vmatprep.subr.mxu0 0.0
        %1486 = vmatpush2.msra.mxu0 0.0
        %1487 = vmatprep.subr.mxu0 0.0
        %1488 = vmatpush2.msra.mxu0 0.0
        %1489 = vmatprep.subr.mxu0 0.0
        %1490 = vmatpush2.msra.mxu0 0.0
        %1491 = vmatprep.subr.mxu0 0.0
        %1492 = vmatpush2.msra.mxu0 0.0
        %1493 = vmatprep.subr.mxu0 0.0
        %1494 = vmatpush2.msra.mxu0 0.0
        %1495 = vmatprep.subr.mxu0 0.0
        %1496 = vmatpush2.msra.mxu0 0.0
        %1497 = vmatprep.subr.mxu0 0.0
        %1498 = vmatpush2.msra.mxu0 0.0
        %1499 = vmatprep.subr.mxu0 0.0
        %1500 = vmatpush2.msra.mxu0 0.0
        %1501 = vmatprep.subr.mxu0 0.0
        %1502 = vmatpush2.msra.mxu0 0.0
        %1503 = vmatprep.mubr.f32.mxu0 0.0
        %1504 = vmatmul.mubr.f32.gmra.mxu0 %v469
        %v1505 = vpop.f32.mrf.mxu0
        %v1506 = vadd.f32 %v1437, %v1505
        %v1507 = vpop.f32.mrf.mxu0
        %1508 = vdwg.mxu0
        %s1509 = scalar_lea.vmem %s3, 64
        %v1510 = vld [vmem:[%s1509] sm:$0xff]
        %v1511 = vld [vmem:[%s1509 + $0x8] sm:$0xff]
        %v1512 = vld [vmem:[%s1509 + $0x10] sm:$0xff]
        %v1513 = vld [vmem:[%s1509 + $0x18] sm:$0xff]
        %s1514 = scalar_lea.vmem %s4, 2
        %v1515 = vld [vmem:[%s1514] sm:$0x1]
        %v1517 = vlaneseq
        %v1518 = vshrl.u32 %v1517, 7
        %v1519 = vsub.s32 0, %v1518
        %v1520 = vrot.slane %v1515, %v1519
        %1522 = vmatprep.subr.mxu0 0.0
        %1523 = vmatpush1.msra.mxu0 0.0
        %1524 = vmatprep.subr.mxu0 0.0
        %1525 = vmatpush1.msra.mxu0 0.0
        %1526 = vmatprep.subr.mxu0 0.0
        %1527 = vmatpush1.msra.mxu0 0.0
        %1528 = vmatprep.subr.mxu0 0.0
        %1529 = vmatpush1.msra.mxu0 0.0
        %1530 = vmatprep.subr.mxu0 0.0
        %1531 = vmatpush1.msra.mxu0 0.0
        %1532 = vmatprep.subr.mxu0 0.0
        %1533 = vmatpush1.msra.mxu0 0.0
        %1534 = vmatprep.subr.mxu0 0.0
        %1535 = vmatpush1.msra.mxu0 0.0
        %1536 = vmatprep.subr.mxu0 0.0
        %1537 = vmatpush1.msra.mxu0 0.0
        %1538 = vmatprep.subr.mxu0 0.0
        %1539 = vmatpush1.msra.mxu0 0.0
        %1540 = vmatprep.subr.mxu0 0.0
        %1541 = vmatpush1.msra.mxu0 0.0
        %1542 = vmatprep.subr.mxu0 0.0
        %1543 = vmatpush1.msra.mxu0 0.0
        %1544 = vmatprep.subr.mxu0 0.0
        %1545 = vmatpush1.msra.mxu0 0.0
        %1546 = vmatprep.subr.mxu0 0.0
        %1547 = vmatpush1.msra.mxu0 %v1513
        %1548 = vmatprep.subr.mxu0 0.0
        %1549 = vmatpush1.msra.mxu0 %v1512
        %1550 = vmatprep.subr.mxu0 0.0
        %1551 = vmatpush1.msra.mxu0 %v1511
        %1552 = vmatprep.subr.mxu0 0.0
        %1553 = vmatpush1.msra.mxu0 %v1510
        %1554 = vmatprep.subr.mxu0 0.0
        %1555 = vmatpush2.msra.mxu0 0.0
        %1556 = vmatprep.subr.mxu0 0.0
        %1557 = vmatpush2.msra.mxu0 0.0
        %1558 = vmatprep.subr.mxu0 0.0
        %1559 = vmatpush2.msra.mxu0 0.0
        %1560 = vmatprep.subr.mxu0 0.0
        %1561 = vmatpush2.msra.mxu0 0.0
        %1562 = vmatprep.subr.mxu0 0.0
        %1563 = vmatpush2.msra.mxu0 0.0
        %1564 = vmatprep.subr.mxu0 0.0
        %1565 = vmatpush2.msra.mxu0 0.0
        %1566 = vmatprep.subr.mxu0 0.0
        %1567 = vmatpush2.msra.mxu0 0.0
        %1568 = vmatprep.subr.mxu0 0.0
        %1569 = vmatpush2.msra.mxu0 0.0
        %1570 = vmatprep.subr.mxu0 0.0
        %1571 = vmatpush2.msra.mxu0 0.0
        %1572 = vmatprep.subr.mxu0 0.0
        %1573 = vmatpush2.msra.mxu0 0.0
        %1574 = vmatprep.subr.mxu0 0.0
        %1575 = vmatpush2.msra.mxu0 0.0
        %1576 = vmatprep.subr.mxu0 0.0
        %1577 = vmatpush2.msra.mxu0 0.0
        %1578 = vmatprep.subr.mxu0 0.0
        %1579 = vmatpush2.msra.mxu0 0.0
        %1580 = vmatprep.subr.mxu0 0.0
        %1581 = vmatpush2.msra.mxu0 0.0
        %1582 = vmatprep.subr.mxu0 0.0
        %1583 = vmatpush2.msra.mxu0 0.0
        %1584 = vmatprep.subr.mxu0 0.0
        %1585 = vmatpush2.msra.mxu0 0.0
        %1586 = vmatprep.mubr.f32.mxu0 0.0
        %1587 = vmatmul.mubr.f32.gmra.mxu0 %v469
        %v1588 = vpop.f32.mrf.mxu0
        %v1589 = vadd.f32 %v1520, %v1588
        %v1590 = vpop.f32.mrf.mxu0
        %1591 = vdwg.mxu0
        %s1592 = scalar_lea.vmem %s5, 64
        %v1593 = vld [vmem:[%s1592] sm:$0xff]
        %v1594 = vld [vmem:[%s1592 + $0x8] sm:$0xff]
        %v1595 = vld [vmem:[%s1592 + $0x10] sm:$0xff]
        %v1596 = vld [vmem:[%s1592 + $0x18] sm:$0xff]
        %s1597 = scalar_lea.vmem %s6, 2
        %v1598 = vld [vmem:[%s1597] sm:$0x1]
        %v1600 = vlaneseq
        %v1601 = vshrl.u32 %v1600, 7
        %v1602 = vsub.s32 0, %v1601
        %v1603 = vrot.slane %v1598, %v1602
        %1605 = vmatprep.subr.mxu0 0.0
        %1606 = vmatpush1.msra.mxu0 0.0
        %1607 = vmatprep.subr.mxu0 0.0
        %1608 = vmatpush1.msra.mxu0 0.0
        %1609 = vmatprep.subr.mxu0 0.0
        %1610 = vmatpush1.msra.mxu0 0.0
        %1611 = vmatprep.subr.mxu0 0.0
        %1612 = vmatpush1.msra.mxu0 0.0
        %1613 = vmatprep.subr.mxu0 0.0
        %1614 = vmatpush1.msra.mxu0 0.0
        %1615 = vmatprep.subr.mxu0 0.0
        %1616 = vmatpush1.msra.mxu0 0.0
        %1617 = vmatprep.subr.mxu0 0.0
        %1618 = vmatpush1.msra.mxu0 0.0
        %1619 = vmatprep.subr.mxu0 0.0
        %1620 = vmatpush1.msra.mxu0 0.0
        %1621 = vmatprep.subr.mxu0 0.0
        %1622 = vmatpush1.msra.mxu0 0.0
        %1623 = vmatprep.subr.mxu0 0.0
        %1624 = vmatpush1.msra.mxu0 0.0
        %1625 = vmatprep.subr.mxu0 0.0
        %1626 = vmatpush1.msra.mxu0 0.0
        %1627 = vmatprep.subr.mxu0 0.0
        %1628 = vmatpush1.msra.mxu0 0.0
        %1629 = vmatprep.subr.mxu0 0.0
        %1630 = vmatpush1.msra.mxu0 %v1596
        %1631 = vmatprep.subr.mxu0 0.0
        %1632 = vmatpush1.msra.mxu0 %v1595
        %1633 = vmatprep.subr.mxu0 0.0
        %1634 = vmatpush1.msra.mxu0 %v1594
        %1635 = vmatprep.subr.mxu0 0.0
        %1636 = vmatpush1.msra.mxu0 %v1593
        %1637 = vmatprep.subr.mxu0 0.0
        %1638 = vmatpush2.msra.mxu0 0.0
        %1639 = vmatprep.subr.mxu0 0.0
        %1640 = vmatpush2.msra.mxu0 0.0
        %1641 = vmatprep.subr.mxu0 0.0
        %1642 = vmatpush2.msra.mxu0 0.0
        %1643 = vmatprep.subr.mxu0 0.0
        %1644 = vmatpush2.msra.mxu0 0.0
        %1645 = vmatprep.subr.mxu0 0.0
        %1646 = vmatpush2.msra.mxu0 0.0
        %1647 = vmatprep.subr.mxu0 0.0
        %1648 = vmatpush2.msra.mxu0 0.0
        %1649 = vmatprep.subr.mxu0 0.0
        %1650 = vmatpush2.msra.mxu0 0.0
        %1651 = vmatprep.subr.mxu0 0.0
        %1652 = vmatpush2.msra.mxu0 0.0
        %1653 = vmatprep.subr.mxu0 0.0
        %1654 = vmatpush2.msra.mxu0 0.0
        %1655 = vmatprep.subr.mxu0 0.0
        %1656 = vmatpush2.msra.mxu0 0.0
        %1657 = vmatprep.subr.mxu0 0.0
        %1658 = vmatpush2.msra.mxu0 0.0
        %1659 = vmatprep.subr.mxu0 0.0
        %1660 = vmatpush2.msra.mxu0 0.0
        %1661 = vmatprep.subr.mxu0 0.0
        %1662 = vmatpush2.msra.mxu0 0.0
        %1663 = vmatprep.subr.mxu0 0.0
        %1664 = vmatpush2.msra.mxu0 0.0
        %1665 = vmatprep.subr.mxu0 0.0
        %1666 = vmatpush2.msra.mxu0 0.0
        %1667 = vmatprep.subr.mxu0 0.0
        %1668 = vmatpush2.msra.mxu0 0.0
        %1669 = vmatprep.mubr.f32.mxu0 0.0
        %1670 = vmatmul.mubr.f32.gmra.mxu0 %v469
        %v1671 = vpop.f32.mrf.mxu0
        %v1672 = vadd.f32 %v1603, %v1671
        %v1673 = vpop.f32.mrf.mxu0
        %1674 = vdwg.mxu0
        %v1676 = vsel %vm703, %v1506, 0
        %v1679 = vsel %vm703, %v1589, 0
        %1681 = vmatprep.subr.mxu0 0.0
        %1682 = vmatpush1.xpose.msra.mxu0 0.0
        %1683 = vmatprep.subr.mxu0 0.0
        %1684 = vmatpush1.xpose.msra.mxu0 0.0
        %1685 = vmatprep.subr.mxu0 0.0
        %1686 = vmatpush1.xpose.msra.mxu0 0.0
        %1687 = vmatprep.subr.mxu0 0.0
        %1688 = vmatpush1.xpose.msra.mxu0 0.0
        %1689 = vmatprep.subr.mxu0 0.0
        %1690 = vmatpush1.xpose.msra.mxu0 0.0
        %1691 = vmatprep.subr.mxu0 0.0
        %1692 = vmatpush1.xpose.msra.mxu0 0.0
        %1693 = vmatprep.subr.mxu0 0.0
        %1694 = vmatpush1.xpose.msra.mxu0 0.0
        %1695 = vmatprep.subr.mxu0 0.0
        %1696 = vmatpush1.xpose.msra.mxu0 0.0
        %1697 = vmatprep.subr.mxu0 0.0
        %1698 = vmatpush1.xpose.msra.mxu0 0.0
        %1699 = vmatprep.subr.mxu0 0.0
        %1700 = vmatpush1.xpose.msra.mxu0 0.0
        %1701 = vmatprep.subr.mxu0 0.0
        %1702 = vmatpush1.xpose.msra.mxu0 0.0
        %1703 = vmatprep.subr.mxu0 0.0
        %1704 = vmatpush1.xpose.msra.mxu0 0.0
        %1705 = vmatprep.subr.mxu0 0.0
        %1706 = vmatpush1.xpose.msra.mxu0 0.0
        %1707 = vmatprep.subr.mxu0 0.0
        %1708 = vmatpush1.xpose.msra.mxu0 0.0
        %1709 = vmatprep.subr.mxu0 0.0
        %1710 = vmatpush1.xpose.msra.mxu0 0.0
        %1711 = vmatprep.subr.mxu0 0.0
        %1712 = vmatpush1.xpose.msra.mxu0 %v1679
        %1713 = vmatprep.subr.mxu0 0.0
        %1714 = vmatpush2.xpose.msra.mxu0 0.0
        %1715 = vmatprep.subr.mxu0 0.0
        %1716 = vmatpush2.xpose.msra.mxu0 0.0
        %1717 = vmatprep.subr.mxu0 0.0
        %1718 = vmatpush2.xpose.msra.mxu0 0.0
        %1719 = vmatprep.subr.mxu0 0.0
        %1720 = vmatpush2.xpose.msra.mxu0 0.0
        %1721 = vmatprep.subr.mxu0 0.0
        %1722 = vmatpush2.xpose.msra.mxu0 0.0
        %1723 = vmatprep.subr.mxu0 0.0
        %1724 = vmatpush2.xpose.msra.mxu0 0.0
        %1725 = vmatprep.subr.mxu0 0.0
        %1726 = vmatpush2.xpose.msra.mxu0 0.0
        %1727 = vmatprep.subr.mxu0 0.0
        %1728 = vmatpush2.xpose.msra.mxu0 0.0
        %1729 = vmatprep.subr.mxu0 0.0
        %1730 = vmatpush2.xpose.msra.mxu0 0.0
        %1731 = vmatprep.subr.mxu0 0.0
        %1732 = vmatpush2.xpose.msra.mxu0 0.0
        %1733 = vmatprep.subr.mxu0 0.0
        %1734 = vmatpush2.xpose.msra.mxu0 0.0
        %1735 = vmatprep.subr.mxu0 0.0
        %1736 = vmatpush2.xpose.msra.mxu0 0.0
        %1737 = vmatprep.subr.mxu0 0.0
        %1738 = vmatpush2.xpose.msra.mxu0 0.0
        %1739 = vmatprep.subr.mxu0 0.0
        %1740 = vmatpush2.xpose.msra.mxu0 0.0
        %1741 = vmatprep.subr.mxu0 0.0
        %1742 = vmatpush2.xpose.msra.mxu0 0.0
        %1743 = vmatprep.subr.mxu0 0.0
        %1744 = vmatpush2.xpose.msra.mxu0 0.0
        %1745 = vmatprep.mubr.f32.mxu0 0.0
        %1746 = vmatmul.mubr.f32.gmra.mxu0 %v1676
        %v1747 = vpop.f32.mrf.mxu0
        %v1748 = vadd.f32 0.0, %v1747
        %v1749 = vpop.f32.mrf.mxu0
        %1750 = vdwg.mxu0
        %v1751 = vmul.f32 %v1748, 0.35355338
        %v1752 = vsel %vm456, %v1751, -inf
        %v1753 = vsel %vm703, %v1752, -inf
        %1754 = vmax.xlane.f32.xlu0 %v1753
        %v1755 = vpop.xlane.xlu0 %1754
        %v1756 = vsub.f32 %v1752, %v1755
        %v1757 = vmul.f32 %v1756, 1.442695
        %v1758 = vpow.pop %v1757
        %v1759 = vsel %vm703, %v1758, 0.0
        %1760 = vadd.xlane.f32.xlu0 %v1759
        %v1761 = vpop.xlane.xlu0 %1760
        %v1762 = vrcp.pop %v1761
        %v1763 = vmul.f32 %v1758, %v1762
        %v1765 = vsel %vm703, %v1763, 0
        %1767 = vmatprep.subr.mxu0 0.0
        %1768 = vmatpush1.msra.mxu0 0.0
        %1769 = vmatprep.subr.mxu0 0.0
        %1770 = vmatpush1.msra.mxu0 0.0
        %1771 = vmatprep.subr.mxu0 0.0
        %1772 = vmatpush1.msra.mxu0 0.0
        %1773 = vmatprep.subr.mxu0 0.0
        %1774 = vmatpush1.msra.mxu0 0.0
        %1775 = vmatprep.subr.mxu0 0.0
        %1776 = vmatpush1.msra.mxu0 0.0
        %1777 = vmatprep.subr.mxu0 0.0
        %1778 = vmatpush1.msra.mxu0 0.0
        %1779 = vmatprep.subr.mxu0 0.0
        %1780 = vmatpush1.msra.mxu0 0.0
        %1781 = vmatprep.subr.mxu0 0.0
        %1782 = vmatpush1.msra.mxu0 0.0
        %1783 = vmatprep.subr.mxu0 0.0
        %1784 = vmatpush1.msra.mxu0 0.0
        %1785 = vmatprep.subr.mxu0 0.0
        %1786 = vmatpush1.msra.mxu0 0.0
        %1787 = vmatprep.subr.mxu0 0.0
        %1788 = vmatpush1.msra.mxu0 0.0
        %1789 = vmatprep.subr.mxu0 0.0
        %1790 = vmatpush1.msra.mxu0 0.0
        %1791 = vmatprep.subr.mxu0 0.0
        %1792 = vmatpush1.msra.mxu0 0.0
        %1793 = vmatprep.subr.mxu0 0.0
        %1794 = vmatpush1.msra.mxu0 0.0
        %1795 = vmatprep.subr.mxu0 0.0
        %1796 = vmatpush1.msra.mxu0 0.0
        %1797 = vmatprep.subr.mxu0 0.0
        %1798 = vmatpush1.msra.mxu0 %v1672
        %1799 = vmatprep.subr.mxu0 0.0
        %1800 = vmatpush2.msra.mxu0 0.0
        %1801 = vmatprep.subr.mxu0 0.0
        %1802 = vmatpush2.msra.mxu0 0.0
        %1803 = vmatprep.subr.mxu0 0.0
        %1804 = vmatpush2.msra.mxu0 0.0
        %1805 = vmatprep.subr.mxu0 0.0
        %1806 = vmatpush2.msra.mxu0 0.0
        %1807 = vmatprep.subr.mxu0 0.0
        %1808 = vmatpush2.msra.mxu0 0.0
        %1809 = vmatprep.subr.mxu0 0.0
        %1810 = vmatpush2.msra.mxu0 0.0
        %1811 = vmatprep.subr.mxu0 0.0
        %1812 = vmatpush2.msra.mxu0 0.0
        %1813 = vmatprep.subr.mxu0 0.0
        %1814 = vmatpush2.msra.mxu0 0.0
        %1815 = vmatprep.subr.mxu0 0.0
        %1816 = vmatpush2.msra.mxu0 0.0
        %1817 = vmatprep.subr.mxu0 0.0
        %1818 = vmatpush2.msra.mxu0 0.0
        %1819 = vmatprep.subr.mxu0 0.0
        %1820 = vmatpush2.msra.mxu0 0.0
        %1821 = vmatprep.subr.mxu0 0.0
        %1822 = vmatpush2.msra.mxu0 0.0
        %1823 = vmatprep.subr.mxu0 0.0
        %1824 = vmatpush2.msra.mxu0 0.0
        %1825 = vmatprep.subr.mxu0 0.0
        %1826 = vmatpush2.msra.mxu0 0.0
        %1827 = vmatprep.subr.mxu0 0.0
        %1828 = vmatpush2.msra.mxu0 0.0
        %1829 = vmatprep.subr.mxu0 0.0
        %1830 = vmatpush2.msra.mxu0 0.0
        %1831 = vmatprep.mubr.f32.mxu0 0.0
        %1832 = vmatmul.mubr.f32.gmra.mxu0 %v1765
        %v1833 = vpop.f32.mrf.mxu0
        %v1834 = vadd.f32 0.0, %v1833
        %v1835 = vpop.f32.mrf.mxu0
        %1836 = vdwg.mxu0
        %s1837 = scalar_lea.vmem %s7, 16
        %v1838 = vld [vmem:[%s1837] sm:$0xff]
        %v1840 = vsel %vm703, %v1834, 0
        %1842 = vmatprep.subr.mxu0 0.0
        %1843 = vmatpush1.msra.mxu0 0.0
        %1844 = vmatprep.subr.mxu0 0.0
        %1845 = vmatpush1.msra.mxu0 0.0
        %1846 = vmatprep.subr.mxu0 0.0
        %1847 = vmatpush1.msra.mxu0 0.0
        %1848 = vmatprep.subr.mxu0 0.0
        %1849 = vmatpush1.msra.mxu0 0.0
        %1850 = vmatprep.subr.mxu0 0.0
        %1851 = vmatpush1.msra.mxu0 0.0
        %1852 = vmatprep.subr.mxu0 0.0
        %1853 = vmatpush1.msra.mxu0 0.0
        %1854 = vmatprep.subr.mxu0 0.0
        %1855 = vmatpush1.msra.mxu0 0.0
        %1856 = vmatprep.subr.mxu0 0.0
        %1857 = vmatpush1.msra.mxu0 0.0
        %1858 = vmatprep.subr.mxu0 0.0
        %1859 = vmatpush1.msra.mxu0 0.0
        %1860 = vmatprep.subr.mxu0 0.0
        %1861 = vmatpush1.msra.mxu0 0.0
        %1862 = vmatprep.subr.mxu0 0.0
        %1863 = vmatpush1.msra.mxu0 0.0
        %1864 = vmatprep.subr.mxu0 0.0
        %1865 = vmatpush1.msra.mxu0 0.0
        %1866 = vmatprep.subr.mxu0 0.0
        %1867 = vmatpush1.msra.mxu0 0.0
        %1868 = vmatprep.subr.mxu0 0.0
        %1869 = vmatpush1.msra.mxu0 0.0
        %1870 = vmatprep.subr.mxu0 0.0
        %1871 = vmatpush1.msra.mxu0 0.0
        %1872 = vmatprep.subr.mxu0 0.0
        %1873 = vmatpush1.msra.mxu0 %v1838
        %1874 = vmatprep.subr.mxu0 0.0
        %1875 = vmatpush2.msra.mxu0 0.0
        %1876 = vmatprep.subr.mxu0 0.0
        %1877 = vmatpush2.msra.mxu0 0.0
        %1878 = vmatprep.subr.mxu0 0.0
        %1879 = vmatpush2.msra.mxu0 0.0
        %1880 = vmatprep.subr.mxu0 0.0
        %1881 = vmatpush2.msra.mxu0 0.0
        %1882 = vmatprep.subr.mxu0 0.0
        %1883 = vmatpush2.msra.mxu0 0.0
        %1884 = vmatprep.subr.mxu0 0.0
        %1885 = vmatpush2.msra.mxu0 0.0
        %1886 = vmatprep.subr.mxu0 0.0
        %1887 = vmatpush2.msra.mxu0 0.0
        %1888 = vmatprep.subr.mxu0 0.0
        %1889 = vmatpush2.msra.mxu0 0.0
        %1890 = vmatprep.subr.mxu0 0.0
        %1891 = vmatpush2.msra.mxu0 0.0
        %1892 = vmatprep.subr.mxu0 0.0
        %1893 = vmatpush2.msra.mxu0 0.0
        %1894 = vmatprep.subr.mxu0 0.0
        %1895 = vmatpush2.msra.mxu0 0.0
        %1896 = vmatprep.subr.mxu0 0.0
        %1897 = vmatpush2.msra.mxu0 0.0
        %1898 = vmatprep.subr.mxu0 0.0
        %1899 = vmatpush2.msra.mxu0 0.0
        %1900 = vmatprep.subr.mxu0 0.0
        %1901 = vmatpush2.msra.mxu0 0.0
        %1902 = vmatprep.subr.mxu0 0.0
        %1903 = vmatpush2.msra.mxu0 0.0
        %1904 = vmatprep.subr.mxu0 0.0
        %1905 = vmatpush2.msra.mxu0 0.0
        %1906 = vmatprep.mubr.f32.mxu0 0.0
        %1907 = vmatmul.mubr.f32.gmra.mxu0 %v1840
        %v1908 = vpop.f32.mrf.mxu0
        %v1909 = vadd.f32 0.0, %v1908
        %v1910 = vpop.f32.mrf.mxu0
        %1911 = vdwg.mxu0
        %v1912 = vadd.f32 %v1423, %v1909
        %s1913 = scalar_lea.vmem %s1, 96
        %v1914 = vld [vmem:[%s1913] sm:$0xff]
        %v1915 = vld [vmem:[%s1913 + $0x8] sm:$0xff]
        %v1916 = vld [vmem:[%s1913 + $0x10] sm:$0xff]
        %v1917 = vld [vmem:[%s1913 + $0x18] sm:$0xff]
        %s1918 = scalar_lea.vmem %s2, 3
        %v1919 = vld [vmem:[%s1918] sm:$0x1]
        %v1921 = vlaneseq
        %v1922 = vshrl.u32 %v1921, 7
        %v1923 = vsub.s32 0, %v1922
        %v1924 = vrot.slane %v1919, %v1923
        %1926 = vmatprep.subr.mxu0 0.0
        %1927 = vmatpush1.msra.mxu0 0.0
        %1928 = vmatprep.subr.mxu0 0.0
        %1929 = vmatpush1.msra.mxu0 0.0
        %1930 = vmatprep.subr.mxu0 0.0
        %1931 = vmatpush1.msra.mxu0 0.0
        %1932 = vmatprep.subr.mxu0 0.0
        %1933 = vmatpush1.msra.mxu0 0.0
        %1934 = vmatprep.subr.mxu0 0.0
        %1935 = vmatpush1.msra.mxu0 0.0
        %1936 = vmatprep.subr.mxu0 0.0
        %1937 = vmatpush1.msra.mxu0 0.0
        %1938 = vmatprep.subr.mxu0 0.0
        %1939 = vmatpush1.msra.mxu0 0.0
        %1940 = vmatprep.subr.mxu0 0.0
        %1941 = vmatpush1.msra.mxu0 0.0
        %1942 = vmatprep.subr.mxu0 0.0
        %1943 = vmatpush1.msra.mxu0 0.0
        %1944 = vmatprep.subr.mxu0 0.0
        %1945 = vmatpush1.msra.mxu0 0.0
        %1946 = vmatprep.subr.mxu0 0.0
        %1947 = vmatpush1.msra.mxu0 0.0
        %1948 = vmatprep.subr.mxu0 0.0
        %1949 = vmatpush1.msra.mxu0 0.0
        %1950 = vmatprep.subr.mxu0 0.0
        %1951 = vmatpush1.msra.mxu0 %v1917
        %1952 = vmatprep.subr.mxu0 0.0
        %1953 = vmatpush1.msra.mxu0 %v1916
        %1954 = vmatprep.subr.mxu0 0.0
        %1955 = vmatpush1.msra.mxu0 %v1915
        %1956 = vmatprep.subr.mxu0 0.0
        %1957 = vmatpush1.msra.mxu0 %v1914
        %1958 = vmatprep.subr.mxu0 0.0
        %1959 = vmatpush2.msra.mxu0 0.0
        %1960 = vmatprep.subr.mxu0 0.0
        %1961 = vmatpush2.msra.mxu0 0.0
        %1962 = vmatprep.subr.mxu0 0.0
        %1963 = vmatpush2.msra.mxu0 0.0
        %1964 = vmatprep.subr.mxu0 0.0
        %1965 = vmatpush2.msra.mxu0 0.0
        %1966 = vmatprep.subr.mxu0 0.0
        %1967 = vmatpush2.msra.mxu0 0.0
        %1968 = vmatprep.subr.mxu0 0.0
        %1969 = vmatpush2.msra.mxu0 0.0
        %1970 = vmatprep.subr.mxu0 0.0
        %1971 = vmatpush2.msra.mxu0 0.0
        %1972 = vmatprep.subr.mxu0 0.0
        %1973 = vmatpush2.msra.mxu0 0.0
        %1974 = vmatprep.subr.mxu0 0.0
        %1975 = vmatpush2.msra.mxu0 0.0
        %1976 = vmatprep.subr.mxu0 0.0
        %1977 = vmatpush2.msra.mxu0 0.0
        %1978 = vmatprep.subr.mxu0 0.0
        %1979 = vmatpush2.msra.mxu0 0.0
        %1980 = vmatprep.subr.mxu0 0.0
        %1981 = vmatpush2.msra.mxu0 0.0
        %1982 = vmatprep.subr.mxu0 0.0
        %1983 = vmatpush2.msra.mxu0 0.0
        %1984 = vmatprep.subr.mxu0 0.0
        %1985 = vmatpush2.msra.mxu0 0.0
        %1986 = vmatprep.subr.mxu0 0.0
        %1987 = vmatpush2.msra.mxu0 0.0
        %1988 = vmatprep.subr.mxu0 0.0
        %1989 = vmatpush2.msra.mxu0 0.0
        %1990 = vmatprep.mubr.f32.mxu0 0.0
        %1991 = vmatmul.mubr.f32.gmra.mxu0 %v469
        %v1992 = vpop.f32.mrf.mxu0
        %v1993 = vadd.f32 %v1924, %v1992
        %v1994 = vpop.f32.mrf.mxu0
        %1995 = vdwg.mxu0
        %s1996 = scalar_lea.vmem %s3, 96
        %v1997 = vld [vmem:[%s1996] sm:$0xff]
        %v1998 = vld [vmem:[%s1996 + $0x8] sm:$0xff]
        %v1999 = vld [vmem:[%s1996 + $0x10] sm:$0xff]
        %v2000 = vld [vmem:[%s1996 + $0x18] sm:$0xff]
        %s2001 = scalar_lea.vmem %s4, 3
        %v2002 = vld [vmem:[%s2001] sm:$0x1]
        %v2004 = vlaneseq
        %v2005 = vshrl.u32 %v2004, 7
        %v2006 = vsub.s32 0, %v2005
        %v2007 = vrot.slane %v2002, %v2006
        %2009 = vmatprep.subr.mxu0 0.0
        %2010 = vmatpush1.msra.mxu0 0.0
        %2011 = vmatprep.subr.mxu0 0.0
        %2012 = vmatpush1.msra.mxu0 0.0
        %2013 = vmatprep.subr.mxu0 0.0
        %2014 = vmatpush1.msra.mxu0 0.0
        %2015 = vmatprep.subr.mxu0 0.0
        %2016 = vmatpush1.msra.mxu0 0.0
        %2017 = vmatprep.subr.mxu0 0.0
        %2018 = vmatpush1.msra.mxu0 0.0
        %2019 = vmatprep.subr.mxu0 0.0
        %2020 = vmatpush1.msra.mxu0 0.0
        %2021 = vmatprep.subr.mxu0 0.0
        %2022 = vmatpush1.msra.mxu0 0.0
        %2023 = vmatprep.subr.mxu0 0.0
        %2024 = vmatpush1.msra.mxu0 0.0
        %2025 = vmatprep.subr.mxu0 0.0
        %2026 = vmatpush1.msra.mxu0 0.0
        %2027 = vmatprep.subr.mxu0 0.0
        %2028 = vmatpush1.msra.mxu0 0.0
        %2029 = vmatprep.subr.mxu0 0.0
        %2030 = vmatpush1.msra.mxu0 0.0
        %2031 = vmatprep.subr.mxu0 0.0
        %2032 = vmatpush1.msra.mxu0 0.0
        %2033 = vmatprep.subr.mxu0 0.0
        %2034 = vmatpush1.msra.mxu0 %v2000
        %2035 = vmatprep.subr.mxu0 0.0
        %2036 = vmatpush1.msra.mxu0 %v1999
        %2037 = vmatprep.subr.mxu0 0.0
        %2038 = vmatpush1.msra.mxu0 %v1998
        %2039 = vmatprep.subr.mxu0 0.0
        %2040 = vmatpush1.msra.mxu0 %v1997
        %2041 = vmatprep.subr.mxu0 0.0
        %2042 = vmatpush2.msra.mxu0 0.0
        %2043 = vmatprep.subr.mxu0 0.0
        %2044 = vmatpush2.msra.mxu0 0.0
        %2045 = vmatprep.subr.mxu0 0.0
        %2046 = vmatpush2.msra.mxu0 0.0
        %2047 = vmatprep.subr.mxu0 0.0
        %2048 = vmatpush2.msra.mxu0 0.0
        %2049 = vmatprep.subr.mxu0 0.0
        %2050 = vmatpush2.msra.mxu0 0.0
        %2051 = vmatprep.subr.mxu0 0.0
        %2052 = vmatpush2.msra.mxu0 0.0
        %2053 = vmatprep.subr.mxu0 0.0
        %2054 = vmatpush2.msra.mxu0 0.0
        %2055 = vmatprep.subr.mxu0 0.0
        %2056 = vmatpush2.msra.mxu0 0.0
        %2057 = vmatprep.subr.mxu0 0.0
        %2058 = vmatpush2.msra.mxu0 0.0
        %2059 = vmatprep.subr.mxu0 0.0
        %2060 = vmatpush2.msra.mxu0 0.0
        %2061 = vmatprep.subr.mxu0 0.0
        %2062 = vmatpush2.msra.mxu0 0.0
        %2063 = vmatprep.subr.mxu0 0.0
        %2064 = vmatpush2.msra.mxu0 0.0
        %2065 = vmatprep.subr.mxu0 0.0
        %2066 = vmatpush2.msra.mxu0 0.0
        %2067 = vmatprep.subr.mxu0 0.0
        %2068 = vmatpush2.msra.mxu0 0.0
        %2069 = vmatprep.subr.mxu0 0.0
        %2070 = vmatpush2.msra.mxu0 0.0
        %2071 = vmatprep.subr.mxu0 0.0
        %2072 = vmatpush2.msra.mxu0 0.0
        %2073 = vmatprep.mubr.f32.mxu0 0.0
        %2074 = vmatmul.mubr.f32.gmra.mxu0 %v469
        %v2075 = vpop.f32.mrf.mxu0
        %v2076 = vadd.f32 %v2007, %v2075
        %v2077 = vpop.f32.mrf.mxu0
        %2078 = vdwg.mxu0
        %s2079 = scalar_lea.vmem %s5, 96
        %v2080 = vld [vmem:[%s2079] sm:$0xff]
        %v2081 = vld [vmem:[%s2079 + $0x8] sm:$0xff]
        %v2082 = vld [vmem:[%s2079 + $0x10] sm:$0xff]
        %v2083 = vld [vmem:[%s2079 + $0x18] sm:$0xff]
        %s2084 = scalar_lea.vmem %s6, 3
        %v2085 = vld [vmem:[%s2084] sm:$0x1]
        %v2087 = vlaneseq
        %v2088 = vshrl.u32 %v2087, 7
        %v2089 = vsub.s32 0, %v2088
        %v2090 = vrot.slane %v2085, %v2089
        %2092 = vmatprep.subr.mxu0 0.0
        %2093 = vmatpush1.msra.mxu0 0.0
        %2094 = vmatprep.subr.mxu0 0.0
        %2095 = vmatpush1.msra.mxu0 0.0
        %2096 = vmatprep.subr.mxu0 0.0
        %2097 = vmatpush1.msra.mxu0 0.0
        %2098 = vmatprep.subr.mxu0 0.0
        %2099 = vmatpush1.msra.mxu0 0.0
        %2100 = vmatprep.subr.mxu0 0.0
        %2101 = vmatpush1.msra.mxu0 0.0
        %2102 = vmatprep.subr.mxu0 0.0
        %2103 = vmatpush1.msra.mxu0 0.0
        %2104 = vmatprep.subr.mxu0 0.0
        %2105 = vmatpush1.msra.mxu0 0.0
        %2106 = vmatprep.subr.mxu0 0.0
        %2107 = vmatpush1.msra.mxu0 0.0
        %2108 = vmatprep.subr.mxu0 0.0
        %2109 = vmatpush1.msra.mxu0 0.0
        %2110 = vmatprep.subr.mxu0 0.0
        %2111 = vmatpush1.msra.mxu0 0.0
        %2112 = vmatprep.subr.mxu0 0.0
        %2113 = vmatpush1.msra.mxu0 0.0
        %2114 = vmatprep.subr.mxu0 0.0
        %2115 = vmatpush1.msra.mxu0 0.0
        %2116 = vmatprep.subr.mxu0 0.0
        %2117 = vmatpush1.msra.mxu0 %v2083
        %2118 = vmatprep.subr.mxu0 0.0
        %2119 = vmatpush1.msra.mxu0 %v2082
        %2120 = vmatprep.subr.mxu0 0.0
        %2121 = vmatpush1.msra.mxu0 %v2081
        %2122 = vmatprep.subr.mxu0 0.0
        %2123 = vmatpush1.msra.mxu0 %v2080
        %2124 = vmatprep.subr.mxu0 0.0
        %2125 = vmatpush2.msra.mxu0 0.0
        %2126 = vmatprep.subr.mxu0 0.0
        %2127 = vmatpush2.msra.mxu0 0.0
        %2128 = vmatprep.subr.mxu0 0.0
        %2129 = vmatpush2.msra.mxu0 0.0
        %2130 = vmatprep.subr.mxu0 0.0
        %2131 = vmatpush2.msra.mxu0 0.0
        %2132 = vmatprep.subr.mxu0 0.0
        %2133 = vmatpush2.msra.mxu0 0.0
        %2134 = vmatprep.subr.mxu0 0.0
        %2135 = vmatpush2.msra.mxu0 0.0
        %2136 = vmatprep.subr.mxu0 0.0
        %2137 = vmatpush2.msra.mxu0 0.0
        %2138 = vmatprep.subr.mxu0 0.0
        %2139 = vmatpush2.msra.mxu0 0.0
        %2140 = vmatprep.subr.mxu0 0.0
        %2141 = vmatpush2.msra.mxu0 0.0
        %2142 = vmatprep.subr.mxu0 0.0
        %2143 = vmatpush2.msra.mxu0 0.0
        %2144 = vmatprep.subr.mxu0 0.0
        %2145 = vmatpush2.msra.mxu0 0.0
        %2146 = vmatprep.subr.mxu0 0.0
        %2147 = vmatpush2.msra.mxu0 0.0
        %2148 = vmatprep.subr.mxu0 0.0
        %2149 = vmatpush2.msra.mxu0 0.0
        %2150 = vmatprep.subr.mxu0 0.0
        %2151 = vmatpush2.msra.mxu0 0.0
        %2152 = vmatprep.subr.mxu0 0.0
        %2153 = vmatpush2.msra.mxu0 0.0
        %2154 = vmatprep.subr.mxu0 0.0
        %2155 = vmatpush2.msra.mxu0 0.0
        %2156 = vmatprep.mubr.f32.mxu0 0.0
        %2157 = vmatmul.mubr.f32.gmra.mxu0 %v469
        %v2158 = vpop.f32.mrf.mxu0
        %v2159 = vadd.f32 %v2090, %v2158
        %v2160 = vpop.f32.mrf.mxu0
        %2161 = vdwg.mxu0
        %v2163 = vsel %vm703, %v1993, 0
        %v2166 = vsel %vm703, %v2076, 0
        %2168 = vmatprep.subr.mxu0 0.0
        %2169 = vmatpush1.xpose.msra.mxu0 0.0
        %2170 = vmatprep.subr.mxu0 0.0
        %2171 = vmatpush1.xpose.msra.mxu0 0.0
        %2172 = vmatprep.subr.mxu0 0.0
        %2173 = vmatpush1.xpose.msra.mxu0 0.0
        %2174 = vmatprep.subr.mxu0 0.0
        %2175 = vmatpush1.xpose.msra.mxu0 0.0
        %2176 = vmatprep.subr.mxu0 0.0
        %2177 = vmatpush1.xpose.msra.mxu0 0.0
        %2178 = vmatprep.subr.mxu0 0.0
        %2179 = vmatpush1.xpose.msra.mxu0 0.0
        %2180 = vmatprep.subr.mxu0 0.0
        %2181 = vmatpush1.xpose.msra.mxu0 0.0
        %2182 = vmatprep.subr.mxu0 0.0
        %2183 = vmatpush1.xpose.msra.mxu0 0.0
        %2184 = vmatprep.subr.mxu0 0.0
        %2185 = vmatpush1.xpose.msra.mxu0 0.0
        %2186 = vmatprep.subr.mxu0 0.0
        %2187 = vmatpush1.xpose.msra.mxu0 0.0
        %2188 = vmatprep.subr.mxu0 0.0
        %2189 = vmatpush1.xpose.msra.mxu0 0.0
        %2190 = vmatprep.subr.mxu0 0.0
        %2191 = vmatpush1.xpose.msra.mxu0 0.0
        %2192 = vmatprep.subr.mxu0 0.0
        %2193 = vmatpush1.xpose.msra.mxu0 0.0
        %2194 = vmatprep.subr.mxu0 0.0
        %2195 = vmatpush1.xpose.msra.mxu0 0.0
        %2196 = vmatprep.subr.mxu0 0.0
        %2197 = vmatpush1.xpose.msra.mxu0 0.0
        %2198 = vmatprep.subr.mxu0 0.0
        %2199 = vmatpush1.xpose.msra.mxu0 %v2166
        %2200 = vmatprep.subr.mxu0 0.0
        %2201 = vmatpush2.xpose.msra.mxu0 0.0
        %2202 = vmatprep.subr.mxu0 0.0
        %2203 = vmatpush2.xpose.msra.mxu0 0.0
        %2204 = vmatprep.subr.mxu0 0.0
        %2205 = vmatpush2.xpose.msra.mxu0 0.0
        %2206 = vmatprep.subr.mxu0 0.0
        %2207 = vmatpush2.xpose.msra.mxu0 0.0
        %2208 = vmatprep.subr.mxu0 0.0
        %2209 = vmatpush2.xpose.msra.mxu0 0.0
        %2210 = vmatprep.subr.mxu0 0.0
        %2211 = vmatpush2.xpose.msra.mxu0 0.0
        %2212 = vmatprep.subr.mxu0 0.0
        %2213 = vmatpush2.xpose.msra.mxu0 0.0
        %2214 = vmatprep.subr.mxu0 0.0
        %2215 = vmatpush2.xpose.msra.mxu0 0.0
        %2216 = vmatprep.subr.mxu0 0.0
        %2217 = vmatpush2.xpose.msra.mxu0 0.0
        %2218 = vmatprep.subr.mxu0 0.0
        %2219 = vmatpush2.xpose.msra.mxu0 0.0
        %2220 = vmatprep.subr.mxu0 0.0
        %2221 = vmatpush2.xpose.msra.mxu0 0.0
        %2222 = vmatprep.subr.mxu0 0.0
        %2223 = vmatpush2.xpose.msra.mxu0 0.0
        %2224 = vmatprep.subr.mxu0 0.0
        %2225 = vmatpush2.xpose.msra.mxu0 0.0
        %2226 = vmatprep.subr.mxu0 0.0
        %2227 = vmatpush2.xpose.msra.mxu0 0.0
        %2228 = vmatprep.subr.mxu0 0.0
        %2229 = vmatpush2.xpose.msra.mxu0 0.0
        %2230 = vmatprep.subr.mxu0 0.0
        %2231 = vmatpush2.xpose.msra.mxu0 0.0
        %2232 = vmatprep.mubr.f32.mxu0 0.0
        %2233 = vmatmul.mubr.f32.gmra.mxu0 %v2163
        %v2234 = vpop.f32.mrf.mxu0
        %v2235 = vadd.f32 0.0, %v2234
        %v2236 = vpop.f32.mrf.mxu0
        %2237 = vdwg.mxu0
        %v2238 = vmul.f32 %v2235, 0.35355338
        %v2239 = vsel %vm456, %v2238, -inf
        %v2240 = vsel %vm703, %v2239, -inf
        %2241 = vmax.xlane.f32.xlu0 %v2240
        %v2242 = vpop.xlane.xlu0 %2241
        %v2243 = vsub.f32 %v2239, %v2242
        %v2244 = vmul.f32 %v2243, 1.442695
        %v2245 = vpow.pop %v2244
        %v2246 = vsel %vm703, %v2245, 0.0
        %2247 = vadd.xlane.f32.xlu0 %v2246
        %v2248 = vpop.xlane.xlu0 %2247
        %v2249 = vrcp.pop %v2248
        %v2250 = vmul.f32 %v2245, %v2249
        %v2252 = vsel %vm703, %v2250, 0
        %2254 = vmatprep.subr.mxu0 0.0
        %2255 = vmatpush1.msra.mxu0 0.0
        %2256 = vmatprep.subr.mxu0 0.0
        %2257 = vmatpush1.msra.mxu0 0.0
        %2258 = vmatprep.subr.mxu0 0.0
        %2259 = vmatpush1.msra.mxu0 0.0
        %2260 = vmatprep.subr.mxu0 0.0
        %2261 = vmatpush1.msra.mxu0 0.0
        %2262 = vmatprep.subr.mxu0 0.0
        %2263 = vmatpush1.msra.mxu0 0.0
        %2264 = vmatprep.subr.mxu0 0.0
        %2265 = vmatpush1.msra.mxu0 0.0
        %2266 = vmatprep.subr.mxu0 0.0
        %2267 = vmatpush1.msra.mxu0 0.0
        %2268 = vmatprep.subr.mxu0 0.0
        %2269 = vmatpush1.msra.mxu0 0.0
        %2270 = vmatprep.subr.mxu0 0.0
        %2271 = vmatpush1.msra.mxu0 0.0
        %2272 = vmatprep.subr.mxu0 0.0
        %2273 = vmatpush1.msra.mxu0 0.0
        %2274 = vmatprep.subr.mxu0 0.0
        %2275 = vmatpush1.msra.mxu0 0.0
        %2276 = vmatprep.subr.mxu0 0.0
        %2277 = vmatpush1.msra.mxu0 0.0
        %2278 = vmatprep.subr.mxu0 0.0
        %2279 = vmatpush1.msra.mxu0 0.0
        %2280 = vmatprep.subr.mxu0 0.0
        %2281 = vmatpush1.msra.mxu0 0.0
        %2282 = vmatprep.subr.mxu0 0.0
        %2283 = vmatpush1.msra.mxu0 0.0
        %2284 = vmatprep.subr.mxu0 0.0
        %2285 = vmatpush1.msra.mxu0 %v2159
        %2286 = vmatprep.subr.mxu0 0.0
        %2287 = vmatpush2.msra.mxu0 0.0
        %2288 = vmatprep.subr.mxu0 0.0
        %2289 = vmatpush2.msra.mxu0 0.0
        %2290 = vmatprep.subr.mxu0 0.0
        %2291 = vmatpush2.msra.mxu0 0.0
        %2292 = vmatprep.subr.mxu0 0.0
        %2293 = vmatpush2.msra.mxu0 0.0
        %2294 = vmatprep.subr.mxu0 0.0
        %2295 = vmatpush2.msra.mxu0 0.0
        %2296 = vmatprep.subr.mxu0 0.0
        %2297 = vmatpush2.msra.mxu0 0.0
        %2298 = vmatprep.subr.mxu0 0.0
        %2299 = vmatpush2.msra.mxu0 0.0
        %2300 = vmatprep.subr.mxu0 0.0
        %2301 = vmatpush2.msra.mxu0 0.0
        %2302 = vmatprep.subr.mxu0 0.0
        %2303 = vmatpush2.msra.mxu0 0.0
        %2304 = vmatprep.subr.mxu0 0.0
        %2305 = vmatpush2.msra.mxu0 0.0
        %2306 = vmatprep.subr.mxu0 0.0
        %2307 = vmatpush2.msra.mxu0 0.0
        %2308 = vmatprep.subr.mxu0 0.0
        %2309 = vmatpush2.msra.mxu0 0.0
        %2310 = vmatprep.subr.mxu0 0.0
        %2311 = vmatpush2.msra.mxu0 0.0
        %2312 = vmatprep.subr.mxu0 0.0
        %2313 = vmatpush2.msra.mxu0 0.0
        %2314 = vmatprep.subr.mxu0 0.0
        %2315 = vmatpush2.msra.mxu0 0.0
        %2316 = vmatprep.subr.mxu0 0.0
        %2317 = vmatpush2.msra.mxu0 0.0
        %2318 = vmatprep.mubr.f32.mxu0 0.0
        %2319 = vmatmul.mubr.f32.gmra.mxu0 %v2252
        %v2320 = vpop.f32.mrf.mxu0
        %v2321 = vadd.f32 0.0, %v2320
        %v2322 = vpop.f32.mrf.mxu0
        %2323 = vdwg.mxu0
        %s2324 = scalar_lea.vmem %s7, 24
        %v2325 = vld [vmem:[%s2324] sm:$0xff]
        %v2327 = vsel %vm703, %v2321, 0
        %2329 = vmatprep.subr.mxu0 0.0
        %2330 = vmatpush1.msra.mxu0 0.0
        %2331 = vmatprep.subr.mxu0 0.0
        %2332 = vmatpush1.msra.mxu0 0.0
        %2333 = vmatprep.subr.mxu0 0.0
        %2334 = vmatpush1.msra.mxu0 0.0
        %2335 = vmatprep.subr.mxu0 0.0
        %2336 = vmatpush1.msra.mxu0 0.0
        %2337 = vmatprep.subr.mxu0 0.0
        %2338 = vmatpush1.msra.mxu0 0.0
        %2339 = vmatprep.subr.mxu0 0.0
        %2340 = vmatpush1.msra.mxu0 0.0
        %2341 = vmatprep.subr.mxu0 0.0
        %2342 = vmatpush1.msra.mxu0 0.0
        %2343 = vmatprep.subr.mxu0 0.0
        %2344 = vmatpush1.msra.mxu0 0.0
        %2345 = vmatprep.subr.mxu0 0.0
        %2346 = vmatpush1.msra.mxu0 0.0
        %2347 = vmatprep.subr.mxu0 0.0
        %2348 = vmatpush1.msra.mxu0 0.0
        %2349 = vmatprep.subr.mxu0 0.0
        %2350 = vmatpush1.msra.mxu0 0.0
        %2351 = vmatprep.subr.mxu0 0.0
        %2352 = vmatpush1.msra.mxu0 0.0
        %2353 = vmatprep.subr.mxu0 0.0
        %2354 = vmatpush1.msra.mxu0 0.0
        %2355 = vmatprep.subr.mxu0 0.0
        %2356 = vmatpush1.msra.mxu0 0.0
        %2357 = vmatprep.subr.mxu0 0.0
        %2358 = vmatpush1.msra.mxu0 0.0
        %2359 = vmatprep.subr.mxu0 0.0
        %2360 = vmatpush1.msra.mxu0 %v2325
        %2361 = vmatprep.subr.mxu0 0.0
        %2362 = vmatpush2.msra.mxu0 0.0
        %2363 = vmatprep.subr.mxu0 0.0
        %2364 = vmatpush2.msra.mxu0 0.0
        %2365 = vmatprep.subr.mxu0 0.0
        %2366 = vmatpush2.msra.mxu0 0.0
        %2367 = vmatprep.subr.mxu0 0.0
        %2368 = vmatpush2.msra.mxu0 0.0
        %2369 = vmatprep.subr.mxu0 0.0
        %2370 = vmatpush2.msra.mxu0 0.0
        %2371 = vmatprep.subr.mxu0 0.0
        %2372 = vmatpush2.msra.mxu0 0.0
        %2373 = vmatprep.subr.mxu0 0.0
        %2374 = vmatpush2.msra.mxu0 0.0
        %2375 = vmatprep.subr.mxu0 0.0
        %2376 = vmatpush2.msra.mxu0 0.0
        %2377 = vmatprep.subr.mxu0 0.0
        %2378 = vmatpush2.msra.mxu0 0.0
        %2379 = vmatprep.subr.mxu0 0.0
        %2380 = vmatpush2.msra.mxu0 0.0
        %2381 = vmatprep.subr.mxu0 0.0
        %2382 = vmatpush2.msra.mxu0 0.0
        %2383 = vmatprep.subr.mxu0 0.0
        %2384 = vmatpush2.msra.mxu0 0.0
        %2385 = vmatprep.subr.mxu0 0.0
        %2386 = vmatpush2.msra.mxu0 0.0
        %2387 = vmatprep.subr.mxu0 0.0
        %2388 = vmatpush2.msra.mxu0 0.0
        %2389 = vmatprep.subr.mxu0 0.0
        %2390 = vmatpush2.msra.mxu0 0.0
        %2391 = vmatprep.subr.mxu0 0.0
        %2392 = vmatpush2.msra.mxu0 0.0
        %2393 = vmatprep.mubr.f32.mxu0 0.0
        %2394 = vmatmul.mubr.f32.gmra.mxu0 %v2327
        %v2395 = vpop.f32.mrf.mxu0
        %v2396 = vadd.f32 0.0, %v2395
        %v2397 = vpop.f32.mrf.mxu0
        %2398 = vdwg.mxu0
        %v2399 = vadd.f32 %v1912, %v2396
        %v2400 = vld [vmem:[%s8] sm:$0x1]
        %v2402 = vlaneseq
        %v2403 = vshrl.u32 %v2402, 7
        %v2404 = vsub.s32 0, %v2403
        %v2405 = vrot.slane %v2400, %v2404
        %v2407 = vadd.f32 %v2399, %v2405
        %v2408 = vadd.f32 %v2407, %v436
        %v2409 = vsel %vm437, %v2408, 0.0
        %2410 = vadd.xlane.f32.xlu0 %v2409
        %v2411 = vpop.xlane.xlu0 %2410
        %v2412 = vmul.f32 %v2411, %v441
        %v2413 = vsub.f32 %v2408, %v2412
        %v2414 = vmul.f32 %v2413, %v2413
        %v2415 = vsel %vm437, %v2414, 0.0
        %2416 = vadd.xlane.f32.xlu0 %v2415
        %v2417 = vpop.xlane.xlu0 %2416
        %v2418 = vmul.f32 %v2417, %v441
        %v2419 = vadd.f32 %v2418, 1e-05
        %v2420 = vrsqrt.pop %v2419
        %v2421 = vmul.f32 %v2413, %v2420
        %v2422 = vld [vmem:[%s9] sm:$0xff]
        %v2423 = vld [vmem:[%s9 + $0x8] sm:$0xff]
        %v2424 = vld [vmem:[%s9 + $0x10] sm:$0xff]
        %v2425 = vld [vmem:[%s9 + $0x18] sm:$0xff]
        %v2426 = vld [vmem:[%s10] sm:$0x1]
        %v2428 = vlaneseq
        %v2429 = vshrl.u32 %v2428, 7
        %v2430 = vsub.s32 0, %v2429
        %v2431 = vrot.slane %v2426, %v2430
        %v2434 = vsel %vm437, %v2421, 0
        %2436 = vmatprep.subr.mxu0 0.0
        %2437 = vmatpush1.msra.mxu0 0.0
        %2438 = vmatprep.subr.mxu0 0.0
        %2439 = vmatpush1.msra.mxu0 0.0
        %2440 = vmatprep.subr.mxu0 0.0
        %2441 = vmatpush1.msra.mxu0 0.0
        %2442 = vmatprep.subr.mxu0 0.0
        %2443 = vmatpush1.msra.mxu0 0.0
        %2444 = vmatprep.subr.mxu0 0.0
        %2445 = vmatpush1.msra.mxu0 0.0
        %2446 = vmatprep.subr.mxu0 0.0
        %2447 = vmatpush1.msra.mxu0 0.0
        %2448 = vmatprep.subr.mxu0 0.0
        %2449 = vmatpush1.msra.mxu0 0.0
        %2450 = vmatprep.subr.mxu0 0.0
        %2451 = vmatpush1.msra.mxu0 0.0
        %2452 = vmatprep.subr.mxu0 0.0
        %2453 = vmatpush1.msra.mxu0 0.0
        %2454 = vmatprep.subr.mxu0 0.0
        %2455 = vmatpush1.msra.mxu0 0.0
        %2456 = vmatprep.subr.mxu0 0.0
        %2457 = vmatpush1.msra.mxu0 0.0
        %2458 = vmatprep.subr.mxu0 0.0
        %2459 = vmatpush1.msra.mxu0 0.0
        %2460 = vmatprep.subr.mxu0 0.0
        %2461 = vmatpush1.msra.mxu0 %v2425
        %2462 = vmatprep.subr.mxu0 0.0
        %2463 = vmatpush1.msra.mxu0 %v2424
        %2464 = vmatprep.subr.mxu0 0.0
        %2465 = vmatpush1.msra.mxu0 %v2423
        %2466 = vmatprep.subr.mxu0 0.0
        %2467 = vmatpush1.msra.mxu0 %v2422
        %2468 = vmatprep.subr.mxu0 0.0
        %2469 = vmatpush2.msra.mxu0 0.0
        %2470 = vmatprep.subr.mxu0 0.0
        %2471 = vmatpush2.msra.mxu0 0.0
        %2472 = vmatprep.subr.mxu0 0.0
        %2473 = vmatpush2.msra.mxu0 0.0
        %2474 = vmatprep.subr.mxu0 0.0
        %2475 = vmatpush2.msra.mxu0 0.0
        %2476 = vmatprep.subr.mxu0 0.0
        %2477 = vmatpush2.msra.mxu0 0.0
        %2478 = vmatprep.subr.mxu0 0.0
        %2479 = vmatpush2.msra.mxu0 0.0
        %2480 = vmatprep.subr.mxu0 0.0
        %2481 = vmatpush2.msra.mxu0 0.0
        %2482 = vmatprep.subr.mxu0 0.0
        %2483 = vmatpush2.msra.mxu0 0.0
        %2484 = vmatprep.subr.mxu0 0.0
        %2485 = vmatpush2.msra.mxu0 0.0
        %2486 = vmatprep.subr.mxu0 0.0
        %2487 = vmatpush2.msra.mxu0 0.0
        %2488 = vmatprep.subr.mxu0 0.0
        %2489 = vmatpush2.msra.mxu0 0.0
        %2490 = vmatprep.subr.mxu0 0.0
        %2491 = vmatpush2.msra.mxu0 0.0
        %2492 = vmatprep.subr.mxu0 0.0
        %2493 = vmatpush2.msra.mxu0 0.0
        %2494 = vmatprep.subr.mxu0 0.0
        %2495 = vmatpush2.msra.mxu0 0.0
        %2496 = vmatprep.subr.mxu0 0.0
        %2497 = vmatpush2.msra.mxu0 0.0
        %2498 = vmatprep.subr.mxu0 0.0
        %2499 = vmatpush2.msra.mxu0 0.0
        %2500 = vmatprep.mubr.f32.mxu0 0.0
        %2501 = vmatmul.mubr.f32.gmra.mxu0 %v2434
        %v2502 = vpop.f32.mrf.mxu0
        %v2503 = vadd.f32 %v2431, %v2502
        %v2504 = vpop.f32.mrf.mxu0
        %2505 = vdwg.mxu0
        %v2506 = vmul.f32 %v2503, 0.5
        %v2507 = vmul.f32 %v2503, 0.70710677
        %v2508 = vand.u32 2147483647, %v2507
        %v2509 = vmul.f32 %v2508, 0.3275911
        %v2510 = vadd.f32 %v2509, 1.0
        %v2511 = vrcp.pop %v2510
        %v2512 = vmul.f32 1.0, %v2511
        %v2513 = vmul.f32 %v2512, 1.0614054
        %v2514 = vadd.f32 %v2513, -1.4531521
        %v2515 = vmul.f32 %v2514, %v2512
        %v2516 = vadd.f32 %v2515, 1.4214138
        %v2517 = vmul.f32 %v2516, %v2512
        %v2518 = vadd.f32 %v2517, -0.28449672
        %v2519 = vmul.f32 %v2518, %v2512
        %v2520 = vadd.f32 %v2519, 0.2548296
        %v2521 = vmul.f32 %v2520, %v2512
        %v2522 = vsub.f32 0.0, %v2508
        %v2523 = vmul.f32 %v2522, %v2508
        %v2524 = vmul.f32 %v2523, 1.442695
        %v2525 = vpow.pop %v2524
        %v2526 = vmul.f32 %v2521, %v2525
        %v2527 = vsub.f32 1.0, %v2526
        %vm2528 = vcmp.ge.f32.partialorder %v2507, 0.0
        %v2529 = vsub.f32 0.0, %v2527
        %v2530 = vsel %vm2528, %v2527, %v2529
        %v2531 = vadd.f32 %v2530, 1.0
        %v2532 = vmul.f32 %v2506, %v2531
        %v2533 = vld [vmem:[%s11] sm:$0xff]
        %v2534 = vld [vmem:[%s11 + $0x8] sm:$0xff]
        %v2535 = vld [vmem:[%s11 + $0x10] sm:$0xff]
        %v2536 = vld [vmem:[%s11 + $0x18] sm:$0xff]
        %v2537 = vld [vmem:[%s11 + $0x20] sm:$0xff]
        %v2538 = vld [vmem:[%s11 + $0x28] sm:$0xff]
        %v2539 = vld [vmem:[%s11 + $0x30] sm:$0xff]
        %v2540 = vld [vmem:[%s11 + $0x38] sm:$0xff]
        %v2541 = vld [vmem:[%s11 + $0x40] sm:$0xff]
        %v2542 = vld [vmem:[%s11 + $0x48] sm:$0xff]
        %v2543 = vld [vmem:[%s11 + $0x50] sm:$0xff]
        %v2544 = vld [vmem:[%s11 + $0x58] sm:$0xff]
        %v2545 = vld [vmem:[%s11 + $0x60] sm:$0xff]
        %v2546 = vld [vmem:[%s11 + $0x68] sm:$0xff]
        %v2547 = vld [vmem:[%s11 + $0x70] sm:$0xff]
        %v2548 = vld [vmem:[%s11 + $0x78] sm:$0xff]
        %v2549 = vld [vmem:[%s12] sm:$0x1]
        %v2551 = vlaneseq
        %v2552 = vshrl.u32 %v2551, 7
        %v2553 = vsub.s32 0, %v2552
        %v2554 = vrot.slane %v2549, %v2553
        %2556 = vmatprep.subr.mxu0 0.0
        %2557 = vmatpush1.msra.mxu0 %v2548
        %2558 = vmatprep.subr.mxu0 0.0
        %2559 = vmatpush1.msra.mxu0 %v2547
        %2560 = vmatprep.subr.mxu0 0.0
        %2561 = vmatpush1.msra.mxu0 %v2546
        %2562 = vmatprep.subr.mxu0 0.0
        %2563 = vmatpush1.msra.mxu0 %v2545
        %2564 = vmatprep.subr.mxu0 0.0
        %2565 = vmatpush1.msra.mxu0 %v2544
        %2566 = vmatprep.subr.mxu0 0.0
        %2567 = vmatpush1.msra.mxu0 %v2543
        %2568 = vmatprep.subr.mxu0 0.0
        %2569 = vmatpush1.msra.mxu0 %v2542
        %2570 = vmatprep.subr.mxu0 0.0
        %2571 = vmatpush1.msra.mxu0 %v2541
        %2572 = vmatprep.subr.mxu0 0.0
        %2573 = vmatpush1.msra.mxu0 %v2540
        %2574 = vmatprep.subr.mxu0 0.0
        %2575 = vmatpush1.msra.mxu0 %v2539
        %2576 = vmatprep.subr.mxu0 0.0
        %2577 = vmatpush1.msra.mxu0 %v2538
        %2578 = vmatprep.subr.mxu0 0.0
        %2579 = vmatpush1.msra.mxu0 %v2537
        %2580 = vmatprep.subr.mxu0 0.0
        %2581 = vmatpush1.msra.mxu0 %v2536
        %2582 = vmatprep.subr.mxu0 0.0
        %2583 = vmatpush1.msra.mxu0 %v2535
        %2584 = vmatprep.subr.mxu0 0.0
        %2585 = vmatpush1.msra.mxu0 %v2534
        %2586 = vmatprep.subr.mxu0 0.0
        %2587 = vmatpush1.msra.mxu0 %v2533
        %2588 = vmatprep.subr.mxu0 0.0
        %2589 = vmatpush2.msra.mxu0 0.0
        %2590 = vmatprep.subr.mxu0 0.0
        %2591 = vmatpush2.msra.mxu0 0.0
        %2592 = vmatprep.subr.mxu0 0.0
        %2593 = vmatpush2.msra.mxu0 0.0
        %2594 = vmatprep.subr.mxu0 0.0
        %2595 = vmatpush2.msra.mxu0 0.0
        %2596 = vmatprep.subr.mxu0 0.0
        %2597 = vmatpush2.msra.mxu0 0.0
        %2598 = vmatprep.subr.mxu0 0.0
        %2599 = vmatpush2.msra.mxu0 0.0
        %2600 = vmatprep.subr.mxu0 0.0
        %2601 = vmatpush2.msra.mxu0 0.0
        %2602 = vmatprep.subr.mxu0 0.0
        %2603 = vmatpush2.msra.mxu0 0.0
        %2604 = vmatprep.subr.mxu0 0.0
        %2605 = vmatpush2.msra.mxu0 0.0
        %2606 = vmatprep.subr.mxu0 0.0
        %2607 = vmatpush2.msra.mxu0 0.0
        %2608 = vmatprep.subr.mxu0 0.0
        %2609 = vmatpush2.msra.mxu0 0.0
        %2610 = vmatprep.subr.mxu0 0.0
        %2611 = vmatpush2.msra.mxu0 0.0
        %2612 = vmatprep.subr.mxu0 0.0
        %2613 = vmatpush2.msra.mxu0 0.0
        %2614 = vmatprep.subr.mxu0 0.0
        %2615 = vmatpush2.msra.mxu0 0.0
        %2616 = vmatprep.subr.mxu0 0.0
        %2617 = vmatpush2.msra.mxu0 0.0
        %2618 = vmatprep.subr.mxu0 0.0
        %2619 = vmatpush2.msra.mxu0 0.0
        %2620 = vmatprep.mubr.f32.mxu0 0.0
        %2621 = vmatmul.mubr.f32.gmra.mxu0 %v2532
        %v2622 = vpop.f32.mrf.mxu0
        %v2623 = vadd.f32 %v2554, %v2622
        %v2624 = vpop.f32.mrf.mxu0
        %2625 = vdwg.mxu0
        %v2626 = vadd.f32 %v2623, %v2408
        %2627 = vst.msk [vmem:[%s431] sm:$0xff] %vm437, %v2626
        %s2628 = sand.u32 %s313, 1
        %s2629 = scalar_lea.sflag [#allocation3], %s2628
        %s2630 = sand.u32 %s313, 1
        %s2631 = smul.addr %s2630, 8
        %s2632 = scalar_lea.vmem [#allocation2], %s2631
        // Predicated region
        $region73: #{tpu_custom_call.1} parent=71 // pred_check
          %p2633 = pneg %p323
        $region74: #{tpu_custom_call.1} parent=71 // pred_check_branch
          %2635 = sbr.rel (%p2633) target = $region76
        $region75: #{tpu_custom_call.1} parent=71 // pred_region
          %s2637 = ssub.s32 128, 128
          %2638 = vsyncadd %s2629, %s2637
          %s2639 = smul.addr %s27, 128
          %s2640 = scalar_lea.hbm %s13, %s2639
          %s2642 = sshll.u32 %s2632, 4
          %s2643 = int_to_ptr.vmem [resolvable:$true] %s2642
          %2645 = dma.vmem_to_hbm [thread:$0]  %s2643, 128, %s2640, %s2629
        $region76: #{tpu_custom_call.1} parent=71 // pred_fallthru
          _
      $region72: #{tpu_custom_call.1} parent=5 // pred_fallthru
        _
      %p2646 = scmp.le.s32.totalorder 2, %s22
      // Predicated region
      $region77: #{tpu_custom_call.1} parent=5 // pred_check
        %p2647 = pneg %p2646
      $region78: #{tpu_custom_call.1} parent=5 // pred_check_branch
        %2649 = sbr.rel (%p2647) target = $region80
      $region79: #{tpu_custom_call.1} parent=5 // pred_region
        %s2650 = ssub.s32 %s22, 2
        // Predicated region
        $region81: #{tpu_custom_call.1} parent=79 // pred_check
          %p2651 = pneg %p329
        $region82: #{tpu_custom_call.1} parent=79 // pred_check_branch
          %2653 = sbr.rel (%p2651) target = $region84
        $region83: #{tpu_custom_call.1} parent=79 // pred_region
          %s2654 = sand.u32 %s314, 1
          %s2655 = scalar_lea.sflag [#allocation3], %s2654
          %s2656 = sand.u32 %s314, 1
          %s2657 = smul.addr %s2656, 8
          %s2658 = scalar_lea.vmem [#allocation2], %s2657
          %2659 = dma.done %s2655, 128
        $region84: #{tpu_custom_call.1} parent=79 // pred_fallthru
          _
      $region80: #{tpu_custom_call.1} parent=5 // pred_fallthru
        _
    $region6: #{tpu_custom_call.1} parent=1 // loop_footer
      %s26 = sadd.s32 1, %s22
    $region7: #{tpu_custom_call.1} parent=1 // loop_footer_branch
      %21 = sbr.rel target = $region3
    $region8: #{tpu_custom_call.1} parent=1 // loop_exit
      _
    %2660 = vsyncpa [#allocation3], 1
    %s2661 = scalar_lea.sflag [#allocation3], 1
    %2662 = vsyncpa %s2661, 1

</llo_original>
